<compile_context>
chip_gen: v7x
topology: tpu7x:2x2x1
jax: 0.10.0
libtpu: 0.0.40
codegen_flags: <defaults>
</compile_context>

<pallas_src>
import functools

import jax
import jax.numpy as jnp
import numpy as np
from jax import lax
from jax.experimental import pallas as pl
from jax.experimental.pallas import tpu as pltpu

EPS = 1e-5
PL_LANES = 128  # lane width used for the spatial-attention planes


# --------------------------------------------------------------------------
# One-time parameter preprocessing (hoisted out of the forward pass)
# --------------------------------------------------------------------------
def prepare_params(params, x_shape, *, padding=1, attention=True):
    N, Cin, H, W = x_shape
    conv_w = params["conv_w"].astype(jnp.float32)         # (Cout, Cin, K, K)
    conv_b = params["conv_b"].astype(jnp.float32)
    gamma = params["bn_gamma"].astype(jnp.float32)
    beta = params["bn_beta"].astype(jnp.float32)
    Cout, _, K, _ = conv_w.shape
    Hp, Wp = H + 2 * padding, W + 2 * padding
    Ho, Wo = Hp - K + 1, Wp - K + 1
    WoC = Wo * Cout

    # ---- conv weights as K row-Toeplitz matrices (K, Wp*Cin, Wo*Cout), bf16 ----
    wt = jnp.transpose(conv_w, (2, 3, 1, 0))              # (Ky, Kx, Cin, Cout)
    wx = jnp.arange(Wp)[:, None]
    ox = jnp.arange(Wo)[None, :]
    kx = wx - ox
    valid = (kx >= 0) & (kx < K)
    kxc = jnp.clip(kx, 0, K - 1)
    rows = []
    for ky in range(K):
        g = wt[ky][kxc]                                   # (Wp, Wo, Cin, Cout)
        g = jnp.where(valid[:, :, None, None], g, 0.0)
        rows.append(jnp.transpose(g, (0, 2, 1, 3)).reshape(Wp * Cin, WoC))

    prep = {
        "big_w": jnp.stack(rows, axis=0).astype(jnp.bfloat16),
        "bias_wc": jnp.tile(conv_b, (Wo,)).reshape(1, WoC),
        "gb": jnp.stack([gamma, beta], axis=0),           # (2, Cout)
        # channel-gather (Wo*Cout, Cout) and its transpose (replication):
        "gather_c": jnp.tile(jnp.eye(Cout, dtype=jnp.float32), (Wo, 1)),
    }
    prep["rep_c"] = prep["gather_c"].T
    if not attention:
        return prep

    # TODO(synk): non-power-of-two Cout needs a slice-loop fallback for the
    # per-pixel channel max (log2 lane-roll reduction assumes Cout = 2^k).
    assert Cout & (Cout - 1) == 0

    prep["w1"] = params["ca_fc1_w"][:, :, 0, 0].T.astype(jnp.float32)  # (C, Cr)
    prep["w2"] = params["ca_fc2_w"][:, :, 0, 0].T.astype(jnp.float32)  # (Cr, C)

    # ---- spatial-attention Toeplitz with channel expansion folded in ----
    w_sa = params["sa_conv_w"].astype(jnp.float32)        # (1, 2, KS, KS)
    KS = w_sa.shape[-1]
    POFF = (KS - 1) // 2
    assert Wo + POFF <= PL_LANES  # TODO(synk): tile wide images over W for the SA conv
    expand = jnp.kron(jnp.eye(Wo, dtype=jnp.float32),
                      jnp.ones((1, Cout), jnp.float32))   # (Wo, WoC)
    px = jnp.arange(PL_LANES)[:, None]
    oxs = jnp.arange(Wo)[None, :]
    kxs = px - oxs + POFF          # planes stored UNPADDED at lanes 0..Wo-1
    sval = (kxs >= 0) & (kxs < KS)
    kxsc = jnp.clip(kxs, 0, KS - 1)
    trows = []
    for ky in range(KS):
        t_avg = jnp.where(sval, w_sa[0, 0, ky][kxsc], 0.0)   # (PL, Wo)
        t_max = jnp.where(sval, w_sa[0, 1, ky][kxsc], 0.0)
        t_both = jnp.concatenate([t_avg, t_max], axis=0)     # (2*PL, Wo)
        trows.append(jnp.dot(t_both, expand))                # fold expansion -> (2*PL, WoC)
    prep["tsa_exp"] = jnp.stack(trows, axis=0)               # (KS, 2*PL, WoC)

    # [out_ca | rolled-max] (H, 2*WoC) @ plane_proj -> [avg_plane | max_plane]
    # (H, 2*PL) in one lane-dense MXU matmul.
    e_last = jnp.zeros((Cout, 1), jnp.float32).at[Cout - 1, 0].set(1.0)
    sel_max = jnp.kron(jnp.eye(Wo, dtype=jnp.float32), e_last)  # (WoC, Wo)
    plane_proj = jnp.zeros((2 * WoC, 2 * PL_LANES), jnp.float32)
    plane_proj = plane_proj.at[0:WoC, 0:Wo].set(expand.T * (1.0 / Cout))
    plane_proj = plane_proj.at[WoC:, PL_LANES:PL_LANES + Wo].set(sel_max)
    prep["plane_proj"] = plane_proj
    return prep


# --------------------------------------------------------------------------
# Kernel A: conv (row-Toeplitz MXU matmuls) + bias + per-image BN statistics
# --------------------------------------------------------------------------
def _conv_stats_kernel(x_ref, w_ref, b_ref, y_ref, stats_ref):
    Ho = y_ref.shape[1]
    K = w_ref.shape[0]
    acc = jnp.zeros((Ho, y_ref.shape[2]), jnp.float32)
    for ky in range(K):                      # K row-shifted matmuls, M = Ho rows
        acc = acc + jnp.dot(x_ref[0, ky:ky + Ho, :], w_ref[ky],
                            preferred_element_type=jnp.float32)
    y = acc + b_ref[...]
    y_ref[0] = y
    stats_ref[0] = jnp.concatenate(
        [jnp.sum(y, axis=0, keepdims=True),
         jnp.sum(y * y, axis=0, keepdims=True)], axis=0)


def conv_bn_stats(x_rows, big_w, bias_wc):
    N, Hp, WpCin = x_rows.shape
    K, _, WoC = big_w.shape
    Ho = Hp - K + 1
    return pl.pallas_call(
        _conv_stats_kernel,
        out_shape=(jax.ShapeDtypeStruct((N, Ho, WoC), jnp.float32),
                   jax.ShapeDtypeStruct((N, 2, WoC), jnp.float32)),
        grid=(N,),
        in_specs=[
            pl.BlockSpec((1, Hp, WpCin), lambda n: (n, 0, 0)),
            pl.BlockSpec((K, WpCin, WoC), lambda n: (0, 0, 0)),
            pl.BlockSpec((1, WoC), lambda n: (0, 0)),
        ],
        out_specs=(
            pl.BlockSpec((1, Ho, WoC), lambda n: (n, 0, 0)),
            pl.BlockSpec((1, 2, WoC), lambda n: (n, 0, 0)),
        ),
        compiler_params=pltpu.CompilerParams(
            dimension_semantics=("parallel",)),
    )(x_rows, big_w, bias_wc)


# --------------------------------------------------------------------------
# Shared in-kernel BatchNorm finalize (from raw [sum, sum^2] batch stats)
# --------------------------------------------------------------------------
def _bn_scale_shift(stats_ref, gb_ref, gather_ref, rep_ref, hw):
    cnt = float(stats_ref.shape[0] * hw)
    s_wc = jnp.sum(stats_ref[...], axis=0)                      # (2, WC)
    s_c = jnp.dot(s_wc, gather_ref[...],
                  preferred_element_type=jnp.float32)           # (2, C)
    mean = s_c[0:1] * (1.0 / cnt)
    # NOTE: E[y^2]-E[y]^2 in f32; fine here, use shifted accumulation if the
    # conv output mean is large relative to its std.
    var = jnp.maximum(s_c[1:2] * (1.0 / cnt) - mean * mean, 0.0)
    scale_c = gb_ref[0:1] * lax.rsqrt(var + EPS)                # gamma / std
    shift_c = gb_ref[1:2] - mean * scale_c                      # beta - mean*scale
    ss = jnp.dot(jnp.concatenate([scale_c, shift_c], axis=0), rep_ref[...],
                 preferred_element_type=jnp.float32)            # (2, WC) lane-dense
    return ss[0:1], ss[1:2]


# --------------------------------------------------------------------------
# Kernel B: fused BN affine + channel attention + spatial attention + ReLU
# --------------------------------------------------------------------------
def _attn_fused_kernel(y_ref, stats_ref, gb_ref, w1_ref, w2_ref,
                       tsa_ref, gather_ref, rep_ref, proj_ref, o_ref):
    H, WC = y_ref.shape[1], y_ref.shape[2]
    C = gb_ref.shape[1]
    W = WC // C
    KS = tsa_ref.shape[0]
    POFF = (KS - 1) // 2

    scale_wc, shift_wc = _bn_scale_shift(stats_ref, gb_ref, gather_ref,
                                         rep_ref, H * W)
    out_bn = y_ref[0] * scale_wc + shift_wc                     # (H, WC)

    # ---- channel attention: per-channel mean/max over H*W ----
    colsum = jnp.sum(out_bn, axis=0, keepdims=True)             # (1, WC)
    colmax = jnp.max(out_bn, axis=0, keepdims=True)             # (1, WC)
    ch_avg = jnp.dot(colsum, gather_ref[...],
                     preferred_element_type=jnp.float32) * (1.0 / (H * W))
    if W & (W - 1) == 0:
        m = colmax
        s = C
        while s < WC:               # log2(W) stride-C cyclic max reductions
            m = jnp.maximum(m, jnp.roll(m, s, axis=-1))
            s *= 2
        ch_max = m[:, 0:C]
    else:
        ch_max = colmax[:, 0:C]
        for w in range(1, W):
            ch_max = jnp.maximum(ch_max, colmax[:, w * C:(w + 1) * C])

    pooled = jnp.concatenate([ch_avg, ch_max], axis=0)          # (2, C) batched MLP
    hid = jnp.maximum(jnp.dot(pooled, w1_ref[...],
                              preferred_element_type=jnp.float32), 0.0)
    mlp = jnp.dot(hid, w2_ref[...], preferred_element_type=jnp.float32)
    att = jax.nn.sigmoid(mlp[0:1, :] + mlp[1:2, :])             # (1, C)
    att_wc = jnp.dot(att, rep_ref[...],
                     preferred_element_type=jnp.float32)        # (1, WC) broadcast
    out_ca = out_bn * att_wc                                    # (H, WC), VMEM only

    # ---- per-pixel channel max: log2(C) lane rolls (group max -> lane w*C+C-1) ----
    mm = out_ca
    s = 1
    while s < C:
        mm = jnp.maximum(mm, jnp.roll(mm, s, axis=-1))
        s *= 2

    # ---- avg & max planes in ONE lane-dense matmul -> (H, 2*PL) ----
    cat = jnp.concatenate([out_ca, mm], axis=1)                 # (H, 2*WC)
    planes = jnp.dot(cat, proj_ref[...], preferred_element_type=jnp.float32)

    # ---- KSxKS "same" conv: KS row-shifted MXU matmuls (expansion folded) ----
    zpad = jnp.zeros((POFF, planes.shape[1]), jnp.float32)
    slab = jnp.concatenate([zpad, planes, zpad], axis=0)        # (H+KS-1, 2*PL)
    acc = jnp.zeros((H, WC), jnp.float32)
    for ky in range(KS):
        acc = acc + jnp.dot(slab[ky:ky + H, :], tsa_ref[ky],
                            preferred_element_type=jnp.float32)

    # sigmoid commutes with the folded 0/1 channel replication.
    o_ref[0] = jnp.maximum(out_bn + jax.nn.sigmoid(acc) * out_ca, 0.0)


def fused_attention(y, stats, gb, w1, w2, tsa_exp, gather_c, rep_c, plane_proj):
    N, Ho, WoC = y.shape
    return pl.pallas_call(
        _attn_fused_kernel,
        out_shape=jax.ShapeDtypeStruct((N, Ho, WoC), jnp.float32),
        grid=(N,),
        in_specs=[
            pl.BlockSpec((1, Ho, WoC), lambda n: (n, 0, 0)),
            pl.BlockSpec(stats.shape, lambda n: (0, 0, 0)),
            pl.BlockSpec(gb.shape, lambda n: (0, 0)),
            pl.BlockSpec(w1.shape, lambda n: (0, 0)),
            pl.BlockSpec(w2.shape, lambda n: (0, 0)),
            pl.BlockSpec(tsa_exp.shape, lambda n: (0, 0, 0)),
            pl.BlockSpec(gather_c.shape, lambda n: (0, 0)),
            pl.BlockSpec(rep_c.shape, lambda n: (0, 0)),
            pl.BlockSpec(plane_proj.shape, lambda n: (0, 0)),
        ],
        out_specs=pl.BlockSpec((1, Ho, WoC), lambda n: (n, 0, 0)),
        compiler_params=pltpu.CompilerParams(
            dimension_semantics=("parallel",)),
    )(y, stats, gb, w1, w2, tsa_exp, gather_c, rep_c, plane_proj)


# --------------------------------------------------------------------------
# Kernel C: BN affine + ReLU (attention=False path)
# --------------------------------------------------------------------------
def _bn_relu_kernel(y_ref, stats_ref, gb_ref, gather_ref, rep_ref, o_ref):
    H, WC = y_ref.shape[1], y_ref.shape[2]
    W = WC // gb_ref.shape[1]
    scale_wc, shift_wc = _bn_scale_shift(stats_ref, gb_ref, gather_ref,
                                         rep_ref, H * W)
    o_ref[0] = jnp.maximum(y_ref[0] * scale_wc + shift_wc, 0.0)


def bn_relu(y, stats, gb, gather_c, rep_c):
    N, Ho, WoC = y.shape
    return pl.pallas_call(
        _bn_relu_kernel,
        out_shape=jax.ShapeDtypeStruct((N, Ho, WoC), jnp.float32),
        grid=(N,),
        in_specs=[
            pl.BlockSpec((1, Ho, WoC), lambda n: (n, 0, 0)),
            pl.BlockSpec(stats.shape, lambda n: (0, 0, 0)),
            pl.BlockSpec(gb.shape, lambda n: (0, 0)),
            pl.BlockSpec(gather_c.shape, lambda n: (0, 0)),
            pl.BlockSpec(rep_c.shape, lambda n: (0, 0)),
        ],
        out_specs=pl.BlockSpec((1, Ho, WoC), lambda n: (n, 0, 0)),
        compiler_params=pltpu.CompilerParams(
            dimension_semantics=("parallel",)),
    )(y, stats, gb, gather_c, rep_c)


# --------------------------------------------------------------------------
# Wrapper: `Layer.forward`
# --------------------------------------------------------------------------
def layer_forward(x_nchw, prep, *, attention=True, padding=1):
    N, Cin, H, W = x_nchw.shape
    big_w = prep["big_w"]
    K = big_w.shape[0]
    WoC = big_w.shape[2]
    Cout = prep["gb"].shape[1]
    Hp, Wp = H + 2 * padding, W + 2 * padding
    Ho, Wo = Hp - K + 1, Wp - K + 1

    # lane-dense padded input (N, Hp, Wp*Cin) in bf16 (halves HBM/VMEM traffic;
    # the MXU runs bf16 passes at default precision anyway).
    x = jnp.transpose(x_nchw, (0, 2, 3, 1))                 # NCHW -> NHWC
    xp = jnp.pad(x, ((0, 0), (padding, padding), (padding, padding), (0, 0)))
    x_rows = xp.reshape(N, Hp, Wp * Cin).astype(jnp.bfloat16)

    y, stats = conv_bn_stats(x_rows, big_w, prep["bias_wc"])

    if attention:
        out = fused_attention(y, stats, prep["gb"], prep["w1"], prep["w2"],
                              prep["tsa_exp"], prep["gather_c"],
                              prep["rep_c"], prep["plane_proj"])
    else:
        out = bn_relu(y, stats, prep["gb"], prep["gather_c"], prep["rep_c"])

    # NCHW to match the PyTorch module; a lane-dense consumer should take
    # `out` (N, Ho, Wo*Cout) directly and skip this transpose.
    return jnp.transpose(out.reshape(N, Ho, Wo, Cout), (0, 3, 1, 2))


# --------------------------------------------------------------------------
# Pure-JAX reference (validation only; kept at HIGHEST precision)
# --------------------------------------------------------------------------
def reference_forward(x, params, *, padding=1, attention=True):
    w, b = params["conv_w"], params["conv_b"]
    gamma, beta = params["bn_gamma"], params["bn_beta"]
    y = lax.conv_general_dilated(x, w, (1, 1), [(padding, padding)] * 2,
                                 dimension_numbers=("NCHW", "OIHW", "NCHW"),
                                 precision=lax.Precision.HIGHEST)
    y = y + b[None, :, None, None]
    mean = y.mean(axis=(0, 2, 3), keepdims=True)
    var = ((y - mean) ** 2).mean(axis=(0, 2, 3), keepdims=True)
    ybn = (y - mean) / jnp.sqrt(var + EPS) * gamma[None, :, None, None] \
        + beta[None, :, None, None]
    if not attention:
        return jnp.maximum(ybn, 0.0)

    w1 = params["ca_fc1_w"][:, :, 0, 0]     # (Cr, C)
    w2 = params["ca_fc2_w"][:, :, 0, 0]     # (C, Cr)

    def mlp(v):                             # v: (N, C)
        h = jnp.maximum(v @ w1.T, 0.0)
        return h @ w2.T

    ca = jax.nn.sigmoid(mlp(ybn.mean(axis=(2, 3))) + mlp(ybn.max(axis=(2, 3))))
    out_ca = ca[:, :, None, None] * ybn

    cat = jnp.stack([out_ca.mean(axis=1), out_ca.max(axis=1)], axis=1)
    sa = lax.conv_general_dilated(cat, params["sa_conv_w"], (1, 1),
                                  [(3, 3), (3, 3)],
                                  dimension_numbers=("NCHW", "OIHW", "NCHW"),
                                  precision=lax.Precision.HIGHEST)
    out_sa = jax.nn.sigmoid(sa) * out_ca
    return jnp.maximum(ybn + out_sa, 0.0)


if __name__ == "__main__":
    N, Cin, H, W = 2, 4, 16, 16
    Cout, K, pad = 16, 3, 1            # ratio=8 -> reduced channels = 2

    key = jax.random.PRNGKey(0)
    kx, k1, k2, k3, k4, k5 = jax.random.split(key, 6)
    x = jax.random.normal(kx, (N, Cin, H, W), jnp.float32)
    params = {
        "conv_w": jax.random.normal(k1, (Cout, Cin, K, K), jnp.float32) * 0.2,
        "conv_b": jax.random.normal(k2, (Cout,), jnp.float32) * 0.1,
        "bn_gamma": 1.0 + 0.1 * jnp.arange(Cout, dtype=jnp.float32) / Cout,
        "bn_beta": 0.05 * jnp.arange(Cout, dtype=jnp.float32) / Cout,
        "ca_fc1_w": jax.random.normal(k3, (Cout // 8, Cout, 1, 1), jnp.float32) * 0.3,
        "ca_fc2_w": jax.random.normal(k4, (Cout, Cout // 8, 1, 1), jnp.float32) * 0.3,
        "sa_conv_w": jax.random.normal(k5, (1, 2, 7, 7), jnp.float32) * 0.2,
    }

    # One-time preprocessing (hoisted out of the forward pass).
    prep = prepare_params(params, x.shape, padding=pad, attention=True)

    # Kernel matmuls run at default (bf16 MXU) precision; the reference runs
    # at HIGHEST, so allow bf16-level tolerance.
    RTOL, ATOL = 2e-2, 3e-2

    # --- attention path ---
    fwd = jax.jit(functools.partial(layer_forward, attention=True, padding=pad))
    out = jax.block_until_ready(fwd(x, prep))
    assert out.shape == (N, Cout, H, W)
    ref = reference_forward(x, params, padding=pad, attention=True)
    if not np.allclose(np.asarray(out), np.asarray(ref), rtol=RTOL, atol=ATOL):
        raise AssertionError(
            f"attention path mismatch, max abs err="
            f"{float(jnp.max(jnp.abs(out - ref)))}")

    # --- no-attention path ---
    fwd_na = jax.jit(functools.partial(layer_forward, attention=False, padding=pad))
    out_na = jax.block_until_ready(fwd_na(x, prep))
    ref_na = reference_forward(x, params, padding=pad, attention=False)
    if not np.allclose(np.asarray(out_na), np.asarray(ref_na), rtol=RTOL, atol=ATOL):
        raise AssertionError(
            f"no-attention path mismatch, max abs err="
            f"{float(jnp.max(jnp.abs(out_na - ref_na)))}")

    print("KERNEL_OK")
</pallas_src>

<mosaic_0001>
module attributes {stable_mosaic.version = 11 : i64} {
  func.func @_conv_stats_kernel(%arg0: i32, %arg1: memref<1x18x72xbf16, #tpu.memory_space<vmem>>, %arg2: memref<3x72x256xbf16, #tpu.memory_space<vmem>>, %arg3: memref<1x256xf32, #tpu.memory_space<vmem>>, %arg4: memref<1x16x256xf32, #tpu.memory_space<vmem>>, %arg5: memref<1x2x256xf32, #tpu.memory_space<vmem>>) attributes {dimension_semantics = [#tpu.dimension_semantics<parallel>], iteration_bounds = array<i64: 2>, scalar_prefetch = 0 : i64, scratch_operands = 0 : i64, tpu.core_type = #tpu.core_type<tc>, window_params = [{transform_indices = @transform_0, window_bounds = array<i64: 1, 18, 72>}, {pipeline_mode = #tpu.pipeline_mode<synchronous>, transform_indices = @transform_1, window_bounds = array<i64: 3, 72, 256>}, {pipeline_mode = #tpu.pipeline_mode<synchronous>, transform_indices = @transform_2, window_bounds = array<i64: 1, 256>}, {transform_indices = @transform_3, window_bounds = array<i64: 1, 16, 256>}, {transform_indices = @transform_4, window_bounds = array<i64: 1, 2, 256>}]} {
    %cst = arith.constant 0.000000e+00 : f32
    %0 = vector.broadcast %cst : f32 to vector<16x256xf32>
    %c0 = arith.constant 0 : index
    %c0_0 = arith.constant 0 : index
    %c0_1 = arith.constant 0 : index
    %1 = vector.load %arg1[%c0, %c0_0, %c0_1] : memref<1x18x72xbf16, #tpu.memory_space<vmem>>, vector<1x16x72xbf16>
    %2 = vector.shape_cast %1 : vector<1x16x72xbf16> to vector<16x72xbf16>
    %c0_2 = arith.constant 0 : index
    %c0_3 = arith.constant 0 : index
    %c0_4 = arith.constant 0 : index
    %3 = vector.load %arg2[%c0_2, %c0_3, %c0_4] : memref<3x72x256xbf16, #tpu.memory_space<vmem>>, vector<1x72x256xbf16>
    %4 = vector.shape_cast %3 : vector<1x72x256xbf16> to vector<72x256xbf16>
    %cst_5 = arith.constant dense<0.000000e+00> : vector<16x256xf32>
    %5 = tpu.matmul %2, %4, %cst_5 {dimension_numbers = #tpu.dot_dimension_numbers<[1], [0], [0], [1], [0, 0, 1, 1], [], []>} : vector<16x72xbf16>, vector<72x256xbf16>, vector<16x256xf32> -> vector<16x256xf32>
    %6 = arith.addf %0, %5 : vector<16x256xf32>
    %c0_6 = arith.constant 0 : index
    %c1 = arith.constant 1 : index
    %c0_7 = arith.constant 0 : index
    %7 = vector.load %arg1[%c0_6, %c1, %c0_7] : memref<1x18x72xbf16, #tpu.memory_space<vmem>>, vector<1x16x72xbf16>
    %8 = vector.shape_cast %7 : vector<1x16x72xbf16> to vector<16x72xbf16>
    %c1_8 = arith.constant 1 : index
    %c0_9 = arith.constant 0 : index
    %c0_10 = arith.constant 0 : index
    %9 = vector.load %arg2[%c1_8, %c0_9, %c0_10] : memref<3x72x256xbf16, #tpu.memory_space<vmem>>, vector<1x72x256xbf16>
    %10 = vector.shape_cast %9 : vector<1x72x256xbf16> to vector<72x256xbf16>
    %cst_11 = arith.constant dense<0.000000e+00> : vector<16x256xf32>
    %11 = tpu.matmul %8, %10, %cst_11 {dimension_numbers = #tpu.dot_dimension_numbers<[1], [0], [0], [1], [0, 0, 1, 1], [], []>} : vector<16x72xbf16>, vector<72x256xbf16>, vector<16x256xf32> -> vector<16x256xf32>
    %12 = arith.addf %6, %11 : vector<16x256xf32>
    %c0_12 = arith.constant 0 : index
    %c2 = arith.constant 2 : index
    %c0_13 = arith.constant 0 : index
    %13 = vector.load %arg1[%c0_12, %c2, %c0_13] : memref<1x18x72xbf16, #tpu.memory_space<vmem>>, vector<1x16x72xbf16>
    %14 = vector.shape_cast %13 : vector<1x16x72xbf16> to vector<16x72xbf16>
    %c2_14 = arith.constant 2 : index
    %c0_15 = arith.constant 0 : index
    %c0_16 = arith.constant 0 : index
    %15 = vector.load %arg2[%c2_14, %c0_15, %c0_16] : memref<3x72x256xbf16, #tpu.memory_space<vmem>>, vector<1x72x256xbf16>
    %16 = vector.shape_cast %15 : vector<1x72x256xbf16> to vector<72x256xbf16>
    %cst_17 = arith.constant dense<0.000000e+00> : vector<16x256xf32>
    %17 = tpu.matmul %14, %16, %cst_17 {dimension_numbers = #tpu.dot_dimension_numbers<[1], [0], [0], [1], [0, 0, 1, 1], [], []>} : vector<16x72xbf16>, vector<72x256xbf16>, vector<16x256xf32> -> vector<16x256xf32>
    %18 = arith.addf %12, %17 : vector<16x256xf32>
    %c0_18 = arith.constant 0 : index
    %c0_19 = arith.constant 0 : index
    %19 = vector.load %arg3[%c0_18, %c0_19] : memref<1x256xf32, #tpu.memory_space<vmem>>, vector<1x256xf32>
    %20 = vector.broadcast %19 : vector<1x256xf32> to vector<16x256xf32>
    %21 = arith.addf %18, %20 : vector<16x256xf32>
    %c0_20 = arith.constant 0 : index
    %c0_21 = arith.constant 0 : index
    %c0_22 = arith.constant 0 : index
    %22 = vector.load %arg4[%c0_20, %c0_21, %c0_22] : memref<1x16x256xf32, #tpu.memory_space<vmem>>, vector<1x16x256xf32>
    %23 = vector.shape_cast %22 : vector<1x16x256xf32> to vector<16x256xf32>
    %24 = vector.shape_cast %21 : vector<16x256xf32> to vector<1x16x256xf32>
    tpu.vector_store %arg4[%c0_20, %c0_21, %c0_22], %24 {strides = array<i32>} : memref<1x16x256xf32, #tpu.memory_space<vmem>>, vector<1x16x256xf32>,
    %cst_23 = arith.constant dense<0.000000e+00> : vector<256xf32>
    %25 = vector.multi_reduction <add>, %21, %cst_23 [0] : vector<16x256xf32> to vector<256xf32>
    %26 = vector.shape_cast %25 : vector<256xf32> to vector<1x256xf32>
    %27 = arith.mulf %21, %21 : vector<16x256xf32>
    %cst_24 = arith.constant dense<0.000000e+00> : vector<256xf32>
    %28 = vector.multi_reduction <add>, %27, %cst_24 [0] : vector<16x256xf32> to vector<256xf32>
    %29 = vector.shape_cast %28 : vector<256xf32> to vector<1x256xf32>
    %30 = tpu.concatenate %26, %29 in 0 : vector<1x256xf32>, vector<1x256xf32> -> vector<2x256xf32>
    %c0_25 = arith.constant 0 : index
    %c0_26 = arith.constant 0 : index
    %c0_27 = arith.constant 0 : index
    %31 = vector.load %arg5[%c0_25, %c0_26, %c0_27] : memref<1x2x256xf32, #tpu.memory_space<vmem>>, vector<1x2x256xf32>
    %32 = vector.shape_cast %31 : vector<1x2x256xf32> to vector<2x256xf32>
    %33 = vector.shape_cast %30 : vector<2x256xf32> to vector<1x2x256xf32>
    tpu.vector_store %arg5[%c0_25, %c0_26, %c0_27], %33 {strides = array<i32>} : memref<1x2x256xf32, #tpu.memory_space<vmem>>, vector<1x2x256xf32>,
    return
  }
  func.func @transform_0(%arg0: i32) -> (i32, i32, i32) {
    %c0_i32 = arith.constant 0 : i32
    %c0_i32_0 = arith.constant 0 : i32
    %c0_i32_1 = arith.constant 0 : i32
    return %arg0, %c0_i32, %c0_i32_0 : i32, i32, i32
  }
  func.func @transform_1(%arg0: i32) -> (i32, i32, i32) {
    %c0_i32 = arith.constant 0 : i32
    %c0_i32_0 = arith.constant 0 : i32
    %c0_i32_1 = arith.constant 0 : i32
    %c0_i32_2 = arith.constant 0 : i32
    return %c0_i32, %c0_i32_0, %c0_i32_1 : i32, i32, i32
  }
  func.func @transform_2(%arg0: i32) -> (i32, i32) {
    %c0_i32 = arith.constant 0 : i32
    %c0_i32_0 = arith.constant 0 : i32
    %c0_i32_1 = arith.constant 0 : i32
    return %c0_i32, %c0_i32_0 : i32, i32
  }
  func.func @transform_3(%arg0: i32) -> (i32, i32, i32) {
    %c0_i32 = arith.constant 0 : i32
    %c0_i32_0 = arith.constant 0 : i32
    %c0_i32_1 = arith.constant 0 : i32
    return %arg0, %c0_i32, %c0_i32_0 : i32, i32, i32
  }
  func.func @transform_4(%arg0: i32) -> (i32, i32, i32) {
    %c0_i32 = arith.constant 0 : i32
    %c0_i32_0 = arith.constant 0 : i32
    %c0_i32_1 = arith.constant 0 : i32
    return %arg0, %c0_i32, %c0_i32_0 : i32, i32, i32
  }
}

module attributes {stable_mosaic.version = 11 : i64} {
  func.func @_attn_fused_kernel(%arg0: i32, %arg1: memref<1x16x256xf32, #tpu.memory_space<vmem>>, %arg2: memref<2x2x256xf32, #tpu.memory_space<vmem>>, %arg3: memref<2x16xf32, #tpu.memory_space<vmem>>, %arg4: memref<16x2xf32, #tpu.memory_space<vmem>>, %arg5: memref<2x16xf32, #tpu.memory_space<vmem>>, %arg6: memref<7x256x256xf32, #tpu.memory_space<vmem>>, %arg7: memref<256x16xf32, #tpu.memory_space<vmem>>, %arg8: memref<16x256xf32, #tpu.memory_space<vmem>>, %arg9: memref<512x256xf32, #tpu.memory_space<vmem>>, %arg10: memref<1x16x256xf32, #tpu.memory_space<vmem>>) attributes {dimension_semantics = [#tpu.dimension_semantics<parallel>], iteration_bounds = array<i64: 2>, scalar_prefetch = 0 : i64, scratch_operands = 0 : i64, tpu.core_type = #tpu.core_type<tc>, window_params = [{transform_indices = @transform_0, window_bounds = array<i64: 1, 16, 256>}, {pipeline_mode = #tpu.pipeline_mode<synchronous>, transform_indices = @transform_1, window_bounds = array<i64: 2, 2, 256>}, {pipeline_mode = #tpu.pipeline_mode<synchronous>, transform_indices = @transform_2, window_bounds = array<i64: 2, 16>}, {pipeline_mode = #tpu.pipeline_mode<synchronous>, transform_indices = @transform_3, window_bounds = array<i64: 16, 2>}, {pipeline_mode = #tpu.pipeline_mode<synchronous>, transform_indices = @transform_4, window_bounds = array<i64: 2, 16>}, {pipeline_mode = #tpu.pipeline_mode<synchronous>, transform_indices = @transform_5, window_bounds = array<i64: 7, 256, 256>}, {pipeline_mode = #tpu.pipeline_mode<synchronous>, transform_indices = @transform_6, window_bounds = array<i64: 256, 16>}, {pipeline_mode = #tpu.pipeline_mode<synchronous>, transform_indices = @transform_7, window_bounds = array<i64: 16, 256>}, {pipeline_mode = #tpu.pipeline_mode<synchronous>, transform_indices = @transform_8, window_bounds = array<i64: 512, 256>}, {transform_indices = @transform_9, window_bounds = array<i64: 1, 16, 256>}]} {
    %c0 = arith.constant 0 : index
    %c0_0 = arith.constant 0 : index
    %c0_1 = arith.constant 0 : index
    %0 = vector.load %arg2[%c0, %c0_0, %c0_1] : memref<2x2x256xf32, #tpu.memory_space<vmem>>, vector<2x2x256xf32>
    %cst = arith.constant dense<0.000000e+00> : vector<2x256xf32>
    %1 = vector.multi_reduction <add>, %0, %cst [0] : vector<2x2x256xf32> to vector<2x256xf32>
    %c0_2 = arith.constant 0 : index
    %c0_3 = arith.constant 0 : index
    %2 = vector.load %arg7[%c0_2, %c0_3] : memref<256x16xf32, #tpu.memory_space<vmem>>, vector<256x16xf32>
    %cst_4 = arith.constant dense<0.000000e+00> : vector<2x16xf32>
    %3 = tpu.matmul %1, %2, %cst_4 {dimension_numbers = #tpu.dot_dimension_numbers<[1], [0], [0], [1], [0, 0, 1, 1], [], []>} : vector<2x256xf32>, vector<256x16xf32>, vector<2x16xf32> -> vector<2x16xf32>
    %4 = vector.extract_strided_slice %3 {offsets = [0, 0], sizes = [1, 16], strides = [1, 1]} : vector<2x16xf32> to vector<1x16xf32>
    %cst_5 = arith.constant 0.001953125 : f32
    %5 = vector.broadcast %cst_5 : f32 to vector<1x16xf32>
    %6 = arith.mulf %4, %5 : vector<1x16xf32>
    %7 = vector.extract_strided_slice %3 {offsets = [1, 0], sizes = [1, 16], strides = [1, 1]} : vector<2x16xf32> to vector<1x16xf32>
    %cst_6 = arith.constant 0.001953125 : f32
    %8 = vector.broadcast %cst_6 : f32 to vector<1x16xf32>
    %9 = arith.mulf %7, %8 : vector<1x16xf32>
    %10 = arith.mulf %6, %6 : vector<1x16xf32>
    %11 = arith.subf %9, %10 : vector<1x16xf32>
    %cst_7 = arith.constant 0.000000e+00 : f32
    %12 = vector.broadcast %cst_7 : f32 to vector<1x16xf32>
    %13 = arith.maximumf %11, %12 : vector<1x16xf32>
    %c0_8 = arith.constant 0 : index
    %c0_9 = arith.constant 0 : index
    %14 = vector.load %arg3[%c0_8, %c0_9] : memref<2x16xf32, #tpu.memory_space<vmem>>, vector<1x16xf32>
    %cst_10 = arith.constant 9.99999974E-6 : f32
    %15 = vector.broadcast %cst_10 : f32 to vector<1x16xf32>
    %16 = arith.addf %13, %15 : vector<1x16xf32>
    %17 = math.rsqrt %16 : vector<1x16xf32>
    %18 = arith.mulf %14, %17 : vector<1x16xf32>
    %c1 = arith.constant 1 : index
    %c0_11 = arith.constant 0 : index
    %19 = vector.load %arg3[%c1, %c0_11] : memref<2x16xf32, #tpu.memory_space<vmem>>, vector<1x16xf32>
    %20 = arith.mulf %6, %18 : vector<1x16xf32>
    %21 = arith.subf %19, %20 : vector<1x16xf32>
    %22 = tpu.concatenate %18, %21 in 0 : vector<1x16xf32>, vector<1x16xf32> -> vector<2x16xf32>
    %c0_12 = arith.constant 0 : index
    %c0_13 = arith.constant 0 : index
    %23 = vector.load %arg8[%c0_12, %c0_13] : memref<16x256xf32, #tpu.memory_space<vmem>>, vector<16x256xf32>
    %cst_14 = arith.constant dense<0.000000e+00> : vector<2x256xf32>
    %24 = tpu.matmul %22, %23, %cst_14 {dimension_numbers = #tpu.dot_dimension_numbers<[1], [0], [0], [1], [0, 0, 1, 1], [], []>} : vector<2x16xf32>, vector<16x256xf32>, vector<2x256xf32> -> vector<2x256xf32>
    %25 = vector.extract_strided_slice %24 {offsets = [0, 0], sizes = [1, 256], strides = [1, 1]} : vector<2x256xf32> to vector<1x256xf32>
    %26 = vector.extract_strided_slice %24 {offsets = [1, 0], sizes = [1, 256], strides = [1, 1]} : vector<2x256xf32> to vector<1x256xf32>
    %c0_15 = arith.constant 0 : index
    %c0_16 = arith.constant 0 : index
    %c0_17 = arith.constant 0 : index
    %27 = vector.load %arg1[%c0_15, %c0_16, %c0_17] : memref<1x16x256xf32, #tpu.memory_space<vmem>>, vector<1x16x256xf32>
    %28 = vector.shape_cast %27 : vector<1x16x256xf32> to vector<16x256xf32>
    %29 = vector.broadcast %25 : vector<1x256xf32> to vector<16x256xf32>
    %30 = arith.mulf %28, %29 : vector<16x256xf32>
    %31 = vector.broadcast %26 : vector<1x256xf32> to vector<16x256xf32>
    %32 = arith.addf %30, %31 : vector<16x256xf32>
    %cst_18 = arith.constant dense<0.000000e+00> : vector<256xf32>
    %33 = vector.multi_reduction <add>, %32, %cst_18 [0] : vector<16x256xf32> to vector<256xf32>
    %34 = vector.shape_cast %33 : vector<256xf32> to vector<1x256xf32>
    %cst_19 = arith.constant dense<0xFF800000> : vector<256xf32>
    %35 = vector.multi_reduction <maximumf>, %32, %cst_19 [0] : vector<16x256xf32> to vector<256xf32>
    %36 = vector.shape_cast %35 : vector<256xf32> to vector<1x256xf32>
    %c0_20 = arith.constant 0 : index
    %c0_21 = arith.constant 0 : index
    %37 = vector.load %arg7[%c0_20, %c0_21] : memref<256x16xf32, #tpu.memory_space<vmem>>, vector<256x16xf32>
    %cst_22 = arith.constant dense<0.000000e+00> : vector<1x16xf32>
    %38 = tpu.matmul %34, %37, %cst_22 {dimension_numbers = #tpu.dot_dimension_numbers<[1], [0], [0], [1], [0, 0, 1, 1], [], []>} : vector<1x256xf32>, vector<256x16xf32>, vector<1x16xf32> -> vector<1x16xf32>
    %cst_23 = arith.constant 3.906250e-03 : f32
    %39 = vector.broadcast %cst_23 : f32 to vector<1x16xf32>
    %40 = arith.mulf %38, %39 : vector<1x16xf32>
    %41 = vector.extract_strided_slice %36 {offsets = [0, 240], sizes = [1, 16], strides = [1, 1]} : vector<1x256xf32> to vector<1x16xf32>
    %42 = vector.extract_strided_slice %36 {offsets = [0, 0], sizes = [1, 240], strides = [1, 1]} : vector<1x256xf32> to vector<1x240xf32>
    %43 = tpu.concatenate %41, %42 in 1 : vector<1x16xf32>, vector<1x240xf32> -> vector<1x256xf32>
    %44 = arith.maximumf %36, %43 : vector<1x256xf32>
    %45 = vector.extract_strided_slice %44 {offsets = [0, 224], sizes = [1, 32], strides = [1, 1]} : vector<1x256xf32> to vector<1x32xf32>
    %46 = vector.extract_strided_slice %44 {offsets = [0, 0], sizes = [1, 224], strides = [1, 1]} : vector<1x256xf32> to vector<1x224xf32>
    %47 = tpu.concatenate %45, %46 in 1 : vector<1x32xf32>, vector<1x224xf32> -> vector<1x256xf32>
    %48 = arith.maximumf %44, %47 : vector<1x256xf32>
    %49 = vector.extract_strided_slice %48 {offsets = [0, 192], sizes = [1, 64], strides = [1, 1]} : vector<1x256xf32> to vector<1x64xf32>
    %50 = vector.extract_strided_slice %48 {offsets = [0, 0], sizes = [1, 192], strides = [1, 1]} : vector<1x256xf32> to vector<1x192xf32>
    %51 = tpu.concatenate %49, %50 in 1 : vector<1x64xf32>, vector<1x192xf32> -> vector<1x256xf32>
    %52 = arith.maximumf %48, %51 : vector<1x256xf32>
    %53 = vector.extract_strided_slice %52 {offsets = [0, 128], sizes = [1, 128], strides = [1, 1]} : vector<1x256xf32> to vector<1x128xf32>
    %54 = vector.extract_strided_slice %52 {offsets = [0, 0], sizes = [1, 128], strides = [1, 1]} : vector<1x256xf32> to vector<1x128xf32>
    %55 = tpu.concatenate %53, %54 in 1 : vector<1x128xf32>, vector<1x128xf32> -> vector<1x256xf32>
    %56 = arith.maximumf %52, %55 : vector<1x256xf32>
    %57 = vector.extract_strided_slice %56 {offsets = [0, 0], sizes = [1, 16], strides = [1, 1]} : vector<1x256xf32> to vector<1x16xf32>
    %58 = tpu.concatenate %40, %57 in 0 : vector<1x16xf32>, vector<1x16xf32> -> vector<2x16xf32>
    %c0_24 = arith.constant 0 : index
    %c0_25 = arith.constant 0 : index
    %59 = vector.load %arg4[%c0_24, %c0_25] : memref<16x2xf32, #tpu.memory_space<vmem>>, vector<16x2xf32>
    %cst_26 = arith.constant dense<0.000000e+00> : vector<2x2xf32>
    %60 = tpu.matmul %58, %59, %cst_26 {dimension_numbers = #tpu.dot_dimension_numbers<[1], [0], [0], [1], [0, 0, 1, 1], [], []>} : vector<2x16xf32>, vector<16x2xf32>, vector<2x2xf32> -> vector<2x2xf32>
    %cst_27 = arith.constant 0.000000e+00 : f32
    %61 = vector.broadcast %cst_27 : f32 to vector<2x2xf32>
    %62 = arith.maximumf %60, %61 : vector<2x2xf32>
    %c0_28 = arith.constant 0 : index
    %c0_29 = arith.constant 0 : index
    %63 = vector.load %arg5[%c0_28, %c0_29] : memref<2x16xf32, #tpu.memory_space<vmem>>, vector<2x16xf32>
    %cst_30 = arith.constant dense<0.000000e+00> : vector<2x16xf32>
    %64 = tpu.matmul %62, %63, %cst_30 {dimension_numbers = #tpu.dot_dimension_numbers<[1], [0], [0], [1], [0, 0, 1, 1], [], []>} : vector<2x2xf32>, vector<2x16xf32>, vector<2x16xf32> -> vector<2x16xf32>
    %65 = vector.extract_strided_slice %64 {offsets = [0, 0], sizes = [1, 16], strides = [1, 1]} : vector<2x16xf32> to vector<1x16xf32>
    %66 = vector.extract_strided_slice %64 {offsets = [1, 0], sizes = [1, 16], strides = [1, 1]} : vector<2x16xf32> to vector<1x16xf32>
    %67 = arith.addf %65, %66 : vector<1x16xf32>
    %68 = arith.negf %67 : vector<1x16xf32>
    %69 = math.exp %68 : vector<1x16xf32>
    %cst_31 = arith.constant 1.000000e+00 : f32
    %70 = vector.broadcast %cst_31 : f32 to vector<1x16xf32>
    %71 = arith.addf %70, %69 : vector<1x16xf32>
    %72 = arith.divf %70, %71 : vector<1x16xf32>
    %c0_32 = arith.constant 0 : index
    %c0_33 = arith.constant 0 : index
    %73 = vector.load %arg8[%c0_32, %c0_33] : memref<16x256xf32, #tpu.memory_space<vmem>>, vector<16x256xf32>
    %cst_34 = arith.constant dense<0.000000e+00> : vector<1x256xf32>
    %74 = tpu.matmul %72, %73, %cst_34 {dimension_numbers = #tpu.dot_dimension_numbers<[1], [0], [0], [1], [0, 0, 1, 1], [], []>} : vector<1x16xf32>, vector<16x256xf32>, vector<1x256xf32> -> vector<1x256xf32>
    %75 = vector.broadcast %74 : vector<1x256xf32> to vector<16x256xf32>
    %76 = arith.mulf %32, %75 : vector<16x256xf32>
    %77 = vector.extract_strided_slice %76 {offsets = [0, 255], sizes = [16, 1], strides = [1, 1]} : vector<16x256xf32> to vector<16x1xf32>
    %78 = vector.extract_strided_slice %76 {offsets = [0, 0], sizes = [16, 255], strides = [1, 1]} : vector<16x256xf32> to vector<16x255xf32>
    %79 = tpu.concatenate %77, %78 in 1 : vector<16x1xf32>, vector<16x255xf32> -> vector<16x256xf32>
    %80 = arith.maximumf %76, %79 : vector<16x256xf32>
    %81 = vector.extract_strided_slice %80 {offsets = [0, 254], sizes = [16, 2], strides = [1, 1]} : vector<16x256xf32> to vector<16x2xf32>
    %82 = vector.extract_strided_slice %80 {offsets = [0, 0], sizes = [16, 254], strides = [1, 1]} : vector<16x256xf32> to vector<16x254xf32>
    %83 = tpu.concatenate %81, %82 in 1 : vector<16x2xf32>, vector<16x254xf32> -> vector<16x256xf32>
    %84 = arith.maximumf %80, %83 : vector<16x256xf32>
    %85 = vector.extract_strided_slice %84 {offsets = [0, 252], sizes = [16, 4], strides = [1, 1]} : vector<16x256xf32> to vector<16x4xf32>
    %86 = vector.extract_strided_slice %84 {offsets = [0, 0], sizes = [16, 252], strides = [1, 1]} : vector<16x256xf32> to vector<16x252xf32>
    %87 = tpu.concatenate %85, %86 in 1 : vector<16x4xf32>, vector<16x252xf32> -> vector<16x256xf32>
    %88 = arith.maximumf %84, %87 : vector<16x256xf32>
    %89 = vector.extract_strided_slice %88 {offsets = [0, 248], sizes = [16, 8], strides = [1, 1]} : vector<16x256xf32> to vector<16x8xf32>
    %90 = vector.extract_strided_slice %88 {offsets = [0, 0], sizes = [16, 248], strides = [1, 1]} : vector<16x256xf32> to vector<16x248xf32>
    %91 = tpu.concatenate %89, %90 in 1 : vector<16x8xf32>, vector<16x248xf32> -> vector<16x256xf32>
    %92 = arith.maximumf %88, %91 : vector<16x256xf32>
    %93 = tpu.concatenate %76, %92 in 1 : vector<16x256xf32>, vector<16x256xf32> -> vector<16x512xf32>
    %c0_35 = arith.constant 0 : index
    %c0_36 = arith.constant 0 : index
    %94 = vector.load %arg9[%c0_35, %c0_36] : memref<512x256xf32, #tpu.memory_space<vmem>>, vector<512x256xf32>
    %cst_37 = arith.constant dense<0.000000e+00> : vector<16x256xf32>
    %95 = tpu.matmul %93, %94, %cst_37 {dimension_numbers = #tpu.dot_dimension_numbers<[1], [0], [0], [1], [0, 0, 1, 1], [], []>} : vector<16x512xf32>, vector<512x256xf32>, vector<16x256xf32> -> vector<16x256xf32>
    %cst_38 = arith.constant 0.000000e+00 : f32
    %96 = vector.broadcast %cst_38 : f32 to vector<3x256xf32>
    %97 = tpu.concatenate %96, %95, %96 in 0 : vector<3x256xf32>, vector<16x256xf32>, vector<3x256xf32> -> vector<22x256xf32>
    %cst_39 = arith.constant 0.000000e+00 : f32
    %98 = vector.broadcast %cst_39 : f32 to vector<16x256xf32>
    %99 = vector.extract_strided_slice %97 {offsets = [0, 0], sizes = [16, 256], strides = [1, 1]} : vector<22x256xf32> to vector<16x256xf32>
    %c0_40 = arith.constant 0 : index
    %c0_41 = arith.constant 0 : index
    %c0_42 = arith.constant 0 : index
    %100 = vector.load %arg6[%c0_40, %c0_41, %c0_42] : memref<7x256x256xf32, #tpu.memory_space<vmem>>, vector<1x256x256xf32>
    %101 = vector.shape_cast %100 : vector<1x256x256xf32> to vector<256x256xf32>
    %cst_43 = arith.constant dense<0.000000e+00> : vector<16x256xf32>
    %102 = tpu.matmul %99, %101, %cst_43 {dimension_numbers = #tpu.dot_dimension_numbers<[1], [0], [0], [1], [0, 0, 1, 1], [], []>} : vector<16x256xf32>, vector<256x256xf32>, vector<16x256xf32> -> vector<16x256xf32>
    %103 = arith.addf %98, %102 : vector<16x256xf32>
    %104 = vector.extract_strided_slice %97 {offsets = [1, 0], sizes = [16, 256], strides = [1, 1]} : vector<22x256xf32> to vector<16x256xf32>
    %c1_44 = arith.constant 1 : index
    %c0_45 = arith.constant 0 : index
    %c0_46 = arith.constant 0 : index
    %105 = vector.load %arg6[%c1_44, %c0_45, %c0_46] : memref<7x256x256xf32, #tpu.memory_space<vmem>>, vector<1x256x256xf32>
    %106 = vector.shape_cast %105 : vector<1x256x256xf32> to vector<256x256xf32>
    %cst_47 = arith.constant dense<0.000000e+00> : vector<16x256xf32>
    %107 = tpu.matmul %104, %106, %cst_47 {dimension_numbers = #tpu.dot_dimension_numbers<[1], [0], [0], [1], [0, 0, 1, 1], [], []>} : vector<16x256xf32>, vector<256x256xf32>, vector<16x256xf32> -> vector<16x256xf32>
    %108 = arith.addf %103, %107 : vector<16x256xf32>
    %109 = vector.extract_strided_slice %97 {offsets = [2, 0], sizes = [16, 256], strides = [1, 1]} : vector<22x256xf32> to vector<16x256xf32>
    %c2 = arith.constant 2 : index
    %c0_48 = arith.constant 0 : index
    %c0_49 = arith.constant 0 : index
    %110 = vector.load %arg6[%c2, %c0_48, %c0_49] : memref<7x256x256xf32, #tpu.memory_space<vmem>>, vector<1x256x256xf32>
    %111 = vector.shape_cast %110 : vector<1x256x256xf32> to vector<256x256xf32>
    %cst_50 = arith.constant dense<0.000000e+00> : vector<16x256xf32>
    %112 = tpu.matmul %109, %111, %cst_50 {dimension_numbers = #tpu.dot_dimension_numbers<[1], [0], [0], [1], [0, 0, 1, 1], [], []>} : vector<16x256xf32>, vector<256x256xf32>, vector<16x256xf32> -> vector<16x256xf32>
    %113 = arith.addf %108, %112 : vector<16x256xf32>
    %114 = vector.extract_strided_slice %97 {offsets = [3, 0], sizes = [16, 256], strides = [1, 1]} : vector<22x256xf32> to vector<16x256xf32>
    %c3 = arith.constant 3 : index
    %c0_51 = arith.constant 0 : index
    %c0_52 = arith.constant 0 : index
    %115 = vector.load %arg6[%c3, %c0_51, %c0_52] : memref<7x256x256xf32, #tpu.memory_space<vmem>>, vector<1x256x256xf32>
    %116 = vector.shape_cast %115 : vector<1x256x256xf32> to vector<256x256xf32>
    %cst_53 = arith.constant dense<0.000000e+00> : vector<16x256xf32>
    %117 = tpu.matmul %114, %116, %cst_53 {dimension_numbers = #tpu.dot_dimension_numbers<[1], [0], [0], [1], [0, 0, 1, 1], [], []>} : vector<16x256xf32>, vector<256x256xf32>, vector<16x256xf32> -> vector<16x256xf32>
    %118 = arith.addf %113, %117 : vector<16x256xf32>
    %119 = vector.extract_strided_slice %97 {offsets = [4, 0], sizes = [16, 256], strides = [1, 1]} : vector<22x256xf32> to vector<16x256xf32>
    %c4 = arith.constant 4 : index
    %c0_54 = arith.constant 0 : index
    %c0_55 = arith.constant 0 : index
    %120 = vector.load %arg6[%c4, %c0_54, %c0_55] : memref<7x256x256xf32, #tpu.memory_space<vmem>>, vector<1x256x256xf32>
    %121 = vector.shape_cast %120 : vector<1x256x256xf32> to vector<256x256xf32>
    %cst_56 = arith.constant dense<0.000000e+00> : vector<16x256xf32>
    %122 = tpu.matmul %119, %121, %cst_56 {dimension_numbers = #tpu.dot_dimension_numbers<[1], [0], [0], [1], [0, 0, 1, 1], [], []>} : vector<16x256xf32>, vector<256x256xf32>, vector<16x256xf32> -> vector<16x256xf32>
    %123 = arith.addf %118, %122 : vector<16x256xf32>
    %124 = vector.extract_strided_slice %97 {offsets = [5, 0], sizes = [16, 256], strides = [1, 1]} : vector<22x256xf32> to vector<16x256xf32>
    %c5 = arith.constant 5 : index
    %c0_57 = arith.constant 0 : index
    %c0_58 = arith.constant 0 : index
    %125 = vector.load %arg6[%c5, %c0_57, %c0_58] : memref<7x256x256xf32, #tpu.memory_space<vmem>>, vector<1x256x256xf32>
    %126 = vector.shape_cast %125 : vector<1x256x256xf32> to vector<256x256xf32>
    %cst_59 = arith.constant dense<0.000000e+00> : vector<16x256xf32>
    %127 = tpu.matmul %124, %126, %cst_59 {dimension_numbers = #tpu.dot_dimension_numbers<[1], [0], [0], [1], [0, 0, 1, 1], [], []>} : vector<16x256xf32>, vector<256x256xf32>, vector<16x256xf32> -> vector<16x256xf32>
    %128 = arith.addf %123, %127 : vector<16x256xf32>
    %129 = vector.extract_strided_slice %97 {offsets = [6, 0], sizes = [16, 256], strides = [1, 1]} : vector<22x256xf32> to vector<16x256xf32>
    %c6 = arith.constant 6 : index
    %c0_60 = arith.constant 0 : index
    %c0_61 = arith.constant 0 : index
    %130 = vector.load %arg6[%c6, %c0_60, %c0_61] : memref<7x256x256xf32, #tpu.memory_space<vmem>>, vector<1x256x256xf32>
    %131 = vector.shape_cast %130 : vector<1x256x256xf32> to vector<256x256xf32>
    %cst_62 = arith.constant dense<0.000000e+00> : vector<16x256xf32>
    %132 = tpu.matmul %129, %131, %cst_62 {dimension_numbers = #tpu.dot_dimension_numbers<[1], [0], [0], [1], [0, 0, 1, 1], [], []>} : vector<16x256xf32>, vector<256x256xf32>, vector<16x256xf32> -> vector<16x256xf32>
    %133 = arith.addf %128, %132 : vector<16x256xf32>
    %134 = arith.negf %133 : vector<16x256xf32>
    %135 = math.exp %134 : vector<16x256xf32>
    %cst_63 = arith.constant 1.000000e+00 : f32
    %136 = vector.broadcast %cst_63 : f32 to vector<16x256xf32>
    %137 = arith.addf %136, %135 : vector<16x256xf32>
    %138 = arith.divf %136, %137 : vector<16x256xf32>
    %139 = arith.mulf %138, %76 : vector<16x256xf32>
    %140 = arith.addf %32, %139 : vector<16x256xf32>
    %cst_64 = arith.constant 0.000000e+00 : f32
    %141 = vector.broadcast %cst_64 : f32 to vector<16x256xf32>
    %142 = arith.maximumf %140, %141 : vector<16x256xf32>
    %c0_65 = arith.constant 0 : index
    %c0_66 = arith.constant 0 : index
    %c0_67 = arith.constant 0 : index
    %143 = vector.load %arg10[%c0_65, %c0_66, %c0_67] : memref<1x16x256xf32, #tpu.memory_space<vmem>>, vector<1x16x256xf32>
    %144 = vector.shape_cast %143 : vector<1x16x256xf32> to vector<16x256xf32>
    %145 = vector.shape_cast %142 : vector<16x256xf32> to vector<1x16x256xf32>
    tpu.vector_store %arg10[%c0_65, %c0_66, %c0_67], %145 {strides = array<i32>} : memref<1x16x256xf32, #tpu.memory_space<vmem>>, vector<1x16x256xf32>,
    return
  }
  func.func @transform_0(%arg0: i32) -> (i32, i32, i32) {
    %c0_i32 = arith.constant 0 : i32
    %c0_i32_0 = arith.constant 0 : i32
    %c0_i32_1 = arith.constant 0 : i32
    return %arg0, %c0_i32, %c0_i32_0 : i32, i32, i32
  }
  func.func @transform_1(%arg0: i32) -> (i32, i32, i32) {
    %c0_i32 = arith.constant 0 : i32
    %c0_i32_0 = arith.constant 0 : i32
    %c0_i32_1 = arith.constant 0 : i32
    %c0_i32_2 = arith.constant 0 : i32
    return %c0_i32, %c0_i32_0, %c0_i32_1 : i32, i32, i32
  }
  func.func @transform_2(%arg0: i32) -> (i32, i32) {
    %c0_i32 = arith.constant 0 : i32
    %c0_i32_0 = arith.constant 0 : i32
    %c0_i32_1 = arith.constant 0 : i32
    return %c0_i32, %c0_i32_0 : i32, i32
  }
  func.func @transform_3(%arg0: i32) -> (i32, i32) {
    %c0_i32 = arith.constant 0 : i32
    %c0_i32_0 = arith.constant 0 : i32
    %c0_i32_1 = arith.constant 0 : i32
    return %c0_i32, %c0_i32_0 : i32, i32
  }
  func.func @transform_4(%arg0: i32) -> (i32, i32) {
    %c0_i32 = arith.constant 0 : i32
    %c0_i32_0 = arith.constant 0 : i32
    %c0_i32_1 = arith.constant 0 : i32
    return %c0_i32, %c0_i32_0 : i32, i32
  }
  func.func @transform_5(%arg0: i32) -> (i32, i32, i32) {
    %c0_i32 = arith.constant 0 : i32
    %c0_i32_0 = arith.constant 0 : i32
    %c0_i32_1 = arith.constant 0 : i32
    %c0_i32_2 = arith.constant 0 : i32
    return %c0_i32, %c0_i32_0, %c0_i32_1 : i32, i32, i32
  }
  func.func @transform_6(%arg0: i32) -> (i32, i32) {
    %c0_i32 = arith.constant 0 : i32
    %c0_i32_0 = arith.constant 0 : i32
    %c0_i32_1 = arith.constant 0 : i32
    return %c0_i32, %c0_i32_0 : i32, i32
  }
  func.func @transform_7(%arg0: i32) -> (i32, i32) {
    %c0_i32 = arith.constant 0 : i32
    %c0_i32_0 = arith.constant 0 : i32
    %c0_i32_1 = arith.constant 0 : i32
    return %c0_i32, %c0_i32_0 : i32, i32
  }
  func.func @transform_8(%arg0: i32) -> (i32, i32) {
    %c0_i32 = arith.constant 0 : i32
    %c0_i32_0 = arith.constant 0 : i32
    %c0_i32_1 = arith.constant 0 : i32
    return %c0_i32, %c0_i32_0 : i32, i32
  }
  func.func @transform_9(%arg0: i32) -> (i32, i32, i32) {
    %c0_i32 = arith.constant 0 : i32
    %c0_i32_0 = arith.constant 0 : i32
    %c0_i32_1 = arith.constant 0 : i32
    return %arg0, %c0_i32, %c0_i32_0 : i32, i32, i32
  }
}

</mosaic_0001>

<llo_original>
// kernel: layer_forward.2
$region0: #{layer_forward.2}
  #allocation0 [shape = 'u32[]', space=smem, size = 0x4, offset = 0x4, fixed_abs, tag = 'smem constant byte address 0x4 - core index']
  #allocation1 [shape = 'u32[144,128]{1,0:T(1,128)}', space=vmem, size = 0x12000, scoped, tag = 'internal scratch']
  %s0 = inlined_call_operand.vmem [shape: bf16[2,18,72], index: 0, kind: input, shape index: {}]
  %s1 = inlined_call_operand.hbm [shape: bf16[3,72,256], index: 1, kind: input, shape index: {}]
  %s2 = inlined_call_operand.hbm [shape: f32[1,256], index: 2, kind: input, shape index: {}]
  %s3 = inlined_call_operand.vmem [shape: f32[2,16,256], index: 3, kind: output, shape index: {0}]
  %s4 = inlined_call_operand.vmem [shape: f32[2,2,256], index: 4, kind: output, shape index: {1}]
  %5 = xla_tuple %s3, %s4
  %s6 = sld [smem:[#allocation0]]
  $region61: #{layer_forward.2} parent=0
    _
  %s8 = ssub.s32 1, %s6
  %s9 = scalar_select 0, %s8, %s6
  $region1: #{layer_forward.2} parent=0
    #allocation2 [shape = 'u8[110592]{0}', space=vmem, size = 0x1b000, scoped, tag = 'input window, operand 1, single buffered']
    #allocation3 [shape = 's32[2]{0}', space=sflag, size = 0x8, scoped, tag = 'scoped memory for layer_forward.2']
    #allocation4 [shape = 'u8[1024]{0}', space=vmem, size = 0x400, scoped, tag = 'input window, operand 2, single buffered']
    #allocation5 [shape = 's32[1]{0}', space=sflag, size = 0x4, scoped, tag = 'scoped memory for layer_forward.2']
    %10 = vsyncpa [#allocation3], 0
    %11 = vsyncpa [#allocation5], 0
    loop: start=0, step=1, limit=4
    $region2: #{layer_forward.2} parent=1 // loop_pre_header
      _
    $region3: #{layer_forward.2} parent=1 // loop_header
      %s13 = sphi 0, %s17
      %p14 = scmp.ge.s32.totalorder %s13, 4
      %s23 = sphi 0, %s25
      %s26 = sphi 0, %s23
      %s27 = sphi 0, %s26
      %s43 = sphi 0, %s27
      %s47 = sphi 0, %s47
      %s49 = sphi 0, %s47
      %s50 = sphi 0, %s49
      %s64 = sphi 0, %s50
      %s68 = sphi 0, %s68
      %s70 = sphi 0, %s68
      %s71 = sphi 0, %s70
      %s85 = sphi 0, %s71
      %s91 = sphi 0, %s93
      %s94 = sphi 0, %s91
      %s95 = sphi 0, %s94
      %s111 = sphi 0, %s95
      %s117 = sphi 0, %s119
      %s120 = sphi 0, %s117
      %s121 = sphi 0, %s120
      %s137 = sphi 0, %s121
    $region4: #{layer_forward.2} parent=1 // loop_header_branch
      %16 = sbr.rel (%p14) target = $region8
    $region5: #{layer_forward.2} parent=1 // loop_body
      %s18 = ssub.s32 %s13, 1
      %s19 = ssub.s32 %s13, 2
      %s20 = sadd.s32 %s13, 1
      %s21 = ssub.s32 %s13, %s20
      %p22 = scmp.eq.s32.totalorder %s21, 0
      %s24 = sadd.s32 %s23, 1
      %s25 = scalar_select %p22, %s23, %s24
      %p28 = pneg %p22
      %p29 = scmp.eq.s32.totalorder %s13, 1
      %p30 = por %p28, %p29
      %p31 = scmp.ne.s32.totalorder %s23, %s26
      %p32 = scmp.eq.s32.totalorder %s13, 0
      %p33 = por %p31, %p32
      %p34 = scmp.ne.s32.totalorder %s23, %s26
      %p35 = scmp.eq.s32.totalorder %s18, 1
      %p36 = por %p34, %p35
      %p37 = scmp.ne.s32.totalorder %s26, %s27
      %p38 = scmp.eq.s32.totalorder %s18, 0
      %p39 = por %p37, %p38
      %p40 = scmp.ne.s32.totalorder %s26, %s27
      %p41 = scmp.eq.s32.totalorder %s19, 1
      %p42 = por %p40, %p41
      %p44 = scmp.ne.s32.totalorder %s27, %s43
      %p45 = scmp.eq.s32.totalorder %s19, 0
      %p46 = por %p44, %p45
      %s48 = sadd.s32 %s47, 1
      %p51 = scmp.eq.s32.totalorder %s13, 1
      %p52 = scmp.ne.s32.totalorder %s47, %s49
      %p53 = scmp.eq.s32.totalorder %s13, 0
      %p54 = por %p52, %p53
      %p55 = scmp.ne.s32.totalorder %s47, %s49
      %p56 = scmp.eq.s32.totalorder %s18, 1
      %p57 = por %p55, %p56
      %p58 = scmp.ne.s32.totalorder %s49, %s50
      %p59 = scmp.eq.s32.totalorder %s18, 0
      %p60 = por %p58, %p59
      %p61 = scmp.ne.s32.totalorder %s49, %s50
      %p62 = scmp.eq.s32.totalorder %s19, 1
      %p63 = por %p61, %p62
      %p65 = scmp.ne.s32.totalorder %s50, %s64
      %p66 = scmp.eq.s32.totalorder %s19, 0
      %p67 = por %p65, %p66
      %s69 = sadd.s32 %s68, 1
      %p72 = scmp.eq.s32.totalorder %s13, 1
      %p73 = scmp.ne.s32.totalorder %s68, %s70
      %p74 = scmp.eq.s32.totalorder %s13, 0
      %p75 = por %p73, %p74
      %p76 = scmp.ne.s32.totalorder %s68, %s70
      %p77 = scmp.eq.s32.totalorder %s18, 1
      %p78 = por %p76, %p77
      %p79 = scmp.ne.s32.totalorder %s70, %s71
      %p80 = scmp.eq.s32.totalorder %s18, 0
      %p81 = por %p79, %p80
      %p82 = scmp.ne.s32.totalorder %s70, %s71
      %p83 = scmp.eq.s32.totalorder %s19, 1
      %p84 = por %p82, %p83
      %p86 = scmp.ne.s32.totalorder %s71, %s85
      %p87 = scmp.eq.s32.totalorder %s19, 0
      %p88 = por %p86, %p87
      %s89 = ssub.s32 %s13, %s20
      %p90 = scmp.eq.s32.totalorder %s89, 0
      %s92 = sadd.s32 %s91, 1
      %s93 = scalar_select %p90, %s91, %s92
      %p96 = pneg %p90
      %p97 = scmp.eq.s32.totalorder %s13, 1
      %p98 = por %p96, %p97
      %p99 = scmp.ne.s32.totalorder %s91, %s94
      %p100 = scmp.eq.s32.totalorder %s13, 0
      %p101 = por %p99, %p100
      %p102 = scmp.ne.s32.totalorder %s91, %s94
      %p103 = scmp.eq.s32.totalorder %s18, 1
      %p104 = por %p102, %p103
      %p105 = scmp.ne.s32.totalorder %s94, %s95
      %p106 = scmp.eq.s32.totalorder %s18, 0
      %p107 = por %p105, %p106
      %p108 = scmp.ne.s32.totalorder %s94, %s95
      %p109 = scmp.eq.s32.totalorder %s19, 1
      %p110 = por %p108, %p109
      %p112 = scmp.ne.s32.totalorder %s95, %s111
      %p113 = scmp.eq.s32.totalorder %s19, 0
      %p114 = por %p112, %p113
      %s115 = ssub.s32 %s13, %s20
      %p116 = scmp.eq.s32.totalorder %s115, 0
      %s118 = sadd.s32 %s117, 1
      %s119 = scalar_select %p116, %s117, %s118
      %p122 = pneg %p116
      %p123 = scmp.eq.s32.totalorder %s13, 1
      %p124 = por %p122, %p123
      %p125 = scmp.ne.s32.totalorder %s117, %s120
      %p126 = scmp.eq.s32.totalorder %s13, 0
      %p127 = por %p125, %p126
      %p128 = scmp.ne.s32.totalorder %s117, %s120
      %p129 = scmp.eq.s32.totalorder %s18, 1
      %p130 = por %p128, %p129
      %p131 = scmp.ne.s32.totalorder %s120, %s121
      %p132 = scmp.eq.s32.totalorder %s18, 0
      %p133 = por %p131, %p132
      %p134 = scmp.ne.s32.totalorder %s120, %s121
      %p135 = scmp.eq.s32.totalorder %s19, 1
      %p136 = por %p134, %p135
      %p138 = scmp.ne.s32.totalorder %s121, %s137
      %p139 = scmp.eq.s32.totalorder %s19, 0
      %p140 = por %p138, %p139
      %p141 = scmp.le.s32.totalorder 1, %s13
      %p142 = scmp.lt.s32.totalorder %s13, 3
      %p143 = pnand %p141, %p142
      %p144 = pneg %p143
      // Predicated region
      $region9: #{layer_forward.2} parent=5 // pred_check
        _
      $region10: #{layer_forward.2} parent=5 // pred_check_branch
        %146 = sbr.rel (%p143) target = $region12
      $region11: #{layer_forward.2} parent=5 // pred_region
        %s147 = ssub.s32 %s13, 1
        // Predicated region
        $region13: #{layer_forward.2} parent=11 // pred_check
          %p148 = pneg %p60
        $region14: #{layer_forward.2} parent=11 // pred_check_branch
          %150 = sbr.rel (%p148) target = $region16
        $region15: #{layer_forward.2} parent=11 // pred_region
          %s152 = ssub.s32 3456, 3456
          %153 = vsyncadd [#allocation3], %s152
          %s154 = sshll.u32 [#allocation2], 4
          %s155 = int_to_ptr.vmem [resolvable:$true] %s154
          %160 = dma.hbm_to_vmem [thread:$0]  %s1, 3456, %s155, [#allocation3], 128, 128, 8
        $region16: #{layer_forward.2} parent=11 // pred_fallthru
          _
        // Predicated region
        $region17: #{layer_forward.2} parent=11 // pred_check
          %p161 = pneg %p81
        $region18: #{layer_forward.2} parent=11 // pred_check_branch
          %163 = sbr.rel (%p161) target = $region20
        $region19: #{layer_forward.2} parent=11 // pred_region
          %s165 = ssub.s32 32, 32
          %166 = vsyncadd [#allocation5], %s165
          %s168 = sshll.u32 [#allocation4], 4
          %s169 = int_to_ptr.vmem [resolvable:$true] %s168
          %171 = dma.hbm_to_vmem [thread:$0]  %s2, 32, %s169, [#allocation5]
        $region20: #{layer_forward.2} parent=11 // pred_fallthru
          _
      $region12: #{layer_forward.2} parent=5 // pred_fallthru
        _
      %p172 = scmp.lt.s32.totalorder %s13, 2
      // Predicated region
      $region21: #{layer_forward.2} parent=5 // pred_check
        %p173 = pneg %p172
      $region22: #{layer_forward.2} parent=5 // pred_check_branch
        %175 = sbr.rel (%p173) target = $region24
      $region23: #{layer_forward.2} parent=5 // pred_region
        // Predicated region
        $region25: #{layer_forward.2} parent=23 // pred_check
          %p176 = pneg %p33
        $region26: #{layer_forward.2} parent=23 // pred_check_branch
          %178 = sbr.rel (%p176) target = $region28
        $region27: #{layer_forward.2} parent=23 // pred_region
          %p179 = scmp.lt.s32.totalorder %s13, 1
          %s180 = scalar_select %p179, %s13, 1
          %s181 = smul.addr %s180, 3
          %s182 = smul.addr %s181, 4
          %s183 = scalar_lea.vmem %s0, %s182
        $region28: #{layer_forward.2} parent=23 // pred_fallthru
          _
      $region24: #{layer_forward.2} parent=5 // pred_fallthru
        _
      %p184 = scmp.le.s32.totalorder 1, %s13
      %p185 = scmp.lt.s32.totalorder %s13, 3
      %p186 = pnand %p184, %p185
      %p187 = pneg %p186
      // Predicated region
      $region29: #{layer_forward.2} parent=5 // pred_check
        _
      $region30: #{layer_forward.2} parent=5 // pred_check_branch
        %189 = sbr.rel (%p186) target = $region32
      $region31: #{layer_forward.2} parent=5 // pred_region
        %s190 = ssub.s32 %s13, 1
        // Predicated region
        $region33: #{layer_forward.2} parent=31 // pred_check
          %p191 = pneg %p60
        $region34: #{layer_forward.2} parent=31 // pred_check_branch
          %193 = sbr.rel (%p191) target = $region36
        $region35: #{layer_forward.2} parent=31 // pred_region
          %194 = dma.done [#allocation3], 3456
        $region36: #{layer_forward.2} parent=31 // pred_fallthru
          _
        // Predicated region
        $region37: #{layer_forward.2} parent=31 // pred_check
          %p195 = pneg %p81
        $region38: #{layer_forward.2} parent=31 // pred_check_branch
          %197 = sbr.rel (%p195) target = $region40
        $region39: #{layer_forward.2} parent=31 // pred_region
          %198 = dma.done [#allocation5], 32
        $region40: #{layer_forward.2} parent=31 // pred_fallthru
          _
        %p199 = scmp.lt.s32.totalorder %s18, 1
        %s200 = scalar_select %p199, %s18, 1
        %s201 = smul.addr %s200, 3
        %s202 = smul.addr %s201, 4
        %s203 = scalar_lea.vmem %s0, %s202
        %p204 = pneg %p39
        %p205 = pneg %p36
        %p206 = pneg %p60
        %p207 = pneg %p57
        %p208 = pneg %p81
        %p209 = pneg %p78
        %p210 = pneg %p107
        %p211 = pneg %p104
        %p212 = scmp.lt.s32.totalorder %s18, 1
        %s213 = scalar_select %p212, %s18, 1
        %s214 = smul.addr %s213, 4
        %s215 = smul.addr %s214, 8
        %s216 = scalar_lea.vmem %s3, %s215
        %p217 = pneg %p133
        %p218 = pneg %p130
        %p219 = scmp.lt.s32.totalorder %s18, 1
        %s220 = scalar_select %p219, %s18, 1
        %s221 = smul.addr %s220, 2
        %s222 = smul.addr %s221, 2
        %s223 = scalar_lea.vmem %s4, %s222
        %p224 = scmp.lt.s32.totalorder %s18, 1
        %s225 = scalar_select %p224, %s18, 1
        %s226 = smul.addr %s225, 3
        %s227 = smul.addr %s226, 4
        %s228 = scalar_lea.vmem %s0, %s227
        %p229 = scmp.lt.s32.totalorder %s18, 1
        %s230 = scalar_select %p229, %s18, 1
        %s231 = smul.addr %s230, 4
        %s232 = smul.addr %s231, 8
        %s233 = scalar_lea.vmem %s3, %s232
        %p234 = scmp.lt.s32.totalorder %s18, 1
        %s235 = scalar_select %p234, %s18, 1
        %s236 = smul.addr %s235, 2
        %s237 = smul.addr %s236, 2
        %s238 = scalar_lea.vmem %s4, %s237
        %v240 = vld [vmem:[%s228] sm:$0xf]
        %v241 = vld [vmem:[%s228 + $0x4] sm:$0xf]
        %v242 = vld [vmem:[#allocation2] sm:$0xff]
        %v243 = vld [vmem:[#allocation2 + $0x8] sm:$0xff]
        %v244 = vld [vmem:[#allocation2 + $0x10] sm:$0xff]
        %v245 = vld [vmem:[#allocation2 + $0x18] sm:$0xff]
        %v246 = vld [vmem:[#allocation2 + $0x20] sm:$0xff]
        %v247 = vld [vmem:[#allocation2 + $0x28] sm:$0xff]
        %v248 = vld [vmem:[#allocation2 + $0x30] sm:$0xff]
        %v249 = vld [vmem:[#allocation2 + $0x38] sm:$0xff]
        %v250 = vld [vmem:[#allocation2 + $0x40] sm:$0xff]
        %v251 = vld [vmem:[%s228 + $0x8] sm:$0x1]
        %s252 = scalar_lea.vmem [#allocation2], 72
        %v253 = vld [vmem:[%s252] sm:$0xff]
        %v254 = vld [vmem:[%s252 + $0x8] sm:$0xff]
        %v255 = vld [vmem:[%s252 + $0x10] sm:$0xff]
        %v256 = vld [vmem:[%s252 + $0x18] sm:$0xff]
        %v257 = vld [vmem:[%s252 + $0x20] sm:$0xff]
        %v258 = vld [vmem:[%s252 + $0x28] sm:$0xff]
        %v259 = vld [vmem:[%s252 + $0x30] sm:$0xff]
        %v260 = vld [vmem:[%s252 + $0x38] sm:$0xff]
        %v261 = vld [vmem:[%s252 + $0x40] sm:$0xff]
        %v265 = vunpack.c.l.b16 %v240
        %v266 = vunpack.c.l.b16 %v241
        %v267 = vunpack.c.l.b16 %v251
        %v268 = vpack.c.b16 %v266, %v265
        %v269 = vpack.c.b16 %v267, %v267
        %vm270 = vsmask.f32 7424
        %v272 = vshrl.u32 %v268, 16
        %v274 = vshll.u32 %v268, 16
        %v276 = vrot.slane %v274, 1
        %v277 = vor.u32 %v272, %v276
        %v279 = vshll.u32 %v269, 16
        %v281 = vrot.slane %v279, 1
        %v282 = vsel %vm270, %v277, %v281
        %v292 = vunpack.c.l.b16 %v253
        %v293 = vunpack.c.h.b16 %v253
        %v294 = vunpack.c.l.b16 %v254
        %v295 = vunpack.c.h.b16 %v254
        %v296 = vunpack.c.l.b16 %v255
        %v297 = vunpack.c.h.b16 %v255
        %v298 = vunpack.c.l.b16 %v256
        %v299 = vunpack.c.h.b16 %v256
        %v300 = vunpack.c.l.b16 %v257
        %v301 = vunpack.c.h.b16 %v257
        %v302 = vunpack.c.l.b16 %v258
        %v303 = vunpack.c.h.b16 %v258
        %v304 = vunpack.c.l.b16 %v259
        %v305 = vunpack.c.h.b16 %v259
        %v306 = vunpack.c.l.b16 %v260
        %v307 = vunpack.c.h.b16 %v260
        %v308 = vunpack.c.l.b16 %v261
        %v309 = vunpack.c.h.b16 %v261
        %v310 = vpack.c.b16 %v294, %v292
        %v311 = vpack.c.b16 %v295, %v293
        %v312 = vpack.c.b16 %v298, %v296
        %v313 = vpack.c.b16 %v299, %v297
        %v314 = vpack.c.b16 %v302, %v300
        %v315 = vpack.c.b16 %v303, %v301
        %v316 = vpack.c.b16 %v306, %v304
        %v317 = vpack.c.b16 %v307, %v305
        %v318 = vpack.c.b16 %v308, %v308
        %v319 = vpack.c.b16 %v309, %v309
        %vm328 = vcmask 588800
        %v330 = vsel %vm328, %v282, 0
        %vm332 = vcmask 1043456
        %v334 = vsel %vm332, %v318, 0
        %v337 = vsel %vm332, %v319, 0
        %339 = vmatprep.subr.bf16.mxu0 %v311
        %340 = vmatpush1.bf16.msra.mxu0 %v310
        %341 = vmatprep.subr.bf16.mxu0 %v313
        %342 = vmatpush1.bf16.msra.mxu0 %v312
        %343 = vmatprep.subr.bf16.mxu0 %v315
        %344 = vmatpush1.bf16.msra.mxu0 %v314
        %345 = vmatprep.subr.bf16.mxu0 %v317
        %346 = vmatpush1.bf16.msra.mxu0 %v316
        %347 = vmatprep.subr.bf16.mxu0 %v337
        %348 = vmatpush1.bf16.msra.mxu0 %v334
        %349 = vmatprep.subr.bf16.mxu0 0
        %350 = vmatpush1.bf16.msra.mxu0 0
        %351 = vmatprep.subr.bf16.mxu0 0
        %352 = vmatpush1.bf16.msra.mxu0 0
        %353 = vmatprep.subr.bf16.mxu0 0
        %354 = vmatpush1.bf16.msra.mxu0 0
        %355 = vmatprep.subr.bf16.mxu0 0
        %356 = vmatpush1.bf16.msra.mxu0 0
        %357 = vmatprep.subr.bf16.mxu0 0
        %358 = vmatpush1.bf16.msra.mxu0 0
        %359 = vmatprep.subr.bf16.mxu0 0
        %360 = vmatpush1.bf16.msra.mxu0 0
        %361 = vmatprep.subr.bf16.mxu0 0
        %362 = vmatpush1.bf16.msra.mxu0 0
        %363 = vmatprep.subr.bf16.mxu0 0
        %364 = vmatpush1.bf16.msra.mxu0 0
        %365 = vmatprep.subr.bf16.mxu0 0
        %366 = vmatpush1.bf16.msra.mxu0 0
        %367 = vmatprep.subr.bf16.mxu0 0
        %368 = vmatpush1.bf16.msra.mxu0 0
        %369 = vmatprep.subr.bf16.mxu0 0
        %370 = vmatpush1.bf16.msra.mxu0 0
        %371 = vmatprep.mubr.bf16.mxu0 0
        %372 = vmatmul.mubr.bf16.gmra.mrb[0].mxu0 %v330
        %v373 = vpop.f32.mrb[0].mxu0
        %v374 = vadd.f32 0.0, %v373
        %v375 = vpop.f32.mrb[0].mxu0
        %v376 = vadd.f32 0.0, %v375
        %v377 = vpop.f32.mrb[0].mxu0
        %v378 = vadd.f32 0.0, %v377
        %v379 = vpop.f32.mrb[0].mxu0
        %v380 = vadd.f32 0.0, %v379
        %381 = vdwg.mxu0
        %v391 = vunpack.c.l.b16 %v242
        %v392 = vunpack.c.h.b16 %v242
        %v393 = vunpack.c.l.b16 %v243
        %v394 = vunpack.c.h.b16 %v243
        %v395 = vunpack.c.l.b16 %v244
        %v396 = vunpack.c.h.b16 %v244
        %v397 = vunpack.c.l.b16 %v245
        %v398 = vunpack.c.h.b16 %v245
        %v399 = vunpack.c.l.b16 %v246
        %v400 = vunpack.c.h.b16 %v246
        %v401 = vunpack.c.l.b16 %v247
        %v402 = vunpack.c.h.b16 %v247
        %v403 = vunpack.c.l.b16 %v248
        %v404 = vunpack.c.h.b16 %v248
        %v405 = vunpack.c.l.b16 %v249
        %v406 = vunpack.c.h.b16 %v249
        %v407 = vunpack.c.l.b16 %v250
        %v408 = vunpack.c.h.b16 %v250
        %v409 = vpack.c.b16 %v393, %v391
        %v410 = vpack.c.b16 %v394, %v392
        %v411 = vpack.c.b16 %v397, %v395
        %v412 = vpack.c.b16 %v398, %v396
        %v413 = vpack.c.b16 %v401, %v399
        %v414 = vpack.c.b16 %v402, %v400
        %v415 = vpack.c.b16 %v405, %v403
        %v416 = vpack.c.b16 %v406, %v404
        %v417 = vpack.c.b16 %v407, %v407
        %v418 = vpack.c.b16 %v408, %v408
        %v427 = vsel %vm328, %v268, 0
        %v430 = vsel %vm332, %v417, 0
        %v433 = vsel %vm332, %v418, 0
        %435 = vmatprep.subr.bf16.mxu0 %v410
        %436 = vmatpush1.bf16.msra.mxu0 %v409
        %437 = vmatprep.subr.bf16.mxu0 %v412
        %438 = vmatpush1.bf16.msra.mxu0 %v411
        %439 = vmatprep.subr.bf16.mxu0 %v414
        %440 = vmatpush1.bf16.msra.mxu0 %v413
        %441 = vmatprep.subr.bf16.mxu0 %v416
        %442 = vmatpush1.bf16.msra.mxu0 %v415
        %443 = vmatprep.subr.bf16.mxu0 %v433
        %444 = vmatpush1.bf16.msra.mxu0 %v430
        %445 = vmatprep.subr.bf16.mxu0 0
        %446 = vmatpush1.bf16.msra.mxu0 0
        %447 = vmatprep.subr.bf16.mxu0 0
        %448 = vmatpush1.bf16.msra.mxu0 0
        %449 = vmatprep.subr.bf16.mxu0 0
        %450 = vmatpush1.bf16.msra.mxu0 0
        %451 = vmatprep.subr.bf16.mxu0 0
        %452 = vmatpush1.bf16.msra.mxu0 0
        %453 = vmatprep.subr.bf16.mxu0 0
        %454 = vmatpush1.bf16.msra.mxu0 0
        %455 = vmatprep.subr.bf16.mxu0 0
        %456 = vmatpush1.bf16.msra.mxu0 0
        %457 = vmatprep.subr.bf16.mxu0 0
        %458 = vmatpush1.bf16.msra.mxu0 0
        %459 = vmatprep.subr.bf16.mxu0 0
        %460 = vmatpush1.bf16.msra.mxu0 0
        %461 = vmatprep.subr.bf16.mxu0 0
        %462 = vmatpush1.bf16.msra.mxu0 0
        %463 = vmatprep.subr.bf16.mxu0 0
        %464 = vmatpush1.bf16.msra.mxu0 0
        %465 = vmatprep.subr.bf16.mxu0 0
        %466 = vmatpush1.bf16.msra.mxu0 0
        %467 = vmatprep.mubr.bf16.mxu0 0
        %468 = vmatmul.mubr.bf16.gmra.mrb[0].mxu0 %v427
        %v469 = vpop.f32.mrb[0].mxu0
        %v470 = vadd.f32 %v374, %v469
        %v471 = vpop.f32.mrb[0].mxu0
        %v472 = vadd.f32 %v376, %v471
        %v473 = vpop.f32.mrb[0].mxu0
        %v474 = vadd.f32 %v378, %v473
        %v475 = vpop.f32.mrb[0].mxu0
        %v476 = vadd.f32 %v380, %v475
        %477 = vdwg.mxu0
        %v478 = vld [vmem:[%s228] sm:$0xe]
        %s479 = scalar_lea.vmem [#allocation2], 144
        %v480 = vld [vmem:[%s479] sm:$0xff]
        %v481 = vld [vmem:[%s479 + $0x8] sm:$0xff]
        %v482 = vld [vmem:[%s479 + $0x10] sm:$0xff]
        %v483 = vld [vmem:[%s479 + $0x18] sm:$0xff]
        %v484 = vld [vmem:[%s479 + $0x20] sm:$0xff]
        %v485 = vld [vmem:[%s479 + $0x28] sm:$0xff]
        %v486 = vld [vmem:[%s479 + $0x30] sm:$0xff]
        %v487 = vld [vmem:[%s479 + $0x38] sm:$0xff]
        %v488 = vld [vmem:[%s479 + $0x40] sm:$0xff]
        %v490 = vunpack.c.l.b16 %v478
        %v491 = vpack.c.b16 %v266, %v490
        %vm492 = vcmask 1046528
        %v493 = vrot.slane %v491, 1
        %v494 = vrot.slane %v269, 1
        %v495 = vsel %vm492, %v493, %v494
        %v505 = vunpack.c.l.b16 %v480
        %v506 = vunpack.c.h.b16 %v480
        %v507 = vunpack.c.l.b16 %v481
        %v508 = vunpack.c.h.b16 %v481
        %v509 = vunpack.c.l.b16 %v482
        %v510 = vunpack.c.h.b16 %v482
        %v511 = vunpack.c.l.b16 %v483
        %v512 = vunpack.c.h.b16 %v483
        %v513 = vunpack.c.l.b16 %v484
        %v514 = vunpack.c.h.b16 %v484
        %v515 = vunpack.c.l.b16 %v485
        %v516 = vunpack.c.h.b16 %v485
        %v517 = vunpack.c.l.b16 %v486
        %v518 = vunpack.c.h.b16 %v486
        %v519 = vunpack.c.l.b16 %v487
        %v520 = vunpack.c.h.b16 %v487
        %v521 = vunpack.c.l.b16 %v488
        %v522 = vunpack.c.h.b16 %v488
        %v523 = vpack.c.b16 %v507, %v505
        %v524 = vpack.c.b16 %v508, %v506
        %v525 = vpack.c.b16 %v511, %v509
        %v526 = vpack.c.b16 %v512, %v510
        %v527 = vpack.c.b16 %v515, %v513
        %v528 = vpack.c.b16 %v516, %v514
        %v529 = vpack.c.b16 %v519, %v517
        %v530 = vpack.c.b16 %v520, %v518
        %v531 = vpack.c.b16 %v521, %v521
        %v532 = vpack.c.b16 %v522, %v522
        %v542 = vsel %vm328, %v495, 0
        %v545 = vsel %vm332, %v531, 0
        %v548 = vsel %vm332, %v532, 0
        %550 = vmatprep.subr.bf16.mxu0 %v524
        %551 = vmatpush1.bf16.msra.mxu0 %v523
        %552 = vmatprep.subr.bf16.mxu0 %v526
        %553 = vmatpush1.bf16.msra.mxu0 %v525
        %554 = vmatprep.subr.bf16.mxu0 %v528
        %555 = vmatpush1.bf16.msra.mxu0 %v527
        %556 = vmatprep.subr.bf16.mxu0 %v530
        %557 = vmatpush1.bf16.msra.mxu0 %v529
        %558 = vmatprep.subr.bf16.mxu0 %v548
        %559 = vmatpush1.bf16.msra.mxu0 %v545
        %560 = vmatprep.subr.bf16.mxu0 0
        %561 = vmatpush1.bf16.msra.mxu0 0
        %562 = vmatprep.subr.bf16.mxu0 0
        %563 = vmatpush1.bf16.msra.mxu0 0
        %564 = vmatprep.subr.bf16.mxu0 0
        %565 = vmatpush1.bf16.msra.mxu0 0
        %566 = vmatprep.subr.bf16.mxu0 0
        %567 = vmatpush1.bf16.msra.mxu0 0
        %568 = vmatprep.subr.bf16.mxu0 0
        %569 = vmatpush1.bf16.msra.mxu0 0
        %570 = vmatprep.subr.bf16.mxu0 0
        %571 = vmatpush1.bf16.msra.mxu0 0
        %572 = vmatprep.subr.bf16.mxu0 0
        %573 = vmatpush1.bf16.msra.mxu0 0
        %574 = vmatprep.subr.bf16.mxu0 0
        %575 = vmatpush1.bf16.msra.mxu0 0
        %576 = vmatprep.subr.bf16.mxu0 0
        %577 = vmatpush1.bf16.msra.mxu0 0
        %578 = vmatprep.subr.bf16.mxu0 0
        %579 = vmatpush1.bf16.msra.mxu0 0
        %580 = vmatprep.subr.bf16.mxu0 0
        %581 = vmatpush1.bf16.msra.mxu0 0
        %582 = vmatprep.mubr.bf16.mxu0 0
        %583 = vmatmul.mubr.bf16.gmra.mrb[0].mxu0 %v542
        %v584 = vpop.f32.mrb[0].mxu0
        %v585 = vadd.f32 0.0, %v584
        %v586 = vpop.f32.mrb[0].mxu0
        %v587 = vadd.f32 0.0, %v586
        %v588 = vpop.f32.mrb[0].mxu0
        %v589 = vadd.f32 0.0, %v588
        %v590 = vpop.f32.mrb[0].mxu0
        %v591 = vadd.f32 0.0, %v590
        %592 = vdwg.mxu0
        %v593 = vadd.f32 %v470, %v585
        %v594 = vadd.f32 %v472, %v587
        %v595 = vadd.f32 %v474, %v589
        %v596 = vadd.f32 %v476, %v591
        %v597 = vld [vmem:[#allocation4] sm:$0x3]
        %v599 = vlaneseq
        %v600 = vshrl.u32 %v599, 7
        %v601 = vsub.s32 0, %v600
        %v602 = vrot.slane %v597, %v601
        %v603 = vlaneseq
        %v604 = vshrl.u32 %v603, 7
        %v605 = vsub.s32 1, %v604
        %v606 = vrot.slane %v597, %v605
        %v609 = vadd.f32 %v593, %v602
        %v610 = vadd.f32 %v594, %v606
        %v611 = vadd.f32 %v595, %v602
        %v612 = vadd.f32 %v596, %v606
        %613 = vst [vmem:[%s233] sm:$0xff] %v609
        %614 = vst [vmem:[%s233 + $0x8] sm:$0xff] %v610
        %615 = vst [vmem:[%s233 + $0x10] sm:$0xff] %v611
        %616 = vst [vmem:[%s233 + $0x18] sm:$0xff] %v612
        %v617 = vadd.f32 %v609, %v611
        %v618 = vrot.slane %v617, 4
        %v619 = vadd.f32 %v617, %v618
        %v620 = vrot.slane %v619, 2
        %v621 = vadd.f32 %v619, %v620
        %v622 = vrot.slane %v621, 1
        %v623 = vadd.f32 %v621, %v622
        %v624 = vadd.f32 %v610, %v612
        %v625 = vrot.slane %v624, 4
        %v626 = vadd.f32 %v624, %v625
        %v627 = vrot.slane %v626, 2
        %v628 = vadd.f32 %v626, %v627
        %v629 = vrot.slane %v628, 1
        %v630 = vadd.f32 %v628, %v629
        %v631 = vmul.f32 %v609, %v609
        %v632 = vmul.f32 %v610, %v610
        %v633 = vmul.f32 %v611, %v611
        %v634 = vmul.f32 %v612, %v612
        %v635 = vadd.f32 %v631, %v633
        %v636 = vrot.slane %v635, 4
        %v637 = vadd.f32 %v635, %v636
        %v638 = vrot.slane %v637, 2
        %v639 = vadd.f32 %v637, %v638
        %v640 = vrot.slane %v639, 1
        %v641 = vadd.f32 %v639, %v640
        %v642 = vadd.f32 %v632, %v634
        %v643 = vrot.slane %v642, 4
        %v644 = vadd.f32 %v642, %v643
        %v645 = vrot.slane %v644, 2
        %v646 = vadd.f32 %v644, %v645
        %v647 = vrot.slane %v646, 1
        %v648 = vadd.f32 %v646, %v647
        %vm649 = vcmask 1040384
        %v650 = vsel %vm649, %v623, %v641
        %v651 = vsel %vm649, %v630, %v648
        %v654 = vcombine.low %v650, %v651
        %v656 = vunpack.c.l.s4 1983009808
        %v657 = vunpack.c.0.s8 %v656
        %v658 = vlaneseq
        %v659 = vshrl.u32 %v658, 7
        %v660 = vsub.s32 %v657, %v659
        %v661 = vrot.slane %v654, %v660
        %663 = vst [vmem:[%s238] sm:$0xf] %v661
        %p664 = scmp.lt.s32.totalorder %s18, 1
        %s665 = scalar_select %p664, %s18, 1
        %s666 = smul.addr %s665, 4
        %s667 = smul.addr %s666, 8
        %s668 = scalar_lea.vmem %s3, %s667
        %p669 = scmp.lt.s32.totalorder %s18, 1
        %s670 = scalar_select %p669, %s18, 1
        %s671 = smul.addr %s670, 2
        %s672 = smul.addr %s671, 2
        %s673 = scalar_lea.vmem %s4, %s672
        // Predicated region
        $region41: #{layer_forward.2} parent=31 // pred_check
          %p674 = pneg %p104
        $region42: #{layer_forward.2} parent=31 // pred_check_branch
          %676 = sbr.rel (%p674) target = $region44
        $region43: #{layer_forward.2} parent=31 // pred_region
          _
        $region44: #{layer_forward.2} parent=31 // pred_fallthru
          _
        // Predicated region
        $region45: #{layer_forward.2} parent=31 // pred_check
          %p677 = pneg %p130
        $region46: #{layer_forward.2} parent=31 // pred_check_branch
          %679 = sbr.rel (%p677) target = $region48
        $region47: #{layer_forward.2} parent=31 // pred_region
          _
        $region48: #{layer_forward.2} parent=31 // pred_fallthru
          _
      $region32: #{layer_forward.2} parent=5 // pred_fallthru
        _
      %p680 = scmp.le.s32.totalorder 2, %s13
      // Predicated region
      $region49: #{layer_forward.2} parent=5 // pred_check
        %p681 = pneg %p680
      $region50: #{layer_forward.2} parent=5 // pred_check_branch
        %683 = sbr.rel (%p681) target = $region52
      $region51: #{layer_forward.2} parent=5 // pred_region
        %s684 = ssub.s32 %s13, 2
        // Predicated region
        $region53: #{layer_forward.2} parent=51 // pred_check
          %p685 = pneg %p110
        $region54: #{layer_forward.2} parent=51 // pred_check_branch
          %687 = sbr.rel (%p685) target = $region56
        $region55: #{layer_forward.2} parent=51 // pred_region
          %p688 = scmp.lt.s32.totalorder %s19, 1
          %s689 = scalar_select %p688, %s19, 1
          %s690 = smul.addr %s689, 4
          %s691 = smul.addr %s690, 8
          %s692 = scalar_lea.vmem %s3, %s691
        $region56: #{layer_forward.2} parent=51 // pred_fallthru
          _
        // Predicated region
        $region57: #{layer_forward.2} parent=51 // pred_check
          %p693 = pneg %p136
        $region58: #{layer_forward.2} parent=51 // pred_check_branch
          %695 = sbr.rel (%p693) target = $region60
        $region59: #{layer_forward.2} parent=51 // pred_region
          %p696 = scmp.lt.s32.totalorder %s19, 1
          %s697 = scalar_select %p696, %s19, 1
          %s698 = smul.addr %s697, 2
          %s699 = smul.addr %s698, 2
          %s700 = scalar_lea.vmem %s4, %s699
        $region60: #{layer_forward.2} parent=51 // pred_fallthru
          _
      $region52: #{layer_forward.2} parent=5 // pred_fallthru
        _
    $region6: #{layer_forward.2} parent=1 // loop_footer
      %s17 = sadd.s32 1, %s13
    $region7: #{layer_forward.2} parent=1 // loop_footer_branch
      %12 = sbr.rel target = $region3
    $region8: #{layer_forward.2} parent=1 // loop_exit
      _
    %701 = vsyncpa [#allocation3], 1
    %s702 = scalar_lea.sflag [#allocation3], 1
    %703 = vsyncpa %s702, 1
    %704 = vsyncpa [#allocation5], 1

// kernel: layer_forward.3
$region0: #{layer_forward.3}
  #allocation0 [shape = 'u32[]', space=smem, size = 0x4, offset = 0x4, fixed_abs, tag = 'smem constant byte address 0x4 - core index']
  #allocation1 [shape = 'u32[144,128]{1,0:T(1,128)}', space=vmem, size = 0x12000, scoped, tag = 'internal scratch']
  %s0 = inlined_call_operand.vmem [shape: f32[2,16,256], index: 0, kind: input, shape index: {}]
  %s1 = inlined_call_operand.vmem [shape: f32[2,2,256], index: 1, kind: input, shape index: {}]
  %s2 = inlined_call_operand.hbm [shape: f32[2,16], index: 2, kind: input, shape index: {}]
  %s3 = inlined_call_operand.vmem [shape: f32[16,2], index: 3, kind: input, shape index: {}]
  %s4 = inlined_call_operand.hbm [shape: f32[2,16], index: 4, kind: input, shape index: {}]
  %s5 = inlined_call_operand.hbm [shape: f32[7,256,256], index: 5, kind: input, shape index: {}]
  %s6 = inlined_call_operand.vmem [shape: f32[256,16], index: 6, kind: input, shape index: {}]
  %s7 = inlined_call_operand.hbm [shape: f32[16,256], index: 7, kind: input, shape index: {}]
  %s8 = inlined_call_operand.hbm [shape: f32[512,256], index: 8, kind: input, shape index: {}]
  %s9 = inlined_call_operand.vmem [shape: f32[2,16,256], index: 9, kind: output, shape index: {}]
  %s10 = sld [smem:[#allocation0]]
  $region89: #{layer_forward.3} parent=0
    _
  %s12 = ssub.s32 1, %s10
  %s13 = scalar_select 0, %s12, %s10
  $region1: #{layer_forward.3} parent=0
    #allocation2 [shape = 'u8[1024]{0}', space=vmem, size = 0x400, scoped, tag = 'input window, operand 2, single buffered']
    #allocation3 [shape = 's32[2]{0}', space=sflag, size = 0x8, scoped, tag = 'scoped memory for layer_forward.3']
    #allocation4 [shape = 'u8[1024]{0}', space=vmem, size = 0x400, scoped, tag = 'input window, operand 4, single buffered']
    #allocation5 [shape = 's32[1]{0}', space=sflag, size = 0x4, scoped, tag = 'scoped memory for layer_forward.3']
    #allocation6 [shape = 'u8[1835008]{0}', space=vmem, size = 0x1c0000, scoped, tag = 'input window, operand 5, single buffered']
    #allocation7 [shape = 'u8[16384]{0}', space=vmem, size = 0x4000, scoped, tag = 'input window, operand 7, single buffered']
    #allocation8 [shape = 's32[1]{0}', space=sflag, size = 0x4, scoped, tag = 'scoped memory for layer_forward.3']
    #allocation9 [shape = 'u8[524288]{0}', space=vmem, size = 0x80000, scoped, tag = 'input window, operand 8, single buffered']
    %14 = vsyncpa [#allocation3], 0
    %15 = vsyncpa [#allocation5], 0
    %16 = vsyncpa [#allocation8], 0
    loop: start=0, step=1, limit=4
    $region2: #{layer_forward.3} parent=1 // loop_pre_header
      _
    $region3: #{layer_forward.3} parent=1 // loop_header
      %s18 = sphi 0, %s22
      %p19 = scmp.ge.s32.totalorder %s18, 4
      %s28 = sphi 0, %s30
      %s31 = sphi 0, %s28
      %s32 = sphi 0, %s31
      %s48 = sphi 0, %s32
      %s52 = sphi 0, %s52
      %s54 = sphi 0, %s52
      %s55 = sphi 0, %s54
      %s69 = sphi 0, %s55
      %s73 = sphi 0, %s73
      %s75 = sphi 0, %s73
      %s76 = sphi 0, %s75
      %s90 = sphi 0, %s76
      %s94 = sphi 0, %s94
      %s96 = sphi 0, %s94
      %s97 = sphi 0, %s96
      %s111 = sphi 0, %s97
      %s115 = sphi 0, %s115
      %s117 = sphi 0, %s115
      %s118 = sphi 0, %s117
      %s132 = sphi 0, %s118
      %s136 = sphi 0, %s136
      %s138 = sphi 0, %s136
      %s139 = sphi 0, %s138
      %s153 = sphi 0, %s139
      %s157 = sphi 0, %s157
      %s159 = sphi 0, %s157
      %s160 = sphi 0, %s159
      %s174 = sphi 0, %s160
      %s178 = sphi 0, %s178
      %s180 = sphi 0, %s178
      %s181 = sphi 0, %s180
      %s195 = sphi 0, %s181
      %s199 = sphi 0, %s199
      %s201 = sphi 0, %s199
      %s202 = sphi 0, %s201
      %s216 = sphi 0, %s202
      %s222 = sphi 0, %s224
      %s225 = sphi 0, %s222
      %s226 = sphi 0, %s225
      %s242 = sphi 0, %s226
    $region4: #{layer_forward.3} parent=1 // loop_header_branch
      %21 = sbr.rel (%p19) target = $region8
    $region5: #{layer_forward.3} parent=1 // loop_body
      %s23 = ssub.s32 %s18, 1
      %s24 = ssub.s32 %s18, 2
      %s25 = sadd.s32 %s18, 1
      %s26 = ssub.s32 %s18, %s25
      %p27 = scmp.eq.s32.totalorder %s26, 0
      %s29 = sadd.s32 %s28, 1
      %s30 = scalar_select %p27, %s28, %s29
      %p33 = pneg %p27
      %p34 = scmp.eq.s32.totalorder %s18, 1
      %p35 = por %p33, %p34
      %p36 = scmp.ne.s32.totalorder %s28, %s31
      %p37 = scmp.eq.s32.totalorder %s18, 0
      %p38 = por %p36, %p37
      %p39 = scmp.ne.s32.totalorder %s28, %s31
      %p40 = scmp.eq.s32.totalorder %s23, 1
      %p41 = por %p39, %p40
      %p42 = scmp.ne.s32.totalorder %s31, %s32
      %p43 = scmp.eq.s32.totalorder %s23, 0
      %p44 = por %p42, %p43
      %p45 = scmp.ne.s32.totalorder %s31, %s32
      %p46 = scmp.eq.s32.totalorder %s24, 1
      %p47 = por %p45, %p46
      %p49 = scmp.ne.s32.totalorder %s32, %s48
      %p50 = scmp.eq.s32.totalorder %s24, 0
      %p51 = por %p49, %p50
      %s53 = sadd.s32 %s52, 1
      %p56 = scmp.eq.s32.totalorder %s18, 1
      %p57 = scmp.ne.s32.totalorder %s52, %s54
      %p58 = scmp.eq.s32.totalorder %s18, 0
      %p59 = por %p57, %p58
      %p60 = scmp.ne.s32.totalorder %s52, %s54
      %p61 = scmp.eq.s32.totalorder %s23, 1
      %p62 = por %p60, %p61
      %p63 = scmp.ne.s32.totalorder %s54, %s55
      %p64 = scmp.eq.s32.totalorder %s23, 0
      %p65 = por %p63, %p64
      %p66 = scmp.ne.s32.totalorder %s54, %s55
      %p67 = scmp.eq.s32.totalorder %s24, 1
      %p68 = por %p66, %p67
      %p70 = scmp.ne.s32.totalorder %s55, %s69
      %p71 = scmp.eq.s32.totalorder %s24, 0
      %p72 = por %p70, %p71
      %s74 = sadd.s32 %s73, 1
      %p77 = scmp.eq.s32.totalorder %s18, 1
      %p78 = scmp.ne.s32.totalorder %s73, %s75
      %p79 = scmp.eq.s32.totalorder %s18, 0
      %p80 = por %p78, %p79
      %p81 = scmp.ne.s32.totalorder %s73, %s75
      %p82 = scmp.eq.s32.totalorder %s23, 1
      %p83 = por %p81, %p82
      %p84 = scmp.ne.s32.totalorder %s75, %s76
      %p85 = scmp.eq.s32.totalorder %s23, 0
      %p86 = por %p84, %p85
      %p87 = scmp.ne.s32.totalorder %s75, %s76
      %p88 = scmp.eq.s32.totalorder %s24, 1
      %p89 = por %p87, %p88
      %p91 = scmp.ne.s32.totalorder %s76, %s90
      %p92 = scmp.eq.s32.totalorder %s24, 0
      %p93 = por %p91, %p92
      %s95 = sadd.s32 %s94, 1
      %p98 = scmp.eq.s32.totalorder %s18, 1
      %p99 = scmp.ne.s32.totalorder %s94, %s96
      %p100 = scmp.eq.s32.totalorder %s18, 0
      %p101 = por %p99, %p100
      %p102 = scmp.ne.s32.totalorder %s94, %s96
      %p103 = scmp.eq.s32.totalorder %s23, 1
      %p104 = por %p102, %p103
      %p105 = scmp.ne.s32.totalorder %s96, %s97
      %p106 = scmp.eq.s32.totalorder %s23, 0
      %p107 = por %p105, %p106
      %p108 = scmp.ne.s32.totalorder %s96, %s97
      %p109 = scmp.eq.s32.totalorder %s24, 1
      %p110 = por %p108, %p109
      %p112 = scmp.ne.s32.totalorder %s97, %s111
      %p113 = scmp.eq.s32.totalorder %s24, 0
      %p114 = por %p112, %p113
      %s116 = sadd.s32 %s115, 1
      %p119 = scmp.eq.s32.totalorder %s18, 1
      %p120 = scmp.ne.s32.totalorder %s115, %s117
      %p121 = scmp.eq.s32.totalorder %s18, 0
      %p122 = por %p120, %p121
      %p123 = scmp.ne.s32.totalorder %s115, %s117
      %p124 = scmp.eq.s32.totalorder %s23, 1
      %p125 = por %p123, %p124
      %p126 = scmp.ne.s32.totalorder %s117, %s118
      %p127 = scmp.eq.s32.totalorder %s23, 0
      %p128 = por %p126, %p127
      %p129 = scmp.ne.s32.totalorder %s117, %s118
      %p130 = scmp.eq.s32.totalorder %s24, 1
      %p131 = por %p129, %p130
      %p133 = scmp.ne.s32.totalorder %s118, %s132
      %p134 = scmp.eq.s32.totalorder %s24, 0
      %p135 = por %p133, %p134
      %s137 = sadd.s32 %s136, 1
      %p140 = scmp.eq.s32.totalorder %s18, 1
      %p141 = scmp.ne.s32.totalorder %s136, %s138
      %p142 = scmp.eq.s32.totalorder %s18, 0
      %p143 = por %p141, %p142
      %p144 = scmp.ne.s32.totalorder %s136, %s138
      %p145 = scmp.eq.s32.totalorder %s23, 1
      %p146 = por %p144, %p145
      %p147 = scmp.ne.s32.totalorder %s138, %s139
      %p148 = scmp.eq.s32.totalorder %s23, 0
      %p149 = por %p147, %p148
      %p150 = scmp.ne.s32.totalorder %s138, %s139
      %p151 = scmp.eq.s32.totalorder %s24, 1
      %p152 = por %p150, %p151
      %p154 = scmp.ne.s32.totalorder %s139, %s153
      %p155 = scmp.eq.s32.totalorder %s24, 0
      %p156 = por %p154, %p155
      %s158 = sadd.s32 %s157, 1
      %p161 = scmp.eq.s32.totalorder %s18, 1
      %p162 = scmp.ne.s32.totalorder %s157, %s159
      %p163 = scmp.eq.s32.totalorder %s18, 0
      %p164 = por %p162, %p163
      %p165 = scmp.ne.s32.totalorder %s157, %s159
      %p166 = scmp.eq.s32.totalorder %s23, 1
      %p167 = por %p165, %p166
      %p168 = scmp.ne.s32.totalorder %s159, %s160
      %p169 = scmp.eq.s32.totalorder %s23, 0
      %p170 = por %p168, %p169
      %p171 = scmp.ne.s32.totalorder %s159, %s160
      %p172 = scmp.eq.s32.totalorder %s24, 1
      %p173 = por %p171, %p172
      %p175 = scmp.ne.s32.totalorder %s160, %s174
      %p176 = scmp.eq.s32.totalorder %s24, 0
      %p177 = por %p175, %p176
      %s179 = sadd.s32 %s178, 1
      %p182 = scmp.eq.s32.totalorder %s18, 1
      %p183 = scmp.ne.s32.totalorder %s178, %s180
      %p184 = scmp.eq.s32.totalorder %s18, 0
      %p185 = por %p183, %p184
      %p186 = scmp.ne.s32.totalorder %s178, %s180
      %p187 = scmp.eq.s32.totalorder %s23, 1
      %p188 = por %p186, %p187
      %p189 = scmp.ne.s32.totalorder %s180, %s181
      %p190 = scmp.eq.s32.totalorder %s23, 0
      %p191 = por %p189, %p190
      %p192 = scmp.ne.s32.totalorder %s180, %s181
      %p193 = scmp.eq.s32.totalorder %s24, 1
      %p194 = por %p192, %p193
      %p196 = scmp.ne.s32.totalorder %s181, %s195
      %p197 = scmp.eq.s32.totalorder %s24, 0
      %p198 = por %p196, %p197
      %s200 = sadd.s32 %s199, 1
      %p203 = scmp.eq.s32.totalorder %s18, 1
      %p204 = scmp.ne.s32.totalorder %s199, %s201
      %p205 = scmp.eq.s32.totalorder %s18, 0
      %p206 = por %p204, %p205
      %p207 = scmp.ne.s32.totalorder %s199, %s201
      %p208 = scmp.eq.s32.totalorder %s23, 1
      %p209 = por %p207, %p208
      %p210 = scmp.ne.s32.totalorder %s201, %s202
      %p211 = scmp.eq.s32.totalorder %s23, 0
      %p212 = por %p210, %p211
      %p213 = scmp.ne.s32.totalorder %s201, %s202
      %p214 = scmp.eq.s32.totalorder %s24, 1
      %p215 = por %p213, %p214
      %p217 = scmp.ne.s32.totalorder %s202, %s216
      %p218 = scmp.eq.s32.totalorder %s24, 0
      %p219 = por %p217, %p218
      %s220 = ssub.s32 %s18, %s25
      %p221 = scmp.eq.s32.totalorder %s220, 0
      %s223 = sadd.s32 %s222, 1
      %s224 = scalar_select %p221, %s222, %s223
      %p227 = pneg %p221
      %p228 = scmp.eq.s32.totalorder %s18, 1
      %p229 = por %p227, %p228
      %p230 = scmp.ne.s32.totalorder %s222, %s225
      %p231 = scmp.eq.s32.totalorder %s18, 0
      %p232 = por %p230, %p231
      %p233 = scmp.ne.s32.totalorder %s222, %s225
      %p234 = scmp.eq.s32.totalorder %s23, 1
      %p235 = por %p233, %p234
      %p236 = scmp.ne.s32.totalorder %s225, %s226
      %p237 = scmp.eq.s32.totalorder %s23, 0
      %p238 = por %p236, %p237
      %p239 = scmp.ne.s32.totalorder %s225, %s226
      %p240 = scmp.eq.s32.totalorder %s24, 1
      %p241 = por %p239, %p240
      %p243 = scmp.ne.s32.totalorder %s226, %s242
      %p244 = scmp.eq.s32.totalorder %s24, 0
      %p245 = por %p243, %p244
      %p246 = scmp.le.s32.totalorder 1, %s18
      %p247 = scmp.lt.s32.totalorder %s18, 3
      %p248 = pnand %p246, %p247
      %p249 = pneg %p248
      // Predicated region
      $region9: #{layer_forward.3} parent=5 // pred_check
        _
      $region10: #{layer_forward.3} parent=5 // pred_check_branch
        %251 = sbr.rel (%p248) target = $region12
      $region11: #{layer_forward.3} parent=5 // pred_region
        %s252 = ssub.s32 %s18, 1
        // Predicated region
        $region13: #{layer_forward.3} parent=11 // pred_check
          %p253 = pneg %p65
        $region14: #{layer_forward.3} parent=11 // pred_check_branch
          %255 = sbr.rel (%p253) target = $region16
        $region15: #{layer_forward.3} parent=11 // pred_region
          _
        $region16: #{layer_forward.3} parent=11 // pred_fallthru
          _
        // Predicated region
        $region17: #{layer_forward.3} parent=11 // pred_check
          %p256 = pneg %p86
        $region18: #{layer_forward.3} parent=11 // pred_check_branch
          %258 = sbr.rel (%p256) target = $region20
        $region19: #{layer_forward.3} parent=11 // pred_region
          %s260 = ssub.s32 32, 32
          %261 = vsyncadd [#allocation3], %s260
          %s263 = sshll.u32 [#allocation2], 4
          %s264 = int_to_ptr.vmem [resolvable:$true] %s263
          %266 = dma.hbm_to_vmem [thread:$0]  %s2, 32, %s264, [#allocation3]
        $region20: #{layer_forward.3} parent=11 // pred_fallthru
          _
        // Predicated region
        $region21: #{layer_forward.3} parent=11 // pred_check
          %p267 = pneg %p107
        $region22: #{layer_forward.3} parent=11 // pred_check_branch
          %269 = sbr.rel (%p267) target = $region24
        $region23: #{layer_forward.3} parent=11 // pred_region
          _
        $region24: #{layer_forward.3} parent=11 // pred_fallthru
          _
        // Predicated region
        $region25: #{layer_forward.3} parent=11 // pred_check
          %p270 = pneg %p128
        $region26: #{layer_forward.3} parent=11 // pred_check_branch
          %272 = sbr.rel (%p270) target = $region28
        $region27: #{layer_forward.3} parent=11 // pred_region
          %s274 = ssub.s32 32, 32
          %275 = vsyncadd [#allocation5], %s274
          %s277 = sshll.u32 [#allocation4], 4
          %s278 = int_to_ptr.vmem [resolvable:$true] %s277
          %280 = dma.hbm_to_vmem [thread:$0]  %s4, 32, %s278, [#allocation5]
        $region28: #{layer_forward.3} parent=11 // pred_fallthru
          _
        // Predicated region
        $region29: #{layer_forward.3} parent=11 // pred_check
          %p281 = pneg %p149
        $region30: #{layer_forward.3} parent=11 // pred_check_branch
          %283 = sbr.rel (%p281) target = $region32
        $region31: #{layer_forward.3} parent=11 // pred_region
          %s285 = ssub.s32 57344, 57344
          %286 = vsyncadd [#allocation5], %s285
          %s287 = sshll.u32 [#allocation6], 4
          %s288 = int_to_ptr.vmem [resolvable:$true] %s287
          %293 = dma.hbm_to_vmem [thread:$0]  %s5, 57344, %s288, [#allocation5], 256, 256, 16
        $region32: #{layer_forward.3} parent=11 // pred_fallthru
          _
        // Predicated region
        $region33: #{layer_forward.3} parent=11 // pred_check
          %p294 = pneg %p170
        $region34: #{layer_forward.3} parent=11 // pred_check_branch
          %296 = sbr.rel (%p294) target = $region36
        $region35: #{layer_forward.3} parent=11 // pred_region
          _
        $region36: #{layer_forward.3} parent=11 // pred_fallthru
          _
        // Predicated region
        $region37: #{layer_forward.3} parent=11 // pred_check
          %p297 = pneg %p191
        $region38: #{layer_forward.3} parent=11 // pred_check_branch
          %299 = sbr.rel (%p297) target = $region40
        $region39: #{layer_forward.3} parent=11 // pred_region
          %s301 = ssub.s32 512, 512
          %302 = vsyncadd [#allocation8], %s301
          %s303 = sshll.u32 [#allocation7], 4
          %s304 = int_to_ptr.vmem [resolvable:$true] %s303
          %309 = dma.hbm_to_vmem [thread:$0]  %s7, 512, %s304, [#allocation8], 256, 256, 16
        $region40: #{layer_forward.3} parent=11 // pred_fallthru
          _
        // Predicated region
        $region41: #{layer_forward.3} parent=11 // pred_check
          %p310 = pneg %p212
        $region42: #{layer_forward.3} parent=11 // pred_check_branch
          %312 = sbr.rel (%p310) target = $region44
        $region43: #{layer_forward.3} parent=11 // pred_region
          %s314 = ssub.s32 16384, 16384
          %315 = vsyncadd [#allocation8], %s314
          %s316 = sshll.u32 [#allocation9], 4
          %s317 = int_to_ptr.vmem [resolvable:$true] %s316
          %322 = dma.hbm_to_vmem [thread:$0]  %s8, 16384, %s317, [#allocation8], 256, 256, 16
        $region44: #{layer_forward.3} parent=11 // pred_fallthru
          _
      $region12: #{layer_forward.3} parent=5 // pred_fallthru
        _
      %p323 = scmp.lt.s32.totalorder %s18, 2
      // Predicated region
      $region45: #{layer_forward.3} parent=5 // pred_check
        %p324 = pneg %p323
      $region46: #{layer_forward.3} parent=5 // pred_check_branch
        %326 = sbr.rel (%p324) target = $region48
      $region47: #{layer_forward.3} parent=5 // pred_region
        // Predicated region
        $region49: #{layer_forward.3} parent=47 // pred_check
          %p327 = pneg %p38
        $region50: #{layer_forward.3} parent=47 // pred_check_branch
          %329 = sbr.rel (%p327) target = $region52
        $region51: #{layer_forward.3} parent=47 // pred_region
          %p330 = scmp.lt.s32.totalorder %s18, 1
          %s331 = scalar_select %p330, %s18, 1
          %s332 = smul.addr %s331, 4
          %s333 = smul.addr %s332, 8
          %s334 = scalar_lea.vmem %s0, %s333
        $region52: #{layer_forward.3} parent=47 // pred_fallthru
          _
      $region48: #{layer_forward.3} parent=5 // pred_fallthru
        _
      %p335 = scmp.le.s32.totalorder 1, %s18
      %p336 = scmp.lt.s32.totalorder %s18, 3
      %p337 = pnand %p335, %p336
      %p338 = pneg %p337
      // Predicated region
      $region53: #{layer_forward.3} parent=5 // pred_check
        _
      $region54: #{layer_forward.3} parent=5 // pred_check_branch
        %340 = sbr.rel (%p337) target = $region56
      $region55: #{layer_forward.3} parent=5 // pred_region
        %s341 = ssub.s32 %s18, 1
        // Predicated region
        $region57: #{layer_forward.3} parent=55 // pred_check
          %p342 = pneg %p86
        $region58: #{layer_forward.3} parent=55 // pred_check_branch
          %344 = sbr.rel (%p342) target = $region60
        $region59: #{layer_forward.3} parent=55 // pred_region
          %345 = dma.done [#allocation3], 32
        $region60: #{layer_forward.3} parent=55 // pred_fallthru
          _
        // Predicated region
        $region61: #{layer_forward.3} parent=55 // pred_check
          %p346 = pneg %p128
        $region62: #{layer_forward.3} parent=55 // pred_check_branch
          %348 = sbr.rel (%p346) target = $region64
        $region63: #{layer_forward.3} parent=55 // pred_region
          %349 = dma.done [#allocation5], 32
        $region64: #{layer_forward.3} parent=55 // pred_fallthru
          _
        // Predicated region
        $region65: #{layer_forward.3} parent=55 // pred_check
          %p350 = pneg %p149
        $region66: #{layer_forward.3} parent=55 // pred_check_branch
          %352 = sbr.rel (%p350) target = $region68
        $region67: #{layer_forward.3} parent=55 // pred_region
          %353 = dma.done [#allocation5], 57344
        $region68: #{layer_forward.3} parent=55 // pred_fallthru
          _
        // Predicated region
        $region69: #{layer_forward.3} parent=55 // pred_check
          %p354 = pneg %p191
        $region70: #{layer_forward.3} parent=55 // pred_check_branch
          %356 = sbr.rel (%p354) target = $region72
        $region71: #{layer_forward.3} parent=55 // pred_region
          %357 = dma.done [#allocation8], 512
        $region72: #{layer_forward.3} parent=55 // pred_fallthru
          _
        // Predicated region
        $region73: #{layer_forward.3} parent=55 // pred_check
          %p358 = pneg %p212
        $region74: #{layer_forward.3} parent=55 // pred_check_branch
          %360 = sbr.rel (%p358) target = $region76
        $region75: #{layer_forward.3} parent=55 // pred_region
          %361 = dma.done [#allocation8], 16384
        $region76: #{layer_forward.3} parent=55 // pred_fallthru
          _
        %p362 = scmp.lt.s32.totalorder %s23, 1
        %s363 = scalar_select %p362, %s23, 1
        %s364 = smul.addr %s363, 4
        %s365 = smul.addr %s364, 8
        %s366 = scalar_lea.vmem %s0, %s365
        %p367 = pneg %p44
        %p368 = pneg %p41
        %p369 = pneg %p65
        %p370 = pneg %p62
        %p371 = pneg %p86
        %p372 = pneg %p83
        %p373 = pneg %p107
        %p374 = pneg %p104
        %p375 = pneg %p128
        %p376 = pneg %p125
        %p377 = pneg %p149
        %p378 = pneg %p146
        %p379 = pneg %p170
        %p380 = pneg %p167
        %p381 = pneg %p191
        %p382 = pneg %p188
        %p383 = pneg %p212
        %p384 = pneg %p209
        %p385 = pneg %p238
        %p386 = pneg %p235
        %p387 = scmp.lt.s32.totalorder %s23, 1
        %s388 = scalar_select %p387, %s23, 1
        %s389 = smul.addr %s388, 4
        %s390 = smul.addr %s389, 8
        %s391 = scalar_lea.vmem %s9, %s390
        %p392 = scmp.lt.s32.totalorder %s23, 1
        %s393 = scalar_select %p392, %s23, 1
        %s394 = smul.addr %s393, 4
        %s395 = smul.addr %s394, 8
        %s396 = scalar_lea.vmem %s0, %s395
        %p397 = scmp.lt.s32.totalorder %s23, 1
        %s398 = scalar_select %p397, %s23, 1
        %s399 = smul.addr %s398, 4
        %s400 = smul.addr %s399, 8
        %s401 = scalar_lea.vmem %s9, %s400
        %v402 = vld [vmem:[%s1] sm:$0xf]
        %v403 = vld [vmem:[%s1 + $0x4] sm:$0xf]
        %v407 = vunpack.c.l.s4 1983009808
        %v408 = vunpack.c.0.s8 %v407
        %v409 = vlaneseq
        %v410 = vshrl.u32 %v409, 7
        %v411 = vsub.s32 %v408, %v410
        %v412 = vrot.slane %v402, %v411
        %v413 = vcombine.high %v412, %v412
        %v415 = vunpack.c.l.s4 1983009808
        %v416 = vunpack.c.0.s8 %v415
        %v417 = vlaneseq
        %v418 = vshrl.u32 %v417, 7
        %v419 = vsub.s32 %v416, %v418
        %v420 = vrot.slane %v403, %v419
        %v421 = vcombine.high %v420, %v420
        %vm426 = vcmask 1041408
        %v427 = vsel %vm426, %v412, 0.0
        %v428 = vsel %vm426, %v420, 0.0
        %v429 = vadd.f32 %v427, %v428
        %v430 = vsel %vm426, %v413, 0.0
        %v431 = vsel %vm426, %v421, 0.0
        %v432 = vadd.f32 %v430, %v431
        %v433 = vld [vmem:[%s6] sm:$0xff]
        %v434 = vld [vmem:[%s6 + $0x8] sm:$0xff]
        %v435 = vld [vmem:[%s6 + $0x10] sm:$0xff]
        %v436 = vld [vmem:[%s6 + $0x18] sm:$0xff]
        %v437 = vld [vmem:[%s6 + $0x20] sm:$0xff]
        %v438 = vld [vmem:[%s6 + $0x28] sm:$0xff]
        %v439 = vld [vmem:[%s6 + $0x30] sm:$0xff]
        %v440 = vld [vmem:[%s6 + $0x38] sm:$0xff]
        %v441 = vld [vmem:[%s6 + $0x40] sm:$0xff]
        %v442 = vld [vmem:[%s6 + $0x48] sm:$0xff]
        %v443 = vld [vmem:[%s6 + $0x50] sm:$0xff]
        %v444 = vld [vmem:[%s6 + $0x58] sm:$0xff]
        %v445 = vld [vmem:[%s6 + $0x60] sm:$0xff]
        %v446 = vld [vmem:[%s6 + $0x68] sm:$0xff]
        %v447 = vld [vmem:[%s6 + $0x70] sm:$0xff]
        %v448 = vld [vmem:[%s6 + $0x78] sm:$0xff]
        %v449 = vld [vmem:[%s6 + $0x80] sm:$0xff]
        %v450 = vld [vmem:[%s6 + $0x88] sm:$0xff]
        %v451 = vld [vmem:[%s6 + $0x90] sm:$0xff]
        %v452 = vld [vmem:[%s6 + $0x98] sm:$0xff]
        %v453 = vld [vmem:[%s6 + $0xa0] sm:$0xff]
        %v454 = vld [vmem:[%s6 + $0xa8] sm:$0xff]
        %v455 = vld [vmem:[%s6 + $0xb0] sm:$0xff]
        %v456 = vld [vmem:[%s6 + $0xb8] sm:$0xff]
        %v457 = vld [vmem:[%s6 + $0xc0] sm:$0xff]
        %v458 = vld [vmem:[%s6 + $0xc8] sm:$0xff]
        %v459 = vld [vmem:[%s6 + $0xd0] sm:$0xff]
        %v460 = vld [vmem:[%s6 + $0xd8] sm:$0xff]
        %v461 = vld [vmem:[%s6 + $0xe0] sm:$0xff]
        %v462 = vld [vmem:[%s6 + $0xe8] sm:$0xff]
        %v463 = vld [vmem:[%s6 + $0xf0] sm:$0xff]
        %v464 = vld [vmem:[%s6 + $0xf8] sm:$0xff]
        %465 = vmatprep.subr.mxu0 0.0
        %466 = vmatpush1.msra.mxu0 %v433
        %467 = vmatprep.subr.mxu0 0.0
        %468 = vmatpush1.msra.mxu0 %v434
        %469 = vmatprep.subr.mxu0 0.0
        %470 = vmatpush1.msra.mxu0 %v435
        %471 = vmatprep.subr.mxu0 0.0
        %472 = vmatpush1.msra.mxu0 %v436
        %473 = vmatprep.subr.mxu0 0.0
        %474 = vmatpush1.msra.mxu0 %v437
        %475 = vmatprep.subr.mxu0 0.0
        %476 = vmatpush1.msra.mxu0 %v438
        %477 = vmatprep.subr.mxu0 0.0
        %478 = vmatpush1.msra.mxu0 %v439
        %479 = vmatprep.subr.mxu0 0.0
        %480 = vmatpush1.msra.mxu0 %v440
        %481 = vmatprep.subr.mxu0 0.0
        %482 = vmatpush1.msra.mxu0 %v441
        %483 = vmatprep.subr.mxu0 0.0
        %484 = vmatpush1.msra.mxu0 %v442
        %485 = vmatprep.subr.mxu0 0.0
        %486 = vmatpush1.msra.mxu0 %v443
        %487 = vmatprep.subr.mxu0 0.0
        %488 = vmatpush1.msra.mxu0 %v444
        %489 = vmatprep.subr.mxu0 0.0
        %490 = vmatpush1.msra.mxu0 %v445
        %491 = vmatprep.subr.mxu0 0.0
        %492 = vmatpush1.msra.mxu0 %v446
        %493 = vmatprep.subr.mxu0 0.0
        %494 = vmatpush1.msra.mxu0 %v447
        %495 = vmatprep.subr.mxu0 0.0
        %496 = vmatpush1.msra.mxu0 %v448
        %497 = vmatprep.subr.mxu0 0.0
        %498 = vmatpush1.msra.mxu0 %v449
        %499 = vmatprep.subr.mxu0 0.0
        %500 = vmatpush1.msra.mxu0 %v450
        %501 = vmatprep.subr.mxu0 0.0
        %502 = vmatpush1.msra.mxu0 %v451
        %503 = vmatprep.subr.mxu0 0.0
        %504 = vmatpush1.msra.mxu0 %v452
        %505 = vmatprep.subr.mxu0 0.0
        %506 = vmatpush1.msra.mxu0 %v453
        %507 = vmatprep.subr.mxu0 0.0
        %508 = vmatpush1.msra.mxu0 %v454
        %509 = vmatprep.subr.mxu0 0.0
        %510 = vmatpush1.msra.mxu0 %v455
        %511 = vmatprep.subr.mxu0 0.0
        %512 = vmatpush1.msra.mxu0 %v456
        %513 = vmatprep.subr.mxu0 0.0
        %514 = vmatpush1.msra.mxu0 %v457
        %515 = vmatprep.subr.mxu0 0.0
        %516 = vmatpush1.msra.mxu0 %v458
        %517 = vmatprep.subr.mxu0 0.0
        %518 = vmatpush1.msra.mxu0 %v459
        %519 = vmatprep.subr.mxu0 0.0
        %520 = vmatpush1.msra.mxu0 %v460
        %521 = vmatprep.subr.mxu0 0.0
        %522 = vmatpush1.msra.mxu0 %v461
        %523 = vmatprep.subr.mxu0 0.0
        %524 = vmatpush1.msra.mxu0 %v462
        %525 = vmatprep.subr.mxu0 0.0
        %526 = vmatpush1.msra.mxu0 %v463
        %527 = vmatprep.subr.mxu0 0.0
        %528 = vmatpush1.msra.mxu0 %v464
        %529 = vmatprep.mubr.f32.mxu0 %v432
        %530 = vmatmul.mubr.f32.gmra.mrb[0].mxu0 %v429
        %v531 = vpop.f32.mrb[0].mxu0
        %v532 = vadd.f32 0.0, %v531
        %v533 = vpop.f32.mrb[0].mxu0
        %534 = vdwg.mxu0
        %v535 = vmul.f32 %v532, 0.001953125
        %v536 = vmul.f32 %v535, %v535
        %v538 = vrot.slane %v536, 7
        %v540 = vsub.f32 %v535, %v538
        %v541 = vmax.f32 %v540, 0.0
        %v542 = vld [vmem:[#allocation2] sm:$0x1]
        %v543 = vadd.f32 %v541, 1e-05
        %v544 = vrsqrt.pop %v543
        %v546 = vrot.slane %v544, 1
        %v548 = vmul.f32 %v542, %v546
        %v549 = vld [vmem:[#allocation2 + $0x1] sm:$0x1]
        %v550 = vmul.f32 %v535, %v548
        %v551 = vsub.f32 %v549, %v550
        %v553 = vrot.slane %v551, 7
        %vm555 = vcmask 1040384
        %v556 = vsel %vm555, %v548, %v553
        %v557 = vld [vmem:[#allocation7] sm:$0xff]
        %v558 = vld [vmem:[#allocation7 + $0x8] sm:$0xff]
        %v559 = vld [vmem:[#allocation7 + $0x10] sm:$0xff]
        %v560 = vld [vmem:[#allocation7 + $0x18] sm:$0xff]
        %vm561 = vcmask 130048
        %v563 = vsel %vm561, %v556, 0
        %565 = vmatprep.subr.mxu0 %v558
        %566 = vmatpush1.msra.mxu0 %v557
        %567 = vmatprep.subr.mxu0 %v560
        %568 = vmatpush1.msra.mxu0 %v559
        %569 = vmatprep.subr.mxu0 0.0
        %570 = vmatpush1.msra.mxu0 0.0
        %571 = vmatprep.subr.mxu0 0.0
        %572 = vmatpush1.msra.mxu0 0.0
        %573 = vmatprep.subr.mxu0 0.0
        %574 = vmatpush1.msra.mxu0 0.0
        %575 = vmatprep.subr.mxu0 0.0
        %576 = vmatpush1.msra.mxu0 0.0
        %577 = vmatprep.subr.mxu0 0.0
        %578 = vmatpush1.msra.mxu0 0.0
        %579 = vmatprep.subr.mxu0 0.0
        %580 = vmatpush1.msra.mxu0 0.0
        %581 = vmatprep.subr.mxu0 0.0
        %582 = vmatpush1.msra.mxu0 0.0
        %583 = vmatprep.subr.mxu0 0.0
        %584 = vmatpush1.msra.mxu0 0.0
        %585 = vmatprep.subr.mxu0 0.0
        %586 = vmatpush1.msra.mxu0 0.0
        %587 = vmatprep.subr.mxu0 0.0
        %588 = vmatpush1.msra.mxu0 0.0
        %589 = vmatprep.subr.mxu0 0.0
        %590 = vmatpush1.msra.mxu0 0.0
        %591 = vmatprep.subr.mxu0 0.0
        %592 = vmatpush1.msra.mxu0 0.0
        %593 = vmatprep.subr.mxu0 0.0
        %594 = vmatpush1.msra.mxu0 0.0
        %595 = vmatprep.subr.mxu0 0.0
        %596 = vmatpush1.msra.mxu0 0.0
        %597 = vmatprep.subr.mxu0 0.0
        %598 = vmatpush1.msra.mxu0 0.0
        %599 = vmatprep.subr.mxu0 0.0
        %600 = vmatpush1.msra.mxu0 0.0
        %601 = vmatprep.subr.mxu0 0.0
        %602 = vmatpush1.msra.mxu0 0.0
        %603 = vmatprep.subr.mxu0 0.0
        %604 = vmatpush1.msra.mxu0 0.0
        %605 = vmatprep.subr.mxu0 0.0
        %606 = vmatpush1.msra.mxu0 0.0
        %607 = vmatprep.subr.mxu0 0.0
        %608 = vmatpush1.msra.mxu0 0.0
        %609 = vmatprep.subr.mxu0 0.0
        %610 = vmatpush1.msra.mxu0 0.0
        %611 = vmatprep.subr.mxu0 0.0
        %612 = vmatpush1.msra.mxu0 0.0
        %613 = vmatprep.subr.mxu0 0.0
        %614 = vmatpush1.msra.mxu0 0.0
        %615 = vmatprep.subr.mxu0 0.0
        %616 = vmatpush1.msra.mxu0 0.0
        %617 = vmatprep.subr.mxu0 0.0
        %618 = vmatpush1.msra.mxu0 0.0
        %619 = vmatprep.subr.mxu0 0.0
        %620 = vmatpush1.msra.mxu0 0.0
        %621 = vmatprep.subr.mxu0 0.0
        %622 = vmatpush1.msra.mxu0 0.0
        %623 = vmatprep.subr.mxu0 0.0
        %624 = vmatpush1.msra.mxu0 0.0
        %625 = vmatprep.subr.mxu0 0.0
        %626 = vmatpush1.msra.mxu0 0.0
        %627 = vmatprep.subr.mxu0 0.0
        %628 = vmatpush1.msra.mxu0 0.0
        %629 = vmatprep.mubr.f32.mxu0 0.0
        %630 = vmatmul.mubr.f32.gmra.mrb[0].mxu0 %v563
        %v631 = vpop.f32.mrb[0].mxu0
        %v632 = vadd.f32 0.0, %v631
        %v633 = vpop.f32.mrb[0].mxu0
        %v634 = vadd.f32 0.0, %v633
        %635 = vdwg.mxu0
        %v636 = vld [vmem:[%s396] sm:$0xff]
        %v637 = vld [vmem:[%s396 + $0x8] sm:$0xff]
        %v638 = vld [vmem:[%s396 + $0x10] sm:$0xff]
        %v639 = vld [vmem:[%s396 + $0x18] sm:$0xff]
        %v640 = vlaneseq
        %v641 = vshrl.u32 %v640, 7
        %v642 = vsub.s32 0, %v641
        %v643 = vrot.slane %v632, %v642
        %v644 = vlaneseq
        %v645 = vshrl.u32 %v644, 7
        %v646 = vsub.s32 0, %v645
        %v647 = vrot.slane %v634, %v646
        %v648 = vmul.f32 %v636, %v643
        %v649 = vmul.f32 %v637, %v647
        %v650 = vmul.f32 %v638, %v643
        %v651 = vmul.f32 %v639, %v647
        %v652 = vlaneseq
        %v653 = vshrl.u32 %v652, 7
        %v654 = vsub.s32 1, %v653
        %v655 = vrot.slane %v632, %v654
        %v656 = vlaneseq
        %v657 = vshrl.u32 %v656, 7
        %v658 = vsub.s32 1, %v657
        %v659 = vrot.slane %v634, %v658
        %v660 = vadd.f32 %v648, %v655
        %v661 = vadd.f32 %v649, %v659
        %v662 = vadd.f32 %v650, %v655
        %v663 = vadd.f32 %v651, %v659
        %v664 = vadd.f32 %v660, %v662
        %v665 = vrot.slane %v664, 4
        %v666 = vadd.f32 %v664, %v665
        %v667 = vrot.slane %v666, 2
        %v668 = vadd.f32 %v666, %v667
        %v669 = vrot.slane %v668, 1
        %v670 = vadd.f32 %v668, %v669
        %v671 = vadd.f32 %v661, %v663
        %v672 = vrot.slane %v671, 4
        %v673 = vadd.f32 %v671, %v672
        %v674 = vrot.slane %v673, 2
        %v675 = vadd.f32 %v673, %v674
        %v676 = vrot.slane %v675, 1
        %v677 = vadd.f32 %v675, %v676
        %v678 = vmax.f32 %v660, %v662
        %v679 = vrot.slane %v678, 4
        %v680 = vmax.f32 %v678, %v679
        %v681 = vrot.slane %v680, 2
        %v682 = vmax.f32 %v680, %v681
        %v683 = vrot.slane %v682, 1
        %v684 = vmax.f32 %v682, %v683
        %v685 = vmax.f32 %v661, %v663
        %v686 = vrot.slane %v685, 4
        %v687 = vmax.f32 %v685, %v686
        %v688 = vrot.slane %v687, 2
        %v689 = vmax.f32 %v687, %v688
        %v690 = vrot.slane %v689, 1
        %v691 = vmax.f32 %v689, %v690
        %692 = vmatprep.subr.mxu0 0.0
        %693 = vmatpush1.msra.mxu0 %v433
        %694 = vmatprep.subr.mxu0 0.0
        %695 = vmatpush1.msra.mxu0 %v434
        %696 = vmatprep.subr.mxu0 0.0
        %697 = vmatpush1.msra.mxu0 %v435
        %698 = vmatprep.subr.mxu0 0.0
        %699 = vmatpush1.msra.mxu0 %v436
        %700 = vmatprep.subr.mxu0 0.0
        %701 = vmatpush1.msra.mxu0 %v437
        %702 = vmatprep.subr.mxu0 0.0
        %703 = vmatpush1.msra.mxu0 %v438
        %704 = vmatprep.subr.mxu0 0.0
        %705 = vmatpush1.msra.mxu0 %v439
        %706 = vmatprep.subr.mxu0 0.0
        %707 = vmatpush1.msra.mxu0 %v440
        %708 = vmatprep.subr.mxu0 0.0
        %709 = vmatpush1.msra.mxu0 %v441
        %710 = vmatprep.subr.mxu0 0.0
        %711 = vmatpush1.msra.mxu0 %v442
        %712 = vmatprep.subr.mxu0 0.0
        %713 = vmatpush1.msra.mxu0 %v443
        %714 = vmatprep.subr.mxu0 0.0
        %715 = vmatpush1.msra.mxu0 %v444
        %716 = vmatprep.subr.mxu0 0.0
        %717 = vmatpush1.msra.mxu0 %v445
        %718 = vmatprep.subr.mxu0 0.0
        %719 = vmatpush1.msra.mxu0 %v446
        %720 = vmatprep.subr.mxu0 0.0
        %721 = vmatpush1.msra.mxu0 %v447
        %722 = vmatprep.subr.mxu0 0.0
        %723 = vmatpush1.msra.mxu0 %v448
        %724 = vmatprep.subr.mxu0 0.0
        %725 = vmatpush1.msra.mxu0 %v449
        %726 = vmatprep.subr.mxu0 0.0
        %727 = vmatpush1.msra.mxu0 %v450
        %728 = vmatprep.subr.mxu0 0.0
        %729 = vmatpush1.msra.mxu0 %v451
        %730 = vmatprep.subr.mxu0 0.0
        %731 = vmatpush1.msra.mxu0 %v452
        %732 = vmatprep.subr.mxu0 0.0
        %733 = vmatpush1.msra.mxu0 %v453
        %734 = vmatprep.subr.mxu0 0.0
        %735 = vmatpush1.msra.mxu0 %v454
        %736 = vmatprep.subr.mxu0 0.0
        %737 = vmatpush1.msra.mxu0 %v455
        %738 = vmatprep.subr.mxu0 0.0
        %739 = vmatpush1.msra.mxu0 %v456
        %740 = vmatprep.subr.mxu0 0.0
        %741 = vmatpush1.msra.mxu0 %v457
        %742 = vmatprep.subr.mxu0 0.0
        %743 = vmatpush1.msra.mxu0 %v458
        %744 = vmatprep.subr.mxu0 0.0
        %745 = vmatpush1.msra.mxu0 %v459
        %746 = vmatprep.subr.mxu0 0.0
        %747 = vmatpush1.msra.mxu0 %v460
        %748 = vmatprep.subr.mxu0 0.0
        %749 = vmatpush1.msra.mxu0 %v461
        %750 = vmatprep.subr.mxu0 0.0
        %751 = vmatpush1.msra.mxu0 %v462
        %752 = vmatprep.subr.mxu0 0.0
        %753 = vmatpush1.msra.mxu0 %v463
        %754 = vmatprep.subr.mxu0 0.0
        %755 = vmatpush1.msra.mxu0 %v464
        %756 = vmatprep.mubr.f32.mxu0 %v677
        %757 = vmatmul.mubr.f32.gmra.mrb[0].mxu0 %v670
        %v758 = vpop.f32.mrb[0].mxu0
        %v759 = vadd.f32 0.0, %v758
        %v760 = vpop.f32.mrb[0].mxu0
        %761 = vdwg.mxu0
        %v762 = vmul.f32 %v759, 0.00390625
        %764 = vrot.lane.b32.xlu0 %v691, 16
        %v765 = vpop.permute.xlu0 %764
        %768 = vrot.lane.b32.xlu0 %v684, 16
        %v769 = vpop.permute.xlu0 %768
        %v770 = vsel %vm561, %v769, %v765
        %v773 = vsel %vm561, %v765, %v769
        %v774 = vmax.f32 %v684, %v773
        %v775 = vmax.f32 %v691, %v770
        %777 = vrot.lane.b32.xlu0 %v775, 32
        %v778 = vpop.permute.xlu0 %777
        %781 = vrot.lane.b32.xlu0 %v774, 32
        %v782 = vpop.permute.xlu0 %781
        %vm783 = vcmask 261120
        %v784 = vsel %vm783, %v782, %v778
        %v787 = vsel %vm783, %v778, %v782
        %v788 = vmax.f32 %v774, %v787
        %v789 = vmax.f32 %v775, %v784
        %791 = vrot.lane.b32.xlu0 %v789, 64
        %v792 = vpop.permute.xlu0 %791
        %795 = vrot.lane.b32.xlu0 %v788, 64
        %v796 = vpop.permute.xlu0 %795
        %vm797 = vcmask 523264
        %v798 = vsel %vm797, %v796, %v792
        %v801 = vsel %vm797, %v792, %v796
        %v802 = vmax.f32 %v788, %v801
        %v803 = vmax.f32 %v789, %v798
        %v804 = vmax.f32 %v802, %v803
        %v806 = vrot.slane %v804, 7
        %v808 = vsel %vm555, %v762, %v806
        %v809 = vld [vmem:[%s3] sm:$0xff]
        %v810 = vld [vmem:[%s3 + $0x8] sm:$0xff]
        %v812 = vsel %vm561, %v808, 0
        %814 = vmatprep.subr.mxu0 0.0
        %815 = vmatpush1.msra.mxu0 %v809
        %816 = vmatprep.subr.mxu0 0.0
        %817 = vmatpush1.msra.mxu0 %v810
        %818 = vmatprep.subr.mxu0 0.0
        %819 = vmatpush1.msra.mxu0 0.0
        %820 = vmatprep.subr.mxu0 0.0
        %821 = vmatpush1.msra.mxu0 0.0
        %822 = vmatprep.subr.mxu0 0.0
        %823 = vmatpush1.msra.mxu0 0.0
        %824 = vmatprep.subr.mxu0 0.0
        %825 = vmatpush1.msra.mxu0 0.0
        %826 = vmatprep.subr.mxu0 0.0
        %827 = vmatpush1.msra.mxu0 0.0
        %828 = vmatprep.subr.mxu0 0.0
        %829 = vmatpush1.msra.mxu0 0.0
        %830 = vmatprep.subr.mxu0 0.0
        %831 = vmatpush1.msra.mxu0 0.0
        %832 = vmatprep.subr.mxu0 0.0
        %833 = vmatpush1.msra.mxu0 0.0
        %834 = vmatprep.subr.mxu0 0.0
        %835 = vmatpush1.msra.mxu0 0.0
        %836 = vmatprep.subr.mxu0 0.0
        %837 = vmatpush1.msra.mxu0 0.0
        %838 = vmatprep.subr.mxu0 0.0
        %839 = vmatpush1.msra.mxu0 0.0
        %840 = vmatprep.subr.mxu0 0.0
        %841 = vmatpush1.msra.mxu0 0.0
        %842 = vmatprep.subr.mxu0 0.0
        %843 = vmatpush1.msra.mxu0 0.0
        %844 = vmatprep.subr.mxu0 0.0
        %845 = vmatpush1.msra.mxu0 0.0
        %846 = vmatprep.subr.mxu0 0.0
        %847 = vmatpush1.msra.mxu0 0.0
        %848 = vmatprep.subr.mxu0 0.0
        %849 = vmatpush1.msra.mxu0 0.0
        %850 = vmatprep.subr.mxu0 0.0
        %851 = vmatpush1.msra.mxu0 0.0
        %852 = vmatprep.subr.mxu0 0.0
        %853 = vmatpush1.msra.mxu0 0.0
        %854 = vmatprep.subr.mxu0 0.0
        %855 = vmatpush1.msra.mxu0 0.0
        %856 = vmatprep.subr.mxu0 0.0
        %857 = vmatpush1.msra.mxu0 0.0
        %858 = vmatprep.subr.mxu0 0.0
        %859 = vmatpush1.msra.mxu0 0.0
        %860 = vmatprep.subr.mxu0 0.0
        %861 = vmatpush1.msra.mxu0 0.0
        %862 = vmatprep.subr.mxu0 0.0
        %863 = vmatpush1.msra.mxu0 0.0
        %864 = vmatprep.subr.mxu0 0.0
        %865 = vmatpush1.msra.mxu0 0.0
        %866 = vmatprep.subr.mxu0 0.0
        %867 = vmatpush1.msra.mxu0 0.0
        %868 = vmatprep.subr.mxu0 0.0
        %869 = vmatpush1.msra.mxu0 0.0
        %870 = vmatprep.subr.mxu0 0.0
        %871 = vmatpush1.msra.mxu0 0.0
        %872 = vmatprep.subr.mxu0 0.0
        %873 = vmatpush1.msra.mxu0 0.0
        %874 = vmatprep.subr.mxu0 0.0
        %875 = vmatpush1.msra.mxu0 0.0
        %876 = vmatprep.subr.mxu0 0.0
        %877 = vmatpush1.msra.mxu0 0.0
        %878 = vmatprep.mubr.f32.mxu0 0.0
        %879 = vmatmul.mubr.f32.gmra.mrb[0].mxu0 %v812
        %v880 = vpop.f32.mrb[0].mxu0
        %v881 = vadd.f32 0.0, %v880
        %v882 = vpop.f32.mrb[0].mxu0
        %883 = vdwg.mxu0
        %v884 = vmax.f32 %v881, 0.0
        %v885 = vld [vmem:[#allocation4] sm:$0x3]
        %vm886 = vcmask 15360
        %v888 = vsel %vm886, %v884, 0
        %v891 = vsel %vm426, %v885, 0
        %893 = vmatprep.subr.mxu0 0.0
        %894 = vmatpush1.msra.mxu0 %v891
        %895 = vmatprep.subr.mxu0 0.0
        %896 = vmatpush1.msra.mxu0 0.0
        %897 = vmatprep.subr.mxu0 0.0
        %898 = vmatpush1.msra.mxu0 0.0
        %899 = vmatprep.subr.mxu0 0.0
        %900 = vmatpush1.msra.mxu0 0.0
        %901 = vmatprep.subr.mxu0 0.0
        %902 = vmatpush1.msra.mxu0 0.0
        %903 = vmatprep.subr.mxu0 0.0
        %904 = vmatpush1.msra.mxu0 0.0
        %905 = vmatprep.subr.mxu0 0.0
        %906 = vmatpush1.msra.mxu0 0.0
        %907 = vmatprep.subr.mxu0 0.0
        %908 = vmatpush1.msra.mxu0 0.0
        %909 = vmatprep.subr.mxu0 0.0
        %910 = vmatpush1.msra.mxu0 0.0
        %911 = vmatprep.subr.mxu0 0.0
        %912 = vmatpush1.msra.mxu0 0.0
        %913 = vmatprep.subr.mxu0 0.0
        %914 = vmatpush1.msra.mxu0 0.0
        %915 = vmatprep.subr.mxu0 0.0
        %916 = vmatpush1.msra.mxu0 0.0
        %917 = vmatprep.subr.mxu0 0.0
        %918 = vmatpush1.msra.mxu0 0.0
        %919 = vmatprep.subr.mxu0 0.0
        %920 = vmatpush1.msra.mxu0 0.0
        %921 = vmatprep.subr.mxu0 0.0
        %922 = vmatpush1.msra.mxu0 0.0
        %923 = vmatprep.subr.mxu0 0.0
        %924 = vmatpush1.msra.mxu0 0.0
        %925 = vmatprep.subr.mxu0 0.0
        %926 = vmatpush1.msra.mxu0 0.0
        %927 = vmatprep.subr.mxu0 0.0
        %928 = vmatpush1.msra.mxu0 0.0
        %929 = vmatprep.subr.mxu0 0.0
        %930 = vmatpush1.msra.mxu0 0.0
        %931 = vmatprep.subr.mxu0 0.0
        %932 = vmatpush1.msra.mxu0 0.0
        %933 = vmatprep.subr.mxu0 0.0
        %934 = vmatpush1.msra.mxu0 0.0
        %935 = vmatprep.subr.mxu0 0.0
        %936 = vmatpush1.msra.mxu0 0.0
        %937 = vmatprep.subr.mxu0 0.0
        %938 = vmatpush1.msra.mxu0 0.0
        %939 = vmatprep.subr.mxu0 0.0
        %940 = vmatpush1.msra.mxu0 0.0
        %941 = vmatprep.subr.mxu0 0.0
        %942 = vmatpush1.msra.mxu0 0.0
        %943 = vmatprep.subr.mxu0 0.0
        %944 = vmatpush1.msra.mxu0 0.0
        %945 = vmatprep.subr.mxu0 0.0
        %946 = vmatpush1.msra.mxu0 0.0
        %947 = vmatprep.subr.mxu0 0.0
        %948 = vmatpush1.msra.mxu0 0.0
        %949 = vmatprep.subr.mxu0 0.0
        %950 = vmatpush1.msra.mxu0 0.0
        %951 = vmatprep.subr.mxu0 0.0
        %952 = vmatpush1.msra.mxu0 0.0
        %953 = vmatprep.subr.mxu0 0.0
        %954 = vmatpush1.msra.mxu0 0.0
        %955 = vmatprep.subr.mxu0 0.0
        %956 = vmatpush1.msra.mxu0 0.0
        %957 = vmatprep.mubr.f32.mxu0 0.0
        %958 = vmatmul.mubr.f32.gmra.mrb[0].mxu0 %v888
        %v959 = vpop.f32.mrb[0].mxu0
        %v960 = vadd.f32 0.0, %v959
        %v961 = vpop.f32.mrb[0].mxu0
        %962 = vdwg.mxu0
        %v964 = vrot.slane %v960, 1
        %v966 = vadd.f32 %v960, %v964
        %v967 = vxor.u32 %v966, 2147483648
        %v968 = vmul.f32 %v967, 1.442695
        %v969 = vpow.pop %v968
        %v970 = vadd.f32 %v969, 1.0
        %v971 = vrcp.pop %v970
        %v972 = vmul.f32 1.0, %v971
        %v974 = vsel %vm561, %v972, 0
        %976 = vmatprep.subr.mxu0 %v558
        %977 = vmatpush1.msra.mxu0 %v557
        %978 = vmatprep.subr.mxu0 %v560
        %979 = vmatpush1.msra.mxu0 %v559
        %980 = vmatprep.subr.mxu0 0.0
        %981 = vmatpush1.msra.mxu0 0.0
        %982 = vmatprep.subr.mxu0 0.0
        %983 = vmatpush1.msra.mxu0 0.0
        %984 = vmatprep.subr.mxu0 0.0
        %985 = vmatpush1.msra.mxu0 0.0
        %986 = vmatprep.subr.mxu0 0.0
        %987 = vmatpush1.msra.mxu0 0.0
        %988 = vmatprep.subr.mxu0 0.0
        %989 = vmatpush1.msra.mxu0 0.0
        %990 = vmatprep.subr.mxu0 0.0
        %991 = vmatpush1.msra.mxu0 0.0
        %992 = vmatprep.subr.mxu0 0.0
        %993 = vmatpush1.msra.mxu0 0.0
        %994 = vmatprep.subr.mxu0 0.0
        %995 = vmatpush1.msra.mxu0 0.0
        %996 = vmatprep.subr.mxu0 0.0
        %997 = vmatpush1.msra.mxu0 0.0
        %998 = vmatprep.subr.mxu0 0.0
        %999 = vmatpush1.msra.mxu0 0.0
        %1000 = vmatprep.subr.mxu0 0.0
        %1001 = vmatpush1.msra.mxu0 0.0
        %1002 = vmatprep.subr.mxu0 0.0
        %1003 = vmatpush1.msra.mxu0 0.0
        %1004 = vmatprep.subr.mxu0 0.0
        %1005 = vmatpush1.msra.mxu0 0.0
        %1006 = vmatprep.subr.mxu0 0.0
        %1007 = vmatpush1.msra.mxu0 0.0
        %1008 = vmatprep.subr.mxu0 0.0
        %1009 = vmatpush1.msra.mxu0 0.0
        %1010 = vmatprep.subr.mxu0 0.0
        %1011 = vmatpush1.msra.mxu0 0.0
        %1012 = vmatprep.subr.mxu0 0.0
        %1013 = vmatpush1.msra.mxu0 0.0
        %1014 = vmatprep.subr.mxu0 0.0
        %1015 = vmatpush1.msra.mxu0 0.0
        %1016 = vmatprep.subr.mxu0 0.0
        %1017 = vmatpush1.msra.mxu0 0.0
        %1018 = vmatprep.subr.mxu0 0.0
        %1019 = vmatpush1.msra.mxu0 0.0
        %1020 = vmatprep.subr.mxu0 0.0
        %1021 = vmatpush1.msra.mxu0 0.0
        %1022 = vmatprep.subr.mxu0 0.0
        %1023 = vmatpush1.msra.mxu0 0.0
        %1024 = vmatprep.subr.mxu0 0.0
        %1025 = vmatpush1.msra.mxu0 0.0
        %1026 = vmatprep.subr.mxu0 0.0
        %1027 = vmatpush1.msra.mxu0 0.0
        %1028 = vmatprep.subr.mxu0 0.0
        %1029 = vmatpush1.msra.mxu0 0.0
        %1030 = vmatprep.subr.mxu0 0.0
        %1031 = vmatpush1.msra.mxu0 0.0
        %1032 = vmatprep.subr.mxu0 0.0
        %1033 = vmatpush1.msra.mxu0 0.0
        %1034 = vmatprep.subr.mxu0 0.0
        %1035 = vmatpush1.msra.mxu0 0.0
        %1036 = vmatprep.subr.mxu0 0.0
        %1037 = vmatpush1.msra.mxu0 0.0
        %1038 = vmatprep.subr.mxu0 0.0
        %1039 = vmatpush1.msra.mxu0 0.0
        %1040 = vmatprep.mubr.f32.mxu0 0.0
        %1041 = vmatmul.mubr.f32.gmra.mrb[0].mxu0 %v974
        %v1042 = vpop.f32.mrb[0].mxu0
        %v1043 = vadd.f32 0.0, %v1042
        %v1044 = vpop.f32.mrb[0].mxu0
        %v1045 = vadd.f32 0.0, %v1044
        %1046 = vdwg.mxu0
        %v1047 = vlaneseq
        %v1048 = vshrl.u32 %v1047, 7
        %v1049 = vsub.s32 0, %v1048
        %v1050 = vrot.slane %v1043, %v1049
        %v1051 = vlaneseq
        %v1052 = vshrl.u32 %v1051, 7
        %v1053 = vsub.s32 0, %v1052
        %v1054 = vrot.slane %v1045, %v1053
        %v1055 = vmul.f32 %v660, %v1050
        %v1056 = vmul.f32 %v661, %v1054
        %v1057 = vmul.f32 %v662, %v1050
        %v1058 = vmul.f32 %v663, %v1054
        %1061 = vrot.lane.b32.xlu0 %v1056, 1
        %v1062 = vpop.permute.xlu0 %1061
        %1063 = vrot.lane.b32.xlu0 %v1058, 1
        %v1064 = vpop.permute.xlu0 %1063
        %1069 = vrot.lane.b32.xlu0 %v1055, 1
        %v1070 = vpop.permute.xlu0 %1069
        %1071 = vrot.lane.b32.xlu0 %v1057, 1
        %v1072 = vpop.permute.xlu0 %1071
        %vm1073 = vcmask 7168
        %v1074 = vsel %vm1073, %v1070, %v1062
        %v1075 = vsel %vm1073, %v1072, %v1064
        %v1080 = vsel %vm1073, %v1062, %v1070
        %v1081 = vsel %vm1073, %v1064, %v1072
        %v1082 = vmax.f32 %v1055, %v1080
        %v1083 = vmax.f32 %v1056, %v1074
        %v1084 = vmax.f32 %v1057, %v1081
        %v1085 = vmax.f32 %v1058, %v1075
        %1088 = vrot.lane.b32.xlu0 %v1083, 2
        %v1089 = vpop.permute.xlu0 %1088
        %1090 = vrot.lane.b32.xlu0 %v1085, 2
        %v1091 = vpop.permute.xlu0 %1090
        %1096 = vrot.lane.b32.xlu0 %v1082, 2
        %v1097 = vpop.permute.xlu0 %1096
        %1098 = vrot.lane.b32.xlu0 %v1084, 2
        %v1099 = vpop.permute.xlu0 %1098
        %v1100 = vsel %vm886, %v1097, %v1089
        %v1101 = vsel %vm886, %v1099, %v1091
        %v1106 = vsel %vm886, %v1089, %v1097
        %v1107 = vsel %vm886, %v1091, %v1099
        %v1108 = vmax.f32 %v1082, %v1106
        %v1109 = vmax.f32 %v1083, %v1100
        %v1110 = vmax.f32 %v1084, %v1107
        %v1111 = vmax.f32 %v1085, %v1101
        %1114 = vrot.lane.b32.xlu0 %v1109, 4
        %v1115 = vpop.permute.xlu0 %1114
        %1116 = vrot.lane.b32.xlu0 %v1111, 4
        %v1117 = vpop.permute.xlu0 %1116
        %1122 = vrot.lane.b32.xlu0 %v1108, 4
        %v1123 = vpop.permute.xlu0 %1122
        %1124 = vrot.lane.b32.xlu0 %v1110, 4
        %v1125 = vpop.permute.xlu0 %1124
        %vm1126 = vcmask 31744
        %v1127 = vsel %vm1126, %v1123, %v1115
        %v1128 = vsel %vm1126, %v1125, %v1117
        %v1133 = vsel %vm1126, %v1115, %v1123
        %v1134 = vsel %vm1126, %v1117, %v1125
        %v1135 = vmax.f32 %v1108, %v1133
        %v1136 = vmax.f32 %v1109, %v1127
        %v1137 = vmax.f32 %v1110, %v1134
        %v1138 = vmax.f32 %v1111, %v1128
        %1141 = vrot.lane.b32.xlu0 %v1136, 8
        %v1142 = vpop.permute.xlu0 %1141
        %1143 = vrot.lane.b32.xlu0 %v1138, 8
        %v1144 = vpop.permute.xlu0 %1143
        %1149 = vrot.lane.b32.xlu0 %v1135, 8
        %v1150 = vpop.permute.xlu0 %1149
        %1151 = vrot.lane.b32.xlu0 %v1137, 8
        %v1152 = vpop.permute.xlu0 %1151
        %vm1153 = vcmask 64512
        %v1154 = vsel %vm1153, %v1150, %v1142
        %v1155 = vsel %vm1153, %v1152, %v1144
        %v1160 = vsel %vm1153, %v1142, %v1150
        %v1161 = vsel %vm1153, %v1144, %v1152
        %v1162 = vmax.f32 %v1135, %v1160
        %v1163 = vmax.f32 %v1136, %v1154
        %v1164 = vmax.f32 %v1137, %v1161
        %v1165 = vmax.f32 %v1138, %v1155
        %v1166 = vld [vmem:[#allocation9] sm:$0xff]
        %v1167 = vld [vmem:[#allocation9 + $0x8] sm:$0xff]
        %v1168 = vld [vmem:[#allocation9 + $0x10] sm:$0xff]
        %v1169 = vld [vmem:[#allocation9 + $0x18] sm:$0xff]
        %v1170 = vld [vmem:[#allocation9 + $0x20] sm:$0xff]
        %v1171 = vld [vmem:[#allocation9 + $0x28] sm:$0xff]
        %v1172 = vld [vmem:[#allocation9 + $0x30] sm:$0xff]
        %v1173 = vld [vmem:[#allocation9 + $0x38] sm:$0xff]
        %v1174 = vld [vmem:[#allocation9 + $0x40] sm:$0xff]
        %v1175 = vld [vmem:[#allocation9 + $0x48] sm:$0xff]
        %v1176 = vld [vmem:[#allocation9 + $0x50] sm:$0xff]
        %v1177 = vld [vmem:[#allocation9 + $0x58] sm:$0xff]
        %v1178 = vld [vmem:[#allocation9 + $0x60] sm:$0xff]
        %v1179 = vld [vmem:[#allocation9 + $0x68] sm:$0xff]
        %v1180 = vld [vmem:[#allocation9 + $0x70] sm:$0xff]
        %v1181 = vld [vmem:[#allocation9 + $0x78] sm:$0xff]
        %v1182 = vld [vmem:[#allocation9 + $0x80] sm:$0xff]
        %v1183 = vld [vmem:[#allocation9 + $0x88] sm:$0xff]
        %v1184 = vld [vmem:[#allocation9 + $0x90] sm:$0xff]
        %v1185 = vld [vmem:[#allocation9 + $0x98] sm:$0xff]
        %v1186 = vld [vmem:[#allocation9 + $0xa0] sm:$0xff]
        %v1187 = vld [vmem:[#allocation9 + $0xa8] sm:$0xff]
        %v1188 = vld [vmem:[#allocation9 + $0xb0] sm:$0xff]
        %v1189 = vld [vmem:[#allocation9 + $0xb8] sm:$0xff]
        %v1190 = vld [vmem:[#allocation9 + $0xc0] sm:$0xff]
        %v1191 = vld [vmem:[#allocation9 + $0xc8] sm:$0xff]
        %v1192 = vld [vmem:[#allocation9 + $0xd0] sm:$0xff]
        %v1193 = vld [vmem:[#allocation9 + $0xd8] sm:$0xff]
        %v1194 = vld [vmem:[#allocation9 + $0xe0] sm:$0xff]
        %v1195 = vld [vmem:[#allocation9 + $0xe8] sm:$0xff]
        %v1196 = vld [vmem:[#allocation9 + $0xf0] sm:$0xff]
        %v1197 = vld [vmem:[#allocation9 + $0xf8] sm:$0xff]
        %v1198 = vld [vmem:[#allocation9 + $0x100] sm:$0xff]
        %v1199 = vld [vmem:[#allocation9 + $0x108] sm:$0xff]
        %v1200 = vld [vmem:[#allocation9 + $0x110] sm:$0xff]
        %v1201 = vld [vmem:[#allocation9 + $0x118] sm:$0xff]
        %v1202 = vld [vmem:[#allocation9 + $0x120] sm:$0xff]
        %v1203 = vld [vmem:[#allocation9 + $0x128] sm:$0xff]
        %v1204 = vld [vmem:[#allocation9 + $0x130] sm:$0xff]
        %v1205 = vld [vmem:[#allocation9 + $0x138] sm:$0xff]
        %v1206 = vld [vmem:[#allocation9 + $0x140] sm:$0xff]
        %v1207 = vld [vmem:[#allocation9 + $0x148] sm:$0xff]
        %v1208 = vld [vmem:[#allocation9 + $0x150] sm:$0xff]
        %v1209 = vld [vmem:[#allocation9 + $0x158] sm:$0xff]
        %v1210 = vld [vmem:[#allocation9 + $0x160] sm:$0xff]
        %v1211 = vld [vmem:[#allocation9 + $0x168] sm:$0xff]
        %v1212 = vld [vmem:[#allocation9 + $0x170] sm:$0xff]
        %v1213 = vld [vmem:[#allocation9 + $0x178] sm:$0xff]
        %v1214 = vld [vmem:[#allocation9 + $0x180] sm:$0xff]
        %v1215 = vld [vmem:[#allocation9 + $0x188] sm:$0xff]
        %v1216 = vld [vmem:[#allocation9 + $0x190] sm:$0xff]
        %v1217 = vld [vmem:[#allocation9 + $0x198] sm:$0xff]
        %v1218 = vld [vmem:[#allocation9 + $0x1a0] sm:$0xff]
        %v1219 = vld [vmem:[#allocation9 + $0x1a8] sm:$0xff]
        %v1220 = vld [vmem:[#allocation9 + $0x1b0] sm:$0xff]
        %v1221 = vld [vmem:[#allocation9 + $0x1b8] sm:$0xff]
        %v1222 = vld [vmem:[#allocation9 + $0x1c0] sm:$0xff]
        %v1223 = vld [vmem:[#allocation9 + $0x1c8] sm:$0xff]
        %v1224 = vld [vmem:[#allocation9 + $0x1d0] sm:$0xff]
        %v1225 = vld [vmem:[#allocation9 + $0x1d8] sm:$0xff]
        %v1226 = vld [vmem:[#allocation9 + $0x1e0] sm:$0xff]
        %v1227 = vld [vmem:[#allocation9 + $0x1e8] sm:$0xff]
        %v1228 = vld [vmem:[#allocation9 + $0x1f0] sm:$0xff]
        %v1229 = vld [vmem:[#allocation9 + $0x1f8] sm:$0xff]
        %v1230 = vld [vmem:[#allocation9 + $0x200] sm:$0xff]
        %v1231 = vld [vmem:[#allocation9 + $0x208] sm:$0xff]
        %v1232 = vld [vmem:[#allocation9 + $0x210] sm:$0xff]
        %v1233 = vld [vmem:[#allocation9 + $0x218] sm:$0xff]
        %v1234 = vld [vmem:[#allocation9 + $0x220] sm:$0xff]
        %v1235 = vld [vmem:[#allocation9 + $0x228] sm:$0xff]
        %v1236 = vld [vmem:[#allocation9 + $0x230] sm:$0xff]
        %v1237 = vld [vmem:[#allocation9 + $0x238] sm:$0xff]
        %v1238 = vld [vmem:[#allocation9 + $0x240] sm:$0xff]
        %v1239 = vld [vmem:[#allocation9 + $0x248] sm:$0xff]
        %v1240 = vld [vmem:[#allocation9 + $0x250] sm:$0xff]
        %v1241 = vld [vmem:[#allocation9 + $0x258] sm:$0xff]
        %v1242 = vld [vmem:[#allocation9 + $0x260] sm:$0xff]
        %v1243 = vld [vmem:[#allocation9 + $0x268] sm:$0xff]
        %v1244 = vld [vmem:[#allocation9 + $0x270] sm:$0xff]
        %v1245 = vld [vmem:[#allocation9 + $0x278] sm:$0xff]
        %v1246 = vld [vmem:[#allocation9 + $0x280] sm:$0xff]
        %v1247 = vld [vmem:[#allocation9 + $0x288] sm:$0xff]
        %v1248 = vld [vmem:[#allocation9 + $0x290] sm:$0xff]
        %v1249 = vld [vmem:[#allocation9 + $0x298] sm:$0xff]
        %v1250 = vld [vmem:[#allocation9 + $0x2a0] sm:$0xff]
        %v1251 = vld [vmem:[#allocation9 + $0x2a8] sm:$0xff]
        %v1252 = vld [vmem:[#allocation9 + $0x2b0] sm:$0xff]
        %v1253 = vld [vmem:[#allocation9 + $0x2b8] sm:$0xff]
        %v1254 = vld [vmem:[#allocation9 + $0x2c0] sm:$0xff]
        %v1255 = vld [vmem:[#allocation9 + $0x2c8] sm:$0xff]
        %v1256 = vld [vmem:[#allocation9 + $0x2d0] sm:$0xff]
        %v1257 = vld [vmem:[#allocation9 + $0x2d8] sm:$0xff]
        %v1258 = vld [vmem:[#allocation9 + $0x2e0] sm:$0xff]
        %v1259 = vld [vmem:[#allocation9 + $0x2e8] sm:$0xff]
        %v1260 = vld [vmem:[#allocation9 + $0x2f0] sm:$0xff]
        %v1261 = vld [vmem:[#allocation9 + $0x2f8] sm:$0xff]
        %v1262 = vld [vmem:[#allocation9 + $0x300] sm:$0xff]
        %v1263 = vld [vmem:[#allocation9 + $0x308] sm:$0xff]
        %v1264 = vld [vmem:[#allocation9 + $0x310] sm:$0xff]
        %v1265 = vld [vmem:[#allocation9 + $0x318] sm:$0xff]
        %v1266 = vld [vmem:[#allocation9 + $0x320] sm:$0xff]
        %v1267 = vld [vmem:[#allocation9 + $0x328] sm:$0xff]
        %v1268 = vld [vmem:[#allocation9 + $0x330] sm:$0xff]
        %v1269 = vld [vmem:[#allocation9 + $0x338] sm:$0xff]
        %v1270 = vld [vmem:[#allocation9 + $0x340] sm:$0xff]
        %v1271 = vld [vmem:[#allocation9 + $0x348] sm:$0xff]
        %v1272 = vld [vmem:[#allocation9 + $0x350] sm:$0xff]
        %v1273 = vld [vmem:[#allocation9 + $0x358] sm:$0xff]
        %v1274 = vld [vmem:[#allocation9 + $0x360] sm:$0xff]
        %v1275 = vld [vmem:[#allocation9 + $0x368] sm:$0xff]
        %v1276 = vld [vmem:[#allocation9 + $0x370] sm:$0xff]
        %v1277 = vld [vmem:[#allocation9 + $0x378] sm:$0xff]
        %v1278 = vld [vmem:[#allocation9 + $0x380] sm:$0xff]
        %v1279 = vld [vmem:[#allocation9 + $0x388] sm:$0xff]
        %v1280 = vld [vmem:[#allocation9 + $0x390] sm:$0xff]
        %v1281 = vld [vmem:[#allocation9 + $0x398] sm:$0xff]
        %v1282 = vld [vmem:[#allocation9 + $0x3a0] sm:$0xff]
        %v1283 = vld [vmem:[#allocation9 + $0x3a8] sm:$0xff]
        %v1284 = vld [vmem:[#allocation9 + $0x3b0] sm:$0xff]
        %v1285 = vld [vmem:[#allocation9 + $0x3b8] sm:$0xff]
        %v1286 = vld [vmem:[#allocation9 + $0x3c0] sm:$0xff]
        %v1287 = vld [vmem:[#allocation9 + $0x3c8] sm:$0xff]
        %v1288 = vld [vmem:[#allocation9 + $0x3d0] sm:$0xff]
        %v1289 = vld [vmem:[#allocation9 + $0x3d8] sm:$0xff]
        %v1290 = vld [vmem:[#allocation9 + $0x3e0] sm:$0xff]
        %v1291 = vld [vmem:[#allocation9 + $0x3e8] sm:$0xff]
        %v1292 = vld [vmem:[#allocation9 + $0x3f0] sm:$0xff]
        %v1293 = vld [vmem:[#allocation9 + $0x3f8] sm:$0xff]
        %1294 = vmatprep.subr.mxu0 %v1167
        %1295 = vmatpush1.msra.mxu0 %v1166
        %1296 = vmatprep.subr.mxu0 %v1169
        %1297 = vmatpush1.msra.mxu0 %v1168
        %1298 = vmatprep.subr.mxu0 %v1171
        %1299 = vmatpush1.msra.mxu0 %v1170
        %1300 = vmatprep.subr.mxu0 %v1173
        %1301 = vmatpush1.msra.mxu0 %v1172
        %1302 = vmatprep.subr.mxu0 %v1175
        %1303 = vmatpush1.msra.mxu0 %v1174
        %1304 = vmatprep.subr.mxu0 %v1177
        %1305 = vmatpush1.msra.mxu0 %v1176
        %1306 = vmatprep.subr.mxu0 %v1179
        %1307 = vmatpush1.msra.mxu0 %v1178
        %1308 = vmatprep.subr.mxu0 %v1181
        %1309 = vmatpush1.msra.mxu0 %v1180
        %1310 = vmatprep.subr.mxu0 %v1183
        %1311 = vmatpush1.msra.mxu0 %v1182
        %1312 = vmatprep.subr.mxu0 %v1185
        %1313 = vmatpush1.msra.mxu0 %v1184
        %1314 = vmatprep.subr.mxu0 %v1187
        %1315 = vmatpush1.msra.mxu0 %v1186
        %1316 = vmatprep.subr.mxu0 %v1189
        %1317 = vmatpush1.msra.mxu0 %v1188
        %1318 = vmatprep.subr.mxu0 %v1191
        %1319 = vmatpush1.msra.mxu0 %v1190
        %1320 = vmatprep.subr.mxu0 %v1193
        %1321 = vmatpush1.msra.mxu0 %v1192
        %1322 = vmatprep.subr.mxu0 %v1195
        %1323 = vmatpush1.msra.mxu0 %v1194
        %1324 = vmatprep.subr.mxu0 %v1197
        %1325 = vmatpush1.msra.mxu0 %v1196
        %1326 = vmatprep.subr.mxu0 %v1199
        %1327 = vmatpush1.msra.mxu0 %v1198
        %1328 = vmatprep.subr.mxu0 %v1201
        %1329 = vmatpush1.msra.mxu0 %v1200
        %1330 = vmatprep.subr.mxu0 %v1203
        %1331 = vmatpush1.msra.mxu0 %v1202
        %1332 = vmatprep.subr.mxu0 %v1205
        %1333 = vmatpush1.msra.mxu0 %v1204
        %1334 = vmatprep.subr.mxu0 %v1207
        %1335 = vmatpush1.msra.mxu0 %v1206
        %1336 = vmatprep.subr.mxu0 %v1209
        %1337 = vmatpush1.msra.mxu0 %v1208
        %1338 = vmatprep.subr.mxu0 %v1211
        %1339 = vmatpush1.msra.mxu0 %v1210
        %1340 = vmatprep.subr.mxu0 %v1213
        %1341 = vmatpush1.msra.mxu0 %v1212
        %1342 = vmatprep.subr.mxu0 %v1215
        %1343 = vmatpush1.msra.mxu0 %v1214
        %1344 = vmatprep.subr.mxu0 %v1217
        %1345 = vmatpush1.msra.mxu0 %v1216
        %1346 = vmatprep.subr.mxu0 %v1219
        %1347 = vmatpush1.msra.mxu0 %v1218
        %1348 = vmatprep.subr.mxu0 %v1221
        %1349 = vmatpush1.msra.mxu0 %v1220
        %1350 = vmatprep.subr.mxu0 %v1223
        %1351 = vmatpush1.msra.mxu0 %v1222
        %1352 = vmatprep.subr.mxu0 %v1225
        %1353 = vmatpush1.msra.mxu0 %v1224
        %1354 = vmatprep.subr.mxu0 %v1227
        %1355 = vmatpush1.msra.mxu0 %v1226
        %1356 = vmatprep.subr.mxu0 %v1229
        %1357 = vmatpush1.msra.mxu0 %v1228
        %1358 = vmatprep.mubr.f32.mxu0 %v1056
        %1359 = vmatmul.mubr.f32.gmra.mrb[0].mxu0 %v1055
        %v1360 = vpop.f32.mrb[0].mxu0
        %v1361 = vadd.f32 0.0, %v1360
        %v1362 = vpop.f32.mrb[0].mxu0
        %v1363 = vadd.f32 0.0, %v1362
        %1364 = vmatprep.mubr.f32.mxu0 %v1058
        %1365 = vmatmul.mubr.f32.gmra.mrb[0].mxu0 %v1057
        %v1366 = vpop.f32.mrb[0].mxu0
        %v1367 = vadd.f32 0.0, %v1366
        %v1368 = vpop.f32.mrb[0].mxu0
        %v1369 = vadd.f32 0.0, %v1368
        %1370 = vdwg.mxu0
        %1371 = vmatprep.subr.mxu0 %v1231
        %1372 = vmatpush1.msra.mxu0 %v1230
        %1373 = vmatprep.subr.mxu0 %v1233
        %1374 = vmatpush1.msra.mxu0 %v1232
        %1375 = vmatprep.subr.mxu0 %v1235
        %1376 = vmatpush1.msra.mxu0 %v1234
        %1377 = vmatprep.subr.mxu0 %v1237
        %1378 = vmatpush1.msra.mxu0 %v1236
        %1379 = vmatprep.subr.mxu0 %v1239
        %1380 = vmatpush1.msra.mxu0 %v1238
        %1381 = vmatprep.subr.mxu0 %v1241
        %1382 = vmatpush1.msra.mxu0 %v1240
        %1383 = vmatprep.subr.mxu0 %v1243
        %1384 = vmatpush1.msra.mxu0 %v1242
        %1385 = vmatprep.subr.mxu0 %v1245
        %1386 = vmatpush1.msra.mxu0 %v1244
        %1387 = vmatprep.subr.mxu0 %v1247
        %1388 = vmatpush1.msra.mxu0 %v1246
        %1389 = vmatprep.subr.mxu0 %v1249
        %1390 = vmatpush1.msra.mxu0 %v1248
        %1391 = vmatprep.subr.mxu0 %v1251
        %1392 = vmatpush1.msra.mxu0 %v1250
        %1393 = vmatprep.subr.mxu0 %v1253
        %1394 = vmatpush1.msra.mxu0 %v1252
        %1395 = vmatprep.subr.mxu0 %v1255
        %1396 = vmatpush1.msra.mxu0 %v1254
        %1397 = vmatprep.subr.mxu0 %v1257
        %1398 = vmatpush1.msra.mxu0 %v1256
        %1399 = vmatprep.subr.mxu0 %v1259
        %1400 = vmatpush1.msra.mxu0 %v1258
        %1401 = vmatprep.subr.mxu0 %v1261
        %1402 = vmatpush1.msra.mxu0 %v1260
        %1403 = vmatprep.subr.mxu0 %v1263
        %1404 = vmatpush1.msra.mxu0 %v1262
        %1405 = vmatprep.subr.mxu0 %v1265
        %1406 = vmatpush1.msra.mxu0 %v1264
        %1407 = vmatprep.subr.mxu0 %v1267
        %1408 = vmatpush1.msra.mxu0 %v1266
        %1409 = vmatprep.subr.mxu0 %v1269
        %1410 = vmatpush1.msra.mxu0 %v1268
        %1411 = vmatprep.subr.mxu0 %v1271
        %1412 = vmatpush1.msra.mxu0 %v1270
        %1413 = vmatprep.subr.mxu0 %v1273
        %1414 = vmatpush1.msra.mxu0 %v1272
        %1415 = vmatprep.subr.mxu0 %v1275
        %1416 = vmatpush1.msra.mxu0 %v1274
        %1417 = vmatprep.subr.mxu0 %v1277
        %1418 = vmatpush1.msra.mxu0 %v1276
        %1419 = vmatprep.subr.mxu0 %v1279
        %1420 = vmatpush1.msra.mxu0 %v1278
        %1421 = vmatprep.subr.mxu0 %v1281
        %1422 = vmatpush1.msra.mxu0 %v1280
        %1423 = vmatprep.subr.mxu0 %v1283
        %1424 = vmatpush1.msra.mxu0 %v1282
        %1425 = vmatprep.subr.mxu0 %v1285
        %1426 = vmatpush1.msra.mxu0 %v1284
        %1427 = vmatprep.subr.mxu0 %v1287
        %1428 = vmatpush1.msra.mxu0 %v1286
        %1429 = vmatprep.subr.mxu0 %v1289
        %1430 = vmatpush1.msra.mxu0 %v1288
        %1431 = vmatprep.subr.mxu0 %v1291
        %1432 = vmatpush1.msra.mxu0 %v1290
        %1433 = vmatprep.subr.mxu0 %v1293
        %1434 = vmatpush1.msra.mxu0 %v1292
        %1435 = vmatprep.mubr.f32.mxu0 %v1163
        %1436 = vmatmul.mubr.f32.gmra.mrb[0].mxu0 %v1162
        %v1437 = vpop.f32.mrb[0].mxu0
        %v1438 = vadd.f32 %v1361, %v1437
        %v1439 = vpop.f32.mrb[0].mxu0
        %v1440 = vadd.f32 %v1363, %v1439
        %1441 = vmatprep.mubr.f32.mxu0 %v1165
        %1442 = vmatmul.mubr.f32.gmra.mrb[0].mxu0 %v1164
        %v1443 = vpop.f32.mrb[0].mxu0
        %v1444 = vadd.f32 %v1367, %v1443
        %v1445 = vpop.f32.mrb[0].mxu0
        %v1446 = vadd.f32 %v1369, %v1445
        %1447 = vdwg.mxu0
        %vm1452 = vcmask 1042432
        %v1453 = vrot.slane %v1438, 5
        %v1454 = vrot.slane %v1440, 5
        %v1455 = vrot.slane %v1444, 5
        %v1456 = vsel %vm1452, %v1453, %v1455
        %v1457 = vrot.slane %v1446, 5
        %v1458 = vsel %vm1452, %v1454, %v1457
        %v1465 = vsel %vm1452, 0.0, %v1453
        %v1466 = vsel %vm1452, 0.0, %v1454
        %v1467 = vsel %vm1452, %v1455, 0.0
        %v1468 = vsel %vm1452, %v1457, 0.0
        %v1469 = vld [vmem:[#allocation6] sm:$0xff]
        %v1470 = vld [vmem:[#allocation6 + $0x8] sm:$0xff]
        %v1471 = vld [vmem:[#allocation6 + $0x10] sm:$0xff]
        %v1472 = vld [vmem:[#allocation6 + $0x18] sm:$0xff]
        %v1473 = vld [vmem:[#allocation6 + $0x20] sm:$0xff]
        %v1474 = vld [vmem:[#allocation6 + $0x28] sm:$0xff]
        %v1475 = vld [vmem:[#allocation6 + $0x30] sm:$0xff]
        %v1476 = vld [vmem:[#allocation6 + $0x38] sm:$0xff]
        %v1477 = vld [vmem:[#allocation6 + $0x40] sm:$0xff]
        %v1478 = vld [vmem:[#allocation6 + $0x48] sm:$0xff]
        %v1479 = vld [vmem:[#allocation6 + $0x50] sm:$0xff]
        %v1480 = vld [vmem:[#allocation6 + $0x58] sm:$0xff]
        %v1481 = vld [vmem:[#allocation6 + $0x60] sm:$0xff]
        %v1482 = vld [vmem:[#allocation6 + $0x68] sm:$0xff]
        %v1483 = vld [vmem:[#allocation6 + $0x70] sm:$0xff]
        %v1484 = vld [vmem:[#allocation6 + $0x78] sm:$0xff]
        %v1485 = vld [vmem:[#allocation6 + $0x80] sm:$0xff]
        %v1486 = vld [vmem:[#allocation6 + $0x88] sm:$0xff]
        %v1487 = vld [vmem:[#allocation6 + $0x90] sm:$0xff]
        %v1488 = vld [vmem:[#allocation6 + $0x98] sm:$0xff]
        %v1489 = vld [vmem:[#allocation6 + $0xa0] sm:$0xff]
        %v1490 = vld [vmem:[#allocation6 + $0xa8] sm:$0xff]
        %v1491 = vld [vmem:[#allocation6 + $0xb0] sm:$0xff]
        %v1492 = vld [vmem:[#allocation6 + $0xb8] sm:$0xff]
        %v1493 = vld [vmem:[#allocation6 + $0xc0] sm:$0xff]
        %v1494 = vld [vmem:[#allocation6 + $0xc8] sm:$0xff]
        %v1495 = vld [vmem:[#allocation6 + $0xd0] sm:$0xff]
        %v1496 = vld [vmem:[#allocation6 + $0xd8] sm:$0xff]
        %v1497 = vld [vmem:[#allocation6 + $0xe0] sm:$0xff]
        %v1498 = vld [vmem:[#allocation6 + $0xe8] sm:$0xff]
        %v1499 = vld [vmem:[#allocation6 + $0xf0] sm:$0xff]
        %v1500 = vld [vmem:[#allocation6 + $0xf8] sm:$0xff]
        %v1501 = vld [vmem:[#allocation6 + $0x100] sm:$0xff]
        %v1502 = vld [vmem:[#allocation6 + $0x108] sm:$0xff]
        %v1503 = vld [vmem:[#allocation6 + $0x110] sm:$0xff]
        %v1504 = vld [vmem:[#allocation6 + $0x118] sm:$0xff]
        %v1505 = vld [vmem:[#allocation6 + $0x120] sm:$0xff]
        %v1506 = vld [vmem:[#allocation6 + $0x128] sm:$0xff]
        %v1507 = vld [vmem:[#allocation6 + $0x130] sm:$0xff]
        %v1508 = vld [vmem:[#allocation6 + $0x138] sm:$0xff]
        %v1509 = vld [vmem:[#allocation6 + $0x140] sm:$0xff]
        %v1510 = vld [vmem:[#allocation6 + $0x148] sm:$0xff]
        %v1511 = vld [vmem:[#allocation6 + $0x150] sm:$0xff]
        %v1512 = vld [vmem:[#allocation6 + $0x158] sm:$0xff]
        %v1513 = vld [vmem:[#allocation6 + $0x160] sm:$0xff]
        %v1514 = vld [vmem:[#allocation6 + $0x168] sm:$0xff]
        %v1515 = vld [vmem:[#allocation6 + $0x170] sm:$0xff]
        %v1516 = vld [vmem:[#allocation6 + $0x178] sm:$0xff]
        %v1517 = vld [vmem:[#allocation6 + $0x180] sm:$0xff]
        %v1518 = vld [vmem:[#allocation6 + $0x188] sm:$0xff]
        %v1519 = vld [vmem:[#allocation6 + $0x190] sm:$0xff]
        %v1520 = vld [vmem:[#allocation6 + $0x198] sm:$0xff]
        %v1521 = vld [vmem:[#allocation6 + $0x1a0] sm:$0xff]
        %v1522 = vld [vmem:[#allocation6 + $0x1a8] sm:$0xff]
        %v1523 = vld [vmem:[#allocation6 + $0x1b0] sm:$0xff]
        %v1524 = vld [vmem:[#allocation6 + $0x1b8] sm:$0xff]
        %v1525 = vld [vmem:[#allocation6 + $0x1c0] sm:$0xff]
        %v1526 = vld [vmem:[#allocation6 + $0x1c8] sm:$0xff]
        %v1527 = vld [vmem:[#allocation6 + $0x1d0] sm:$0xff]
        %v1528 = vld [vmem:[#allocation6 + $0x1d8] sm:$0xff]
        %v1529 = vld [vmem:[#allocation6 + $0x1e0] sm:$0xff]
        %v1530 = vld [vmem:[#allocation6 + $0x1e8] sm:$0xff]
        %v1531 = vld [vmem:[#allocation6 + $0x1f0] sm:$0xff]
        %v1532 = vld [vmem:[#allocation6 + $0x1f8] sm:$0xff]
        %s1533 = scalar_lea.vmem [#allocation6], 512
        %v1534 = vld [vmem:[%s1533] sm:$0xff]
        %v1535 = vld [vmem:[%s1533 + $0x8] sm:$0xff]
        %v1536 = vld [vmem:[%s1533 + $0x10] sm:$0xff]
        %v1537 = vld [vmem:[%s1533 + $0x18] sm:$0xff]
        %v1538 = vld [vmem:[%s1533 + $0x20] sm:$0xff]
        %v1539 = vld [vmem:[%s1533 + $0x28] sm:$0xff]
        %v1540 = vld [vmem:[%s1533 + $0x30] sm:$0xff]
        %v1541 = vld [vmem:[%s1533 + $0x38] sm:$0xff]
        %v1542 = vld [vmem:[%s1533 + $0x40] sm:$0xff]
        %v1543 = vld [vmem:[%s1533 + $0x48] sm:$0xff]
        %v1544 = vld [vmem:[%s1533 + $0x50] sm:$0xff]
        %v1545 = vld [vmem:[%s1533 + $0x58] sm:$0xff]
        %v1546 = vld [vmem:[%s1533 + $0x60] sm:$0xff]
        %v1547 = vld [vmem:[%s1533 + $0x68] sm:$0xff]
        %v1548 = vld [vmem:[%s1533 + $0x70] sm:$0xff]
        %v1549 = vld [vmem:[%s1533 + $0x78] sm:$0xff]
        %v1550 = vld [vmem:[%s1533 + $0x80] sm:$0xff]
        %v1551 = vld [vmem:[%s1533 + $0x88] sm:$0xff]
        %v1552 = vld [vmem:[%s1533 + $0x90] sm:$0xff]
        %v1553 = vld [vmem:[%s1533 + $0x98] sm:$0xff]
        %v1554 = vld [vmem:[%s1533 + $0xa0] sm:$0xff]
        %v1555 = vld [vmem:[%s1533 + $0xa8] sm:$0xff]
        %v1556 = vld [vmem:[%s1533 + $0xb0] sm:$0xff]
        %v1557 = vld [vmem:[%s1533 + $0xb8] sm:$0xff]
        %v1558 = vld [vmem:[%s1533 + $0xc0] sm:$0xff]
        %v1559 = vld [vmem:[%s1533 + $0xc8] sm:$0xff]
        %v1560 = vld [vmem:[%s1533 + $0xd0] sm:$0xff]
        %v1561 = vld [vmem:[%s1533 + $0xd8] sm:$0xff]
        %v1562 = vld [vmem:[%s1533 + $0xe0] sm:$0xff]
        %v1563 = vld [vmem:[%s1533 + $0xe8] sm:$0xff]
        %v1564 = vld [vmem:[%s1533 + $0xf0] sm:$0xff]
        %v1565 = vld [vmem:[%s1533 + $0xf8] sm:$0xff]
        %v1566 = vld [vmem:[%s1533 + $0x100] sm:$0xff]
        %v1567 = vld [vmem:[%s1533 + $0x108] sm:$0xff]
        %v1568 = vld [vmem:[%s1533 + $0x110] sm:$0xff]
        %v1569 = vld [vmem:[%s1533 + $0x118] sm:$0xff]
        %v1570 = vld [vmem:[%s1533 + $0x120] sm:$0xff]
        %v1571 = vld [vmem:[%s1533 + $0x128] sm:$0xff]
        %v1572 = vld [vmem:[%s1533 + $0x130] sm:$0xff]
        %v1573 = vld [vmem:[%s1533 + $0x138] sm:$0xff]
        %v1574 = vld [vmem:[%s1533 + $0x140] sm:$0xff]
        %v1575 = vld [vmem:[%s1533 + $0x148] sm:$0xff]
        %v1576 = vld [vmem:[%s1533 + $0x150] sm:$0xff]
        %v1577 = vld [vmem:[%s1533 + $0x158] sm:$0xff]
        %v1578 = vld [vmem:[%s1533 + $0x160] sm:$0xff]
        %v1579 = vld [vmem:[%s1533 + $0x168] sm:$0xff]
        %v1580 = vld [vmem:[%s1533 + $0x170] sm:$0xff]
        %v1581 = vld [vmem:[%s1533 + $0x178] sm:$0xff]
        %v1582 = vld [vmem:[%s1533 + $0x180] sm:$0xff]
        %v1583 = vld [vmem:[%s1533 + $0x188] sm:$0xff]
        %v1584 = vld [vmem:[%s1533 + $0x190] sm:$0xff]
        %v1585 = vld [vmem:[%s1533 + $0x198] sm:$0xff]
        %v1586 = vld [vmem:[%s1533 + $0x1a0] sm:$0xff]
        %v1587 = vld [vmem:[%s1533 + $0x1a8] sm:$0xff]
        %v1588 = vld [vmem:[%s1533 + $0x1b0] sm:$0xff]
        %v1589 = vld [vmem:[%s1533 + $0x1b8] sm:$0xff]
        %v1590 = vld [vmem:[%s1533 + $0x1c0] sm:$0xff]
        %v1591 = vld [vmem:[%s1533 + $0x1c8] sm:$0xff]
        %v1592 = vld [vmem:[%s1533 + $0x1d0] sm:$0xff]
        %v1593 = vld [vmem:[%s1533 + $0x1d8] sm:$0xff]
        %v1594 = vld [vmem:[%s1533 + $0x1e0] sm:$0xff]
        %v1595 = vld [vmem:[%s1533 + $0x1e8] sm:$0xff]
        %v1596 = vld [vmem:[%s1533 + $0x1f0] sm:$0xff]
        %v1597 = vld [vmem:[%s1533 + $0x1f8] sm:$0xff]
        %vm1602 = vcmask 1046528
        %v1603 = vrot.slane %v1465, 1
        %v1604 = vrot.slane %v1456, 1
        %v1605 = vsel %vm1602, %v1603, %v1604
        %v1606 = vrot.slane %v1466, 1
        %v1607 = vrot.slane %v1458, 1
        %v1608 = vsel %vm1602, %v1606, %v1607
        %v1609 = vrot.slane %v1467, 1
        %v1610 = vsel %vm1602, %v1604, %v1609
        %v1611 = vrot.slane %v1468, 1
        %v1612 = vsel %vm1602, %v1607, %v1611
        %1617 = vmatprep.subr.mxu0 %v1535
        %1618 = vmatpush1.msra.mxu0 %v1534
        %1619 = vmatprep.subr.mxu0 %v1537
        %1620 = vmatpush1.msra.mxu0 %v1536
        %1621 = vmatprep.subr.mxu0 %v1539
        %1622 = vmatpush1.msra.mxu0 %v1538
        %1623 = vmatprep.subr.mxu0 %v1541
        %1624 = vmatpush1.msra.mxu0 %v1540
        %1625 = vmatprep.subr.mxu0 %v1543
        %1626 = vmatpush1.msra.mxu0 %v1542
        %1627 = vmatprep.subr.mxu0 %v1545
        %1628 = vmatpush1.msra.mxu0 %v1544
        %1629 = vmatprep.subr.mxu0 %v1547
        %1630 = vmatpush1.msra.mxu0 %v1546
        %1631 = vmatprep.subr.mxu0 %v1549
        %1632 = vmatpush1.msra.mxu0 %v1548
        %1633 = vmatprep.subr.mxu0 %v1551
        %1634 = vmatpush1.msra.mxu0 %v1550
        %1635 = vmatprep.subr.mxu0 %v1553
        %1636 = vmatpush1.msra.mxu0 %v1552
        %1637 = vmatprep.subr.mxu0 %v1555
        %1638 = vmatpush1.msra.mxu0 %v1554
        %1639 = vmatprep.subr.mxu0 %v1557
        %1640 = vmatpush1.msra.mxu0 %v1556
        %1641 = vmatprep.subr.mxu0 %v1559
        %1642 = vmatpush1.msra.mxu0 %v1558
        %1643 = vmatprep.subr.mxu0 %v1561
        %1644 = vmatpush1.msra.mxu0 %v1560
        %1645 = vmatprep.subr.mxu0 %v1563
        %1646 = vmatpush1.msra.mxu0 %v1562
        %1647 = vmatprep.subr.mxu0 %v1565
        %1648 = vmatpush1.msra.mxu0 %v1564
        %1649 = vmatprep.subr.mxu0 %v1567
        %1650 = vmatpush1.msra.mxu0 %v1566
        %1651 = vmatprep.subr.mxu0 %v1569
        %1652 = vmatpush1.msra.mxu0 %v1568
        %1653 = vmatprep.subr.mxu0 %v1571
        %1654 = vmatpush1.msra.mxu0 %v1570
        %1655 = vmatprep.subr.mxu0 %v1573
        %1656 = vmatpush1.msra.mxu0 %v1572
        %1657 = vmatprep.subr.mxu0 %v1575
        %1658 = vmatpush1.msra.mxu0 %v1574
        %1659 = vmatprep.subr.mxu0 %v1577
        %1660 = vmatpush1.msra.mxu0 %v1576
        %1661 = vmatprep.subr.mxu0 %v1579
        %1662 = vmatpush1.msra.mxu0 %v1578
        %1663 = vmatprep.subr.mxu0 %v1581
        %1664 = vmatpush1.msra.mxu0 %v1580
        %1665 = vmatprep.subr.mxu0 %v1583
        %1666 = vmatpush1.msra.mxu0 %v1582
        %1667 = vmatprep.subr.mxu0 %v1585
        %1668 = vmatpush1.msra.mxu0 %v1584
        %1669 = vmatprep.subr.mxu0 %v1587
        %1670 = vmatpush1.msra.mxu0 %v1586
        %1671 = vmatprep.subr.mxu0 %v1589
        %1672 = vmatpush1.msra.mxu0 %v1588
        %1673 = vmatprep.subr.mxu0 %v1591
        %1674 = vmatpush1.msra.mxu0 %v1590
        %1675 = vmatprep.subr.mxu0 %v1593
        %1676 = vmatpush1.msra.mxu0 %v1592
        %1677 = vmatprep.subr.mxu0 %v1595
        %1678 = vmatpush1.msra.mxu0 %v1594
        %1679 = vmatprep.subr.mxu0 %v1597
        %1680 = vmatpush1.msra.mxu0 %v1596
        %1681 = vmatprep.mubr.f32.mxu0 %v1608
        %1682 = vmatmul.mubr.f32.gmra.mrb[0].mxu0 %v1605
        %v1683 = vpop.f32.mrb[0].mxu0
        %v1684 = vadd.f32 0.0, %v1683
        %v1685 = vpop.f32.mrb[0].mxu0
        %v1686 = vadd.f32 0.0, %v1685
        %1687 = vmatprep.mubr.f32.mxu0 %v1612
        %1688 = vmatmul.mubr.f32.gmra.mrb[0].mxu0 %v1610
        %v1689 = vpop.f32.mrb[0].mxu0
        %v1690 = vadd.f32 0.0, %v1689
        %v1691 = vpop.f32.mrb[0].mxu0
        %v1692 = vadd.f32 0.0, %v1691
        %1693 = vdwg.mxu0
        %1694 = vmatprep.subr.mxu0 %v1470
        %1695 = vmatpush1.msra.mxu0 %v1469
        %1696 = vmatprep.subr.mxu0 %v1472
        %1697 = vmatpush1.msra.mxu0 %v1471
        %1698 = vmatprep.subr.mxu0 %v1474
        %1699 = vmatpush1.msra.mxu0 %v1473
        %1700 = vmatprep.subr.mxu0 %v1476
        %1701 = vmatpush1.msra.mxu0 %v1475
        %1702 = vmatprep.subr.mxu0 %v1478
        %1703 = vmatpush1.msra.mxu0 %v1477
        %1704 = vmatprep.subr.mxu0 %v1480
        %1705 = vmatpush1.msra.mxu0 %v1479
        %1706 = vmatprep.subr.mxu0 %v1482
        %1707 = vmatpush1.msra.mxu0 %v1481
        %1708 = vmatprep.subr.mxu0 %v1484
        %1709 = vmatpush1.msra.mxu0 %v1483
        %1710 = vmatprep.subr.mxu0 %v1486
        %1711 = vmatpush1.msra.mxu0 %v1485
        %1712 = vmatprep.subr.mxu0 %v1488
        %1713 = vmatpush1.msra.mxu0 %v1487
        %1714 = vmatprep.subr.mxu0 %v1490
        %1715 = vmatpush1.msra.mxu0 %v1489
        %1716 = vmatprep.subr.mxu0 %v1492
        %1717 = vmatpush1.msra.mxu0 %v1491
        %1718 = vmatprep.subr.mxu0 %v1494
        %1719 = vmatpush1.msra.mxu0 %v1493
        %1720 = vmatprep.subr.mxu0 %v1496
        %1721 = vmatpush1.msra.mxu0 %v1495
        %1722 = vmatprep.subr.mxu0 %v1498
        %1723 = vmatpush1.msra.mxu0 %v1497
        %1724 = vmatprep.subr.mxu0 %v1500
        %1725 = vmatpush1.msra.mxu0 %v1499
        %1726 = vmatprep.subr.mxu0 %v1502
        %1727 = vmatpush1.msra.mxu0 %v1501
        %1728 = vmatprep.subr.mxu0 %v1504
        %1729 = vmatpush1.msra.mxu0 %v1503
        %1730 = vmatprep.subr.mxu0 %v1506
        %1731 = vmatpush1.msra.mxu0 %v1505
        %1732 = vmatprep.subr.mxu0 %v1508
        %1733 = vmatpush1.msra.mxu0 %v1507
        %1734 = vmatprep.subr.mxu0 %v1510
        %1735 = vmatpush1.msra.mxu0 %v1509
        %1736 = vmatprep.subr.mxu0 %v1512
        %1737 = vmatpush1.msra.mxu0 %v1511
        %1738 = vmatprep.subr.mxu0 %v1514
        %1739 = vmatpush1.msra.mxu0 %v1513
        %1740 = vmatprep.subr.mxu0 %v1516
        %1741 = vmatpush1.msra.mxu0 %v1515
        %1742 = vmatprep.subr.mxu0 %v1518
        %1743 = vmatpush1.msra.mxu0 %v1517
        %1744 = vmatprep.subr.mxu0 %v1520
        %1745 = vmatpush1.msra.mxu0 %v1519
        %1746 = vmatprep.subr.mxu0 %v1522
        %1747 = vmatpush1.msra.mxu0 %v1521
        %1748 = vmatprep.subr.mxu0 %v1524
        %1749 = vmatpush1.msra.mxu0 %v1523
        %1750 = vmatprep.subr.mxu0 %v1526
        %1751 = vmatpush1.msra.mxu0 %v1525
        %1752 = vmatprep.subr.mxu0 %v1528
        %1753 = vmatpush1.msra.mxu0 %v1527
        %1754 = vmatprep.subr.mxu0 %v1530
        %1755 = vmatpush1.msra.mxu0 %v1529
        %1756 = vmatprep.subr.mxu0 %v1532
        %1757 = vmatpush1.msra.mxu0 %v1531
        %1758 = vmatprep.mubr.f32.mxu0 %v1466
        %1759 = vmatmul.mubr.f32.gmra.mrb[0].mxu0 %v1465
        %v1760 = vpop.f32.mrb[0].mxu0
        %v1761 = vadd.f32 %v1684, %v1760
        %v1762 = vpop.f32.mrb[0].mxu0
        %v1763 = vadd.f32 %v1686, %v1762
        %1764 = vmatprep.mubr.f32.mxu0 %v1458
        %1765 = vmatmul.mubr.f32.gmra.mrb[0].mxu0 %v1456
        %v1766 = vpop.f32.mrb[0].mxu0
        %v1767 = vadd.f32 %v1690, %v1766
        %v1768 = vpop.f32.mrb[0].mxu0
        %v1769 = vadd.f32 %v1692, %v1768
        %1770 = vdwg.mxu0
        %s1771 = scalar_lea.vmem [#allocation6], 1024
        %v1772 = vld [vmem:[%s1771] sm:$0xff]
        %v1773 = vld [vmem:[%s1771 + $0x8] sm:$0xff]
        %v1774 = vld [vmem:[%s1771 + $0x10] sm:$0xff]
        %v1775 = vld [vmem:[%s1771 + $0x18] sm:$0xff]
        %v1776 = vld [vmem:[%s1771 + $0x20] sm:$0xff]
        %v1777 = vld [vmem:[%s1771 + $0x28] sm:$0xff]
        %v1778 = vld [vmem:[%s1771 + $0x30] sm:$0xff]
        %v1779 = vld [vmem:[%s1771 + $0x38] sm:$0xff]
        %v1780 = vld [vmem:[%s1771 + $0x40] sm:$0xff]
        %v1781 = vld [vmem:[%s1771 + $0x48] sm:$0xff]
        %v1782 = vld [vmem:[%s1771 + $0x50] sm:$0xff]
        %v1783 = vld [vmem:[%s1771 + $0x58] sm:$0xff]
        %v1784 = vld [vmem:[%s1771 + $0x60] sm:$0xff]
        %v1785 = vld [vmem:[%s1771 + $0x68] sm:$0xff]
        %v1786 = vld [vmem:[%s1771 + $0x70] sm:$0xff]
        %v1787 = vld [vmem:[%s1771 + $0x78] sm:$0xff]
        %v1788 = vld [vmem:[%s1771 + $0x80] sm:$0xff]
        %v1789 = vld [vmem:[%s1771 + $0x88] sm:$0xff]
        %v1790 = vld [vmem:[%s1771 + $0x90] sm:$0xff]
        %v1791 = vld [vmem:[%s1771 + $0x98] sm:$0xff]
        %v1792 = vld [vmem:[%s1771 + $0xa0] sm:$0xff]
        %v1793 = vld [vmem:[%s1771 + $0xa8] sm:$0xff]
        %v1794 = vld [vmem:[%s1771 + $0xb0] sm:$0xff]
        %v1795 = vld [vmem:[%s1771 + $0xb8] sm:$0xff]
        %v1796 = vld [vmem:[%s1771 + $0xc0] sm:$0xff]
        %v1797 = vld [vmem:[%s1771 + $0xc8] sm:$0xff]
        %v1798 = vld [vmem:[%s1771 + $0xd0] sm:$0xff]
        %v1799 = vld [vmem:[%s1771 + $0xd8] sm:$0xff]
        %v1800 = vld [vmem:[%s1771 + $0xe0] sm:$0xff]
        %v1801 = vld [vmem:[%s1771 + $0xe8] sm:$0xff]
        %v1802 = vld [vmem:[%s1771 + $0xf0] sm:$0xff]
        %v1803 = vld [vmem:[%s1771 + $0xf8] sm:$0xff]
        %v1804 = vld [vmem:[%s1771 + $0x100] sm:$0xff]
        %v1805 = vld [vmem:[%s1771 + $0x108] sm:$0xff]
        %v1806 = vld [vmem:[%s1771 + $0x110] sm:$0xff]
        %v1807 = vld [vmem:[%s1771 + $0x118] sm:$0xff]
        %v1808 = vld [vmem:[%s1771 + $0x120] sm:$0xff]
        %v1809 = vld [vmem:[%s1771 + $0x128] sm:$0xff]
        %v1810 = vld [vmem:[%s1771 + $0x130] sm:$0xff]
        %v1811 = vld [vmem:[%s1771 + $0x138] sm:$0xff]
        %v1812 = vld [vmem:[%s1771 + $0x140] sm:$0xff]
        %v1813 = vld [vmem:[%s1771 + $0x148] sm:$0xff]
        %v1814 = vld [vmem:[%s1771 + $0x150] sm:$0xff]
        %v1815 = vld [vmem:[%s1771 + $0x158] sm:$0xff]
        %v1816 = vld [vmem:[%s1771 + $0x160] sm:$0xff]
        %v1817 = vld [vmem:[%s1771 + $0x168] sm:$0xff]
        %v1818 = vld [vmem:[%s1771 + $0x170] sm:$0xff]
        %v1819 = vld [vmem:[%s1771 + $0x178] sm:$0xff]
        %v1820 = vld [vmem:[%s1771 + $0x180] sm:$0xff]
        %v1821 = vld [vmem:[%s1771 + $0x188] sm:$0xff]
        %v1822 = vld [vmem:[%s1771 + $0x190] sm:$0xff]
        %v1823 = vld [vmem:[%s1771 + $0x198] sm:$0xff]
        %v1824 = vld [vmem:[%s1771 + $0x1a0] sm:$0xff]
        %v1825 = vld [vmem:[%s1771 + $0x1a8] sm:$0xff]
        %v1826 = vld [vmem:[%s1771 + $0x1b0] sm:$0xff]
        %v1827 = vld [vmem:[%s1771 + $0x1b8] sm:$0xff]
        %v1828 = vld [vmem:[%s1771 + $0x1c0] sm:$0xff]
        %v1829 = vld [vmem:[%s1771 + $0x1c8] sm:$0xff]
        %v1830 = vld [vmem:[%s1771 + $0x1d0] sm:$0xff]
        %v1831 = vld [vmem:[%s1771 + $0x1d8] sm:$0xff]
        %v1832 = vld [vmem:[%s1771 + $0x1e0] sm:$0xff]
        %v1833 = vld [vmem:[%s1771 + $0x1e8] sm:$0xff]
        %v1834 = vld [vmem:[%s1771 + $0x1f0] sm:$0xff]
        %v1835 = vld [vmem:[%s1771 + $0x1f8] sm:$0xff]
        %vm1836 = vcmask 1045504
        %v1837 = vrot.slane %v1465, 2
        %v1838 = vrot.slane %v1456, 2
        %v1839 = vsel %vm1836, %v1837, %v1838
        %v1840 = vrot.slane %v1466, 2
        %v1841 = vrot.slane %v1458, 2
        %v1842 = vsel %vm1836, %v1840, %v1841
        %v1843 = vrot.slane %v1467, 2
        %v1844 = vsel %vm1836, %v1838, %v1843
        %v1845 = vrot.slane %v1468, 2
        %v1846 = vsel %vm1836, %v1841, %v1845
        %1851 = vmatprep.subr.mxu0 %v1773
        %1852 = vmatpush1.msra.mxu0 %v1772
        %1853 = vmatprep.subr.mxu0 %v1775
        %1854 = vmatpush1.msra.mxu0 %v1774
        %1855 = vmatprep.subr.mxu0 %v1777
        %1856 = vmatpush1.msra.mxu0 %v1776
        %1857 = vmatprep.subr.mxu0 %v1779
        %1858 = vmatpush1.msra.mxu0 %v1778
        %1859 = vmatprep.subr.mxu0 %v1781
        %1860 = vmatpush1.msra.mxu0 %v1780
        %1861 = vmatprep.subr.mxu0 %v1783
        %1862 = vmatpush1.msra.mxu0 %v1782
        %1863 = vmatprep.subr.mxu0 %v1785
        %1864 = vmatpush1.msra.mxu0 %v1784
        %1865 = vmatprep.subr.mxu0 %v1787
        %1866 = vmatpush1.msra.mxu0 %v1786
        %1867 = vmatprep.subr.mxu0 %v1789
        %1868 = vmatpush1.msra.mxu0 %v1788
        %1869 = vmatprep.subr.mxu0 %v1791
        %1870 = vmatpush1.msra.mxu0 %v1790
        %1871 = vmatprep.subr.mxu0 %v1793
        %1872 = vmatpush1.msra.mxu0 %v1792
        %1873 = vmatprep.subr.mxu0 %v1795
        %1874 = vmatpush1.msra.mxu0 %v1794
        %1875 = vmatprep.subr.mxu0 %v1797
        %1876 = vmatpush1.msra.mxu0 %v1796
        %1877 = vmatprep.subr.mxu0 %v1799
        %1878 = vmatpush1.msra.mxu0 %v1798
        %1879 = vmatprep.subr.mxu0 %v1801
        %1880 = vmatpush1.msra.mxu0 %v1800
        %1881 = vmatprep.subr.mxu0 %v1803
        %1882 = vmatpush1.msra.mxu0 %v1802
        %1883 = vmatprep.subr.mxu0 %v1805
        %1884 = vmatpush1.msra.mxu0 %v1804
        %1885 = vmatprep.subr.mxu0 %v1807
        %1886 = vmatpush1.msra.mxu0 %v1806
        %1887 = vmatprep.subr.mxu0 %v1809
        %1888 = vmatpush1.msra.mxu0 %v1808
        %1889 = vmatprep.subr.mxu0 %v1811
        %1890 = vmatpush1.msra.mxu0 %v1810
        %1891 = vmatprep.subr.mxu0 %v1813
        %1892 = vmatpush1.msra.mxu0 %v1812
        %1893 = vmatprep.subr.mxu0 %v1815
        %1894 = vmatpush1.msra.mxu0 %v1814
        %1895 = vmatprep.subr.mxu0 %v1817
        %1896 = vmatpush1.msra.mxu0 %v1816
        %1897 = vmatprep.subr.mxu0 %v1819
        %1898 = vmatpush1.msra.mxu0 %v1818
        %1899 = vmatprep.subr.mxu0 %v1821
        %1900 = vmatpush1.msra.mxu0 %v1820
        %1901 = vmatprep.subr.mxu0 %v1823
        %1902 = vmatpush1.msra.mxu0 %v1822
        %1903 = vmatprep.subr.mxu0 %v1825
        %1904 = vmatpush1.msra.mxu0 %v1824
        %1905 = vmatprep.subr.mxu0 %v1827
        %1906 = vmatpush1.msra.mxu0 %v1826
        %1907 = vmatprep.subr.mxu0 %v1829
        %1908 = vmatpush1.msra.mxu0 %v1828
        %1909 = vmatprep.subr.mxu0 %v1831
        %1910 = vmatpush1.msra.mxu0 %v1830
        %1911 = vmatprep.subr.mxu0 %v1833
        %1912 = vmatpush1.msra.mxu0 %v1832
        %1913 = vmatprep.subr.mxu0 %v1835
        %1914 = vmatpush1.msra.mxu0 %v1834
        %1915 = vmatprep.mubr.f32.mxu0 %v1842
        %1916 = vmatmul.mubr.f32.gmra.mrb[0].mxu0 %v1839
        %v1917 = vpop.f32.mrb[0].mxu0
        %v1918 = vadd.f32 0.0, %v1917
        %v1919 = vpop.f32.mrb[0].mxu0
        %v1920 = vadd.f32 0.0, %v1919
        %1921 = vmatprep.mubr.f32.mxu0 %v1846
        %1922 = vmatmul.mubr.f32.gmra.mrb[0].mxu0 %v1844
        %v1923 = vpop.f32.mrb[0].mxu0
        %v1924 = vadd.f32 0.0, %v1923
        %v1925 = vpop.f32.mrb[0].mxu0
        %v1926 = vadd.f32 0.0, %v1925
        %1927 = vdwg.mxu0
        %v1928 = vadd.f32 %v1761, %v1918
        %v1929 = vadd.f32 %v1763, %v1920
        %v1930 = vadd.f32 %v1767, %v1924
        %v1931 = vadd.f32 %v1769, %v1926
        %s1932 = scalar_lea.vmem [#allocation6], 1536
        %v1933 = vld [vmem:[%s1932] sm:$0xff]
        %v1934 = vld [vmem:[%s1932 + $0x8] sm:$0xff]
        %v1935 = vld [vmem:[%s1932 + $0x10] sm:$0xff]
        %v1936 = vld [vmem:[%s1932 + $0x18] sm:$0xff]
        %v1937 = vld [vmem:[%s1932 + $0x20] sm:$0xff]
        %v1938 = vld [vmem:[%s1932 + $0x28] sm:$0xff]
        %v1939 = vld [vmem:[%s1932 + $0x30] sm:$0xff]
        %v1940 = vld [vmem:[%s1932 + $0x38] sm:$0xff]
        %v1941 = vld [vmem:[%s1932 + $0x40] sm:$0xff]
        %v1942 = vld [vmem:[%s1932 + $0x48] sm:$0xff]
        %v1943 = vld [vmem:[%s1932 + $0x50] sm:$0xff]
        %v1944 = vld [vmem:[%s1932 + $0x58] sm:$0xff]
        %v1945 = vld [vmem:[%s1932 + $0x60] sm:$0xff]
        %v1946 = vld [vmem:[%s1932 + $0x68] sm:$0xff]
        %v1947 = vld [vmem:[%s1932 + $0x70] sm:$0xff]
        %v1948 = vld [vmem:[%s1932 + $0x78] sm:$0xff]
        %v1949 = vld [vmem:[%s1932 + $0x80] sm:$0xff]
        %v1950 = vld [vmem:[%s1932 + $0x88] sm:$0xff]
        %v1951 = vld [vmem:[%s1932 + $0x90] sm:$0xff]
        %v1952 = vld [vmem:[%s1932 + $0x98] sm:$0xff]
        %v1953 = vld [vmem:[%s1932 + $0xa0] sm:$0xff]
        %v1954 = vld [vmem:[%s1932 + $0xa8] sm:$0xff]
        %v1955 = vld [vmem:[%s1932 + $0xb0] sm:$0xff]
        %v1956 = vld [vmem:[%s1932 + $0xb8] sm:$0xff]
        %v1957 = vld [vmem:[%s1932 + $0xc0] sm:$0xff]
        %v1958 = vld [vmem:[%s1932 + $0xc8] sm:$0xff]
        %v1959 = vld [vmem:[%s1932 + $0xd0] sm:$0xff]
        %v1960 = vld [vmem:[%s1932 + $0xd8] sm:$0xff]
        %v1961 = vld [vmem:[%s1932 + $0xe0] sm:$0xff]
        %v1962 = vld [vmem:[%s1932 + $0xe8] sm:$0xff]
        %v1963 = vld [vmem:[%s1932 + $0xf0] sm:$0xff]
        %v1964 = vld [vmem:[%s1932 + $0xf8] sm:$0xff]
        %v1965 = vld [vmem:[%s1932 + $0x100] sm:$0xff]
        %v1966 = vld [vmem:[%s1932 + $0x108] sm:$0xff]
        %v1967 = vld [vmem:[%s1932 + $0x110] sm:$0xff]
        %v1968 = vld [vmem:[%s1932 + $0x118] sm:$0xff]
        %v1969 = vld [vmem:[%s1932 + $0x120] sm:$0xff]
        %v1970 = vld [vmem:[%s1932 + $0x128] sm:$0xff]
        %v1971 = vld [vmem:[%s1932 + $0x130] sm:$0xff]
        %v1972 = vld [vmem:[%s1932 + $0x138] sm:$0xff]
        %v1973 = vld [vmem:[%s1932 + $0x140] sm:$0xff]
        %v1974 = vld [vmem:[%s1932 + $0x148] sm:$0xff]
        %v1975 = vld [vmem:[%s1932 + $0x150] sm:$0xff]
        %v1976 = vld [vmem:[%s1932 + $0x158] sm:$0xff]
        %v1977 = vld [vmem:[%s1932 + $0x160] sm:$0xff]
        %v1978 = vld [vmem:[%s1932 + $0x168] sm:$0xff]
        %v1979 = vld [vmem:[%s1932 + $0x170] sm:$0xff]
        %v1980 = vld [vmem:[%s1932 + $0x178] sm:$0xff]
        %v1981 = vld [vmem:[%s1932 + $0x180] sm:$0xff]
        %v1982 = vld [vmem:[%s1932 + $0x188] sm:$0xff]
        %v1983 = vld [vmem:[%s1932 + $0x190] sm:$0xff]
        %v1984 = vld [vmem:[%s1932 + $0x198] sm:$0xff]
        %v1985 = vld [vmem:[%s1932 + $0x1a0] sm:$0xff]
        %v1986 = vld [vmem:[%s1932 + $0x1a8] sm:$0xff]
        %v1987 = vld [vmem:[%s1932 + $0x1b0] sm:$0xff]
        %v1988 = vld [vmem:[%s1932 + $0x1b8] sm:$0xff]
        %v1989 = vld [vmem:[%s1932 + $0x1c0] sm:$0xff]
        %v1990 = vld [vmem:[%s1932 + $0x1c8] sm:$0xff]
        %v1991 = vld [vmem:[%s1932 + $0x1d0] sm:$0xff]
        %v1992 = vld [vmem:[%s1932 + $0x1d8] sm:$0xff]
        %v1993 = vld [vmem:[%s1932 + $0x1e0] sm:$0xff]
        %v1994 = vld [vmem:[%s1932 + $0x1e8] sm:$0xff]
        %v1995 = vld [vmem:[%s1932 + $0x1f0] sm:$0xff]
        %v1996 = vld [vmem:[%s1932 + $0x1f8] sm:$0xff]
        %vm1997 = vcmask 1044480
        %v1998 = vrot.slane %v1465, 3
        %v1999 = vrot.slane %v1456, 3
        %v2000 = vsel %vm1997, %v1998, %v1999
        %v2001 = vrot.slane %v1466, 3
        %v2002 = vrot.slane %v1458, 3
        %v2003 = vsel %vm1997, %v2001, %v2002
        %v2004 = vrot.slane %v1467, 3
        %v2005 = vsel %vm1997, %v1999, %v2004
        %v2006 = vrot.slane %v1468, 3
        %v2007 = vsel %vm1997, %v2002, %v2006
        %2012 = vmatprep.subr.mxu0 %v1934
        %2013 = vmatpush1.msra.mxu0 %v1933
        %2014 = vmatprep.subr.mxu0 %v1936
        %2015 = vmatpush1.msra.mxu0 %v1935
        %2016 = vmatprep.subr.mxu0 %v1938
        %2017 = vmatpush1.msra.mxu0 %v1937
        %2018 = vmatprep.subr.mxu0 %v1940
        %2019 = vmatpush1.msra.mxu0 %v1939
        %2020 = vmatprep.subr.mxu0 %v1942
        %2021 = vmatpush1.msra.mxu0 %v1941
        %2022 = vmatprep.subr.mxu0 %v1944
        %2023 = vmatpush1.msra.mxu0 %v1943
        %2024 = vmatprep.subr.mxu0 %v1946
        %2025 = vmatpush1.msra.mxu0 %v1945
        %2026 = vmatprep.subr.mxu0 %v1948
        %2027 = vmatpush1.msra.mxu0 %v1947
        %2028 = vmatprep.subr.mxu0 %v1950
        %2029 = vmatpush1.msra.mxu0 %v1949
        %2030 = vmatprep.subr.mxu0 %v1952
        %2031 = vmatpush1.msra.mxu0 %v1951
        %2032 = vmatprep.subr.mxu0 %v1954
        %2033 = vmatpush1.msra.mxu0 %v1953
        %2034 = vmatprep.subr.mxu0 %v1956
        %2035 = vmatpush1.msra.mxu0 %v1955
        %2036 = vmatprep.subr.mxu0 %v1958
        %2037 = vmatpush1.msra.mxu0 %v1957
        %2038 = vmatprep.subr.mxu0 %v1960
        %2039 = vmatpush1.msra.mxu0 %v1959
        %2040 = vmatprep.subr.mxu0 %v1962
        %2041 = vmatpush1.msra.mxu0 %v1961
        %2042 = vmatprep.subr.mxu0 %v1964
        %2043 = vmatpush1.msra.mxu0 %v1963
        %2044 = vmatprep.subr.mxu0 %v1966
        %2045 = vmatpush1.msra.mxu0 %v1965
        %2046 = vmatprep.subr.mxu0 %v1968
        %2047 = vmatpush1.msra.mxu0 %v1967
        %2048 = vmatprep.subr.mxu0 %v1970
        %2049 = vmatpush1.msra.mxu0 %v1969
        %2050 = vmatprep.subr.mxu0 %v1972
        %2051 = vmatpush1.msra.mxu0 %v1971
        %2052 = vmatprep.subr.mxu0 %v1974
        %2053 = vmatpush1.msra.mxu0 %v1973
        %2054 = vmatprep.subr.mxu0 %v1976
        %2055 = vmatpush1.msra.mxu0 %v1975
        %2056 = vmatprep.subr.mxu0 %v1978
        %2057 = vmatpush1.msra.mxu0 %v1977
        %2058 = vmatprep.subr.mxu0 %v1980
        %2059 = vmatpush1.msra.mxu0 %v1979
        %2060 = vmatprep.subr.mxu0 %v1982
        %2061 = vmatpush1.msra.mxu0 %v1981
        %2062 = vmatprep.subr.mxu0 %v1984
        %2063 = vmatpush1.msra.mxu0 %v1983
        %2064 = vmatprep.subr.mxu0 %v1986
        %2065 = vmatpush1.msra.mxu0 %v1985
        %2066 = vmatprep.subr.mxu0 %v1988
        %2067 = vmatpush1.msra.mxu0 %v1987
        %2068 = vmatprep.subr.mxu0 %v1990
        %2069 = vmatpush1.msra.mxu0 %v1989
        %2070 = vmatprep.subr.mxu0 %v1992
        %2071 = vmatpush1.msra.mxu0 %v1991
        %2072 = vmatprep.subr.mxu0 %v1994
        %2073 = vmatpush1.msra.mxu0 %v1993
        %2074 = vmatprep.subr.mxu0 %v1996
        %2075 = vmatpush1.msra.mxu0 %v1995
        %2076 = vmatprep.mubr.f32.mxu0 %v2003
        %2077 = vmatmul.mubr.f32.gmra.mrb[0].mxu0 %v2000
        %v2078 = vpop.f32.mrb[0].mxu0
        %v2079 = vadd.f32 0.0, %v2078
        %v2080 = vpop.f32.mrb[0].mxu0
        %v2081 = vadd.f32 0.0, %v2080
        %2082 = vmatprep.mubr.f32.mxu0 %v2007
        %2083 = vmatmul.mubr.f32.gmra.mrb[0].mxu0 %v2005
        %v2084 = vpop.f32.mrb[0].mxu0
        %v2085 = vadd.f32 0.0, %v2084
        %v2086 = vpop.f32.mrb[0].mxu0
        %v2087 = vadd.f32 0.0, %v2086
        %2088 = vdwg.mxu0
        %v2089 = vadd.f32 %v1928, %v2079
        %v2090 = vadd.f32 %v1929, %v2081
        %v2091 = vadd.f32 %v1930, %v2085
        %v2092 = vadd.f32 %v1931, %v2087
        %s2093 = scalar_lea.vmem [#allocation6], 2048
        %v2094 = vld [vmem:[%s2093] sm:$0xff]
        %v2095 = vld [vmem:[%s2093 + $0x8] sm:$0xff]
        %v2096 = vld [vmem:[%s2093 + $0x10] sm:$0xff]
        %v2097 = vld [vmem:[%s2093 + $0x18] sm:$0xff]
        %v2098 = vld [vmem:[%s2093 + $0x20] sm:$0xff]
        %v2099 = vld [vmem:[%s2093 + $0x28] sm:$0xff]
        %v2100 = vld [vmem:[%s2093 + $0x30] sm:$0xff]
        %v2101 = vld [vmem:[%s2093 + $0x38] sm:$0xff]
        %v2102 = vld [vmem:[%s2093 + $0x40] sm:$0xff]
        %v2103 = vld [vmem:[%s2093 + $0x48] sm:$0xff]
        %v2104 = vld [vmem:[%s2093 + $0x50] sm:$0xff]
        %v2105 = vld [vmem:[%s2093 + $0x58] sm:$0xff]
        %v2106 = vld [vmem:[%s2093 + $0x60] sm:$0xff]
        %v2107 = vld [vmem:[%s2093 + $0x68] sm:$0xff]
        %v2108 = vld [vmem:[%s2093 + $0x70] sm:$0xff]
        %v2109 = vld [vmem:[%s2093 + $0x78] sm:$0xff]
        %v2110 = vld [vmem:[%s2093 + $0x80] sm:$0xff]
        %v2111 = vld [vmem:[%s2093 + $0x88] sm:$0xff]
        %v2112 = vld [vmem:[%s2093 + $0x90] sm:$0xff]
        %v2113 = vld [vmem:[%s2093 + $0x98] sm:$0xff]
        %v2114 = vld [vmem:[%s2093 + $0xa0] sm:$0xff]
        %v2115 = vld [vmem:[%s2093 + $0xa8] sm:$0xff]
        %v2116 = vld [vmem:[%s2093 + $0xb0] sm:$0xff]
        %v2117 = vld [vmem:[%s2093 + $0xb8] sm:$0xff]
        %v2118 = vld [vmem:[%s2093 + $0xc0] sm:$0xff]
        %v2119 = vld [vmem:[%s2093 + $0xc8] sm:$0xff]
        %v2120 = vld [vmem:[%s2093 + $0xd0] sm:$0xff]
        %v2121 = vld [vmem:[%s2093 + $0xd8] sm:$0xff]
        %v2122 = vld [vmem:[%s2093 + $0xe0] sm:$0xff]
        %v2123 = vld [vmem:[%s2093 + $0xe8] sm:$0xff]
        %v2124 = vld [vmem:[%s2093 + $0xf0] sm:$0xff]
        %v2125 = vld [vmem:[%s2093 + $0xf8] sm:$0xff]
        %v2126 = vld [vmem:[%s2093 + $0x100] sm:$0xff]
        %v2127 = vld [vmem:[%s2093 + $0x108] sm:$0xff]
        %v2128 = vld [vmem:[%s2093 + $0x110] sm:$0xff]
        %v2129 = vld [vmem:[%s2093 + $0x118] sm:$0xff]
        %v2130 = vld [vmem:[%s2093 + $0x120] sm:$0xff]
        %v2131 = vld [vmem:[%s2093 + $0x128] sm:$0xff]
        %v2132 = vld [vmem:[%s2093 + $0x130] sm:$0xff]
        %v2133 = vld [vmem:[%s2093 + $0x138] sm:$0xff]
        %v2134 = vld [vmem:[%s2093 + $0x140] sm:$0xff]
        %v2135 = vld [vmem:[%s2093 + $0x148] sm:$0xff]
        %v2136 = vld [vmem:[%s2093 + $0x150] sm:$0xff]
        %v2137 = vld [vmem:[%s2093 + $0x158] sm:$0xff]
        %v2138 = vld [vmem:[%s2093 + $0x160] sm:$0xff]
        %v2139 = vld [vmem:[%s2093 + $0x168] sm:$0xff]
        %v2140 = vld [vmem:[%s2093 + $0x170] sm:$0xff]
        %v2141 = vld [vmem:[%s2093 + $0x178] sm:$0xff]
        %v2142 = vld [vmem:[%s2093 + $0x180] sm:$0xff]
        %v2143 = vld [vmem:[%s2093 + $0x188] sm:$0xff]
        %v2144 = vld [vmem:[%s2093 + $0x190] sm:$0xff]
        %v2145 = vld [vmem:[%s2093 + $0x198] sm:$0xff]
        %v2146 = vld [vmem:[%s2093 + $0x1a0] sm:$0xff]
        %v2147 = vld [vmem:[%s2093 + $0x1a8] sm:$0xff]
        %v2148 = vld [vmem:[%s2093 + $0x1b0] sm:$0xff]
        %v2149 = vld [vmem:[%s2093 + $0x1b8] sm:$0xff]
        %v2150 = vld [vmem:[%s2093 + $0x1c0] sm:$0xff]
        %v2151 = vld [vmem:[%s2093 + $0x1c8] sm:$0xff]
        %v2152 = vld [vmem:[%s2093 + $0x1d0] sm:$0xff]
        %v2153 = vld [vmem:[%s2093 + $0x1d8] sm:$0xff]
        %v2154 = vld [vmem:[%s2093 + $0x1e0] sm:$0xff]
        %v2155 = vld [vmem:[%s2093 + $0x1e8] sm:$0xff]
        %v2156 = vld [vmem:[%s2093 + $0x1f0] sm:$0xff]
        %v2157 = vld [vmem:[%s2093 + $0x1f8] sm:$0xff]
        %vm2158 = vcmask 1043456
        %v2159 = vrot.slane %v1465, 4
        %v2160 = vrot.slane %v1456, 4
        %v2161 = vsel %vm2158, %v2159, %v2160
        %v2162 = vrot.slane %v1466, 4
        %v2163 = vrot.slane %v1458, 4
        %v2164 = vsel %vm2158, %v2162, %v2163
        %v2165 = vrot.slane %v1467, 4
        %v2166 = vsel %vm2158, %v2160, %v2165
        %v2167 = vrot.slane %v1468, 4
        %v2168 = vsel %vm2158, %v2163, %v2167
        %2173 = vmatprep.subr.mxu0 %v2095
        %2174 = vmatpush1.msra.mxu0 %v2094
        %2175 = vmatprep.subr.mxu0 %v2097
        %2176 = vmatpush1.msra.mxu0 %v2096
        %2177 = vmatprep.subr.mxu0 %v2099
        %2178 = vmatpush1.msra.mxu0 %v2098
        %2179 = vmatprep.subr.mxu0 %v2101
        %2180 = vmatpush1.msra.mxu0 %v2100
        %2181 = vmatprep.subr.mxu0 %v2103
        %2182 = vmatpush1.msra.mxu0 %v2102
        %2183 = vmatprep.subr.mxu0 %v2105
        %2184 = vmatpush1.msra.mxu0 %v2104
        %2185 = vmatprep.subr.mxu0 %v2107
        %2186 = vmatpush1.msra.mxu0 %v2106
        %2187 = vmatprep.subr.mxu0 %v2109
        %2188 = vmatpush1.msra.mxu0 %v2108
        %2189 = vmatprep.subr.mxu0 %v2111
        %2190 = vmatpush1.msra.mxu0 %v2110
        %2191 = vmatprep.subr.mxu0 %v2113
        %2192 = vmatpush1.msra.mxu0 %v2112
        %2193 = vmatprep.subr.mxu0 %v2115
        %2194 = vmatpush1.msra.mxu0 %v2114
        %2195 = vmatprep.subr.mxu0 %v2117
        %2196 = vmatpush1.msra.mxu0 %v2116
        %2197 = vmatprep.subr.mxu0 %v2119
        %2198 = vmatpush1.msra.mxu0 %v2118
        %2199 = vmatprep.subr.mxu0 %v2121
        %2200 = vmatpush1.msra.mxu0 %v2120
        %2201 = vmatprep.subr.mxu0 %v2123
        %2202 = vmatpush1.msra.mxu0 %v2122
        %2203 = vmatprep.subr.mxu0 %v2125
        %2204 = vmatpush1.msra.mxu0 %v2124
        %2205 = vmatprep.subr.mxu0 %v2127
        %2206 = vmatpush1.msra.mxu0 %v2126
        %2207 = vmatprep.subr.mxu0 %v2129
        %2208 = vmatpush1.msra.mxu0 %v2128
        %2209 = vmatprep.subr.mxu0 %v2131
        %2210 = vmatpush1.msra.mxu0 %v2130
        %2211 = vmatprep.subr.mxu0 %v2133
        %2212 = vmatpush1.msra.mxu0 %v2132
        %2213 = vmatprep.subr.mxu0 %v2135
        %2214 = vmatpush1.msra.mxu0 %v2134
        %2215 = vmatprep.subr.mxu0 %v2137
        %2216 = vmatpush1.msra.mxu0 %v2136
        %2217 = vmatprep.subr.mxu0 %v2139
        %2218 = vmatpush1.msra.mxu0 %v2138
        %2219 = vmatprep.subr.mxu0 %v2141
        %2220 = vmatpush1.msra.mxu0 %v2140
        %2221 = vmatprep.subr.mxu0 %v2143
        %2222 = vmatpush1.msra.mxu0 %v2142
        %2223 = vmatprep.subr.mxu0 %v2145
        %2224 = vmatpush1.msra.mxu0 %v2144
        %2225 = vmatprep.subr.mxu0 %v2147
        %2226 = vmatpush1.msra.mxu0 %v2146
        %2227 = vmatprep.subr.mxu0 %v2149
        %2228 = vmatpush1.msra.mxu0 %v2148
        %2229 = vmatprep.subr.mxu0 %v2151
        %2230 = vmatpush1.msra.mxu0 %v2150
        %2231 = vmatprep.subr.mxu0 %v2153
        %2232 = vmatpush1.msra.mxu0 %v2152
        %2233 = vmatprep.subr.mxu0 %v2155
        %2234 = vmatpush1.msra.mxu0 %v2154
        %2235 = vmatprep.subr.mxu0 %v2157
        %2236 = vmatpush1.msra.mxu0 %v2156
        %2237 = vmatprep.mubr.f32.mxu0 %v2164
        %2238 = vmatmul.mubr.f32.gmra.mrb[0].mxu0 %v2161
        %v2239 = vpop.f32.mrb[0].mxu0
        %v2240 = vadd.f32 0.0, %v2239
        %v2241 = vpop.f32.mrb[0].mxu0
        %v2242 = vadd.f32 0.0, %v2241
        %2243 = vmatprep.mubr.f32.mxu0 %v2168
        %2244 = vmatmul.mubr.f32.gmra.mrb[0].mxu0 %v2166
        %v2245 = vpop.f32.mrb[0].mxu0
        %v2246 = vadd.f32 0.0, %v2245
        %v2247 = vpop.f32.mrb[0].mxu0
        %v2248 = vadd.f32 0.0, %v2247
        %2249 = vdwg.mxu0
        %v2250 = vadd.f32 %v2089, %v2240
        %v2251 = vadd.f32 %v2090, %v2242
        %v2252 = vadd.f32 %v2091, %v2246
        %v2253 = vadd.f32 %v2092, %v2248
        %s2254 = scalar_lea.vmem [#allocation6], 2560
        %v2255 = vld [vmem:[%s2254] sm:$0xff]
        %v2256 = vld [vmem:[%s2254 + $0x8] sm:$0xff]
        %v2257 = vld [vmem:[%s2254 + $0x10] sm:$0xff]
        %v2258 = vld [vmem:[%s2254 + $0x18] sm:$0xff]
        %v2259 = vld [vmem:[%s2254 + $0x20] sm:$0xff]
        %v2260 = vld [vmem:[%s2254 + $0x28] sm:$0xff]
        %v2261 = vld [vmem:[%s2254 + $0x30] sm:$0xff]
        %v2262 = vld [vmem:[%s2254 + $0x38] sm:$0xff]
        %v2263 = vld [vmem:[%s2254 + $0x40] sm:$0xff]
        %v2264 = vld [vmem:[%s2254 + $0x48] sm:$0xff]
        %v2265 = vld [vmem:[%s2254 + $0x50] sm:$0xff]
        %v2266 = vld [vmem:[%s2254 + $0x58] sm:$0xff]
        %v2267 = vld [vmem:[%s2254 + $0x60] sm:$0xff]
        %v2268 = vld [vmem:[%s2254 + $0x68] sm:$0xff]
        %v2269 = vld [vmem:[%s2254 + $0x70] sm:$0xff]
        %v2270 = vld [vmem:[%s2254 + $0x78] sm:$0xff]
        %v2271 = vld [vmem:[%s2254 + $0x80] sm:$0xff]
        %v2272 = vld [vmem:[%s2254 + $0x88] sm:$0xff]
        %v2273 = vld [vmem:[%s2254 + $0x90] sm:$0xff]
        %v2274 = vld [vmem:[%s2254 + $0x98] sm:$0xff]
        %v2275 = vld [vmem:[%s2254 + $0xa0] sm:$0xff]
        %v2276 = vld [vmem:[%s2254 + $0xa8] sm:$0xff]
        %v2277 = vld [vmem:[%s2254 + $0xb0] sm:$0xff]
        %v2278 = vld [vmem:[%s2254 + $0xb8] sm:$0xff]
        %v2279 = vld [vmem:[%s2254 + $0xc0] sm:$0xff]
        %v2280 = vld [vmem:[%s2254 + $0xc8] sm:$0xff]
        %v2281 = vld [vmem:[%s2254 + $0xd0] sm:$0xff]
        %v2282 = vld [vmem:[%s2254 + $0xd8] sm:$0xff]
        %v2283 = vld [vmem:[%s2254 + $0xe0] sm:$0xff]
        %v2284 = vld [vmem:[%s2254 + $0xe8] sm:$0xff]
        %v2285 = vld [vmem:[%s2254 + $0xf0] sm:$0xff]
        %v2286 = vld [vmem:[%s2254 + $0xf8] sm:$0xff]
        %v2287 = vld [vmem:[%s2254 + $0x100] sm:$0xff]
        %v2288 = vld [vmem:[%s2254 + $0x108] sm:$0xff]
        %v2289 = vld [vmem:[%s2254 + $0x110] sm:$0xff]
        %v2290 = vld [vmem:[%s2254 + $0x118] sm:$0xff]
        %v2291 = vld [vmem:[%s2254 + $0x120] sm:$0xff]
        %v2292 = vld [vmem:[%s2254 + $0x128] sm:$0xff]
        %v2293 = vld [vmem:[%s2254 + $0x130] sm:$0xff]
        %v2294 = vld [vmem:[%s2254 + $0x138] sm:$0xff]
        %v2295 = vld [vmem:[%s2254 + $0x140] sm:$0xff]
        %v2296 = vld [vmem:[%s2254 + $0x148] sm:$0xff]
        %v2297 = vld [vmem:[%s2254 + $0x150] sm:$0xff]
        %v2298 = vld [vmem:[%s2254 + $0x158] sm:$0xff]
        %v2299 = vld [vmem:[%s2254 + $0x160] sm:$0xff]
        %v2300 = vld [vmem:[%s2254 + $0x168] sm:$0xff]
        %v2301 = vld [vmem:[%s2254 + $0x170] sm:$0xff]
        %v2302 = vld [vmem:[%s2254 + $0x178] sm:$0xff]
        %v2303 = vld [vmem:[%s2254 + $0x180] sm:$0xff]
        %v2304 = vld [vmem:[%s2254 + $0x188] sm:$0xff]
        %v2305 = vld [vmem:[%s2254 + $0x190] sm:$0xff]
        %v2306 = vld [vmem:[%s2254 + $0x198] sm:$0xff]
        %v2307 = vld [vmem:[%s2254 + $0x1a0] sm:$0xff]
        %v2308 = vld [vmem:[%s2254 + $0x1a8] sm:$0xff]
        %v2309 = vld [vmem:[%s2254 + $0x1b0] sm:$0xff]
        %v2310 = vld [vmem:[%s2254 + $0x1b8] sm:$0xff]
        %v2311 = vld [vmem:[%s2254 + $0x1c0] sm:$0xff]
        %v2312 = vld [vmem:[%s2254 + $0x1c8] sm:$0xff]
        %v2313 = vld [vmem:[%s2254 + $0x1d0] sm:$0xff]
        %v2314 = vld [vmem:[%s2254 + $0x1d8] sm:$0xff]
        %v2315 = vld [vmem:[%s2254 + $0x1e0] sm:$0xff]
        %v2316 = vld [vmem:[%s2254 + $0x1e8] sm:$0xff]
        %v2317 = vld [vmem:[%s2254 + $0x1f0] sm:$0xff]
        %v2318 = vld [vmem:[%s2254 + $0x1f8] sm:$0xff]
        %v2319 = vrot.slane %v1465, 5
        %v2320 = vrot.slane %v1456, 5
        %v2321 = vsel %vm1452, %v2319, %v2320
        %v2322 = vrot.slane %v1466, 5
        %v2323 = vrot.slane %v1458, 5
        %v2324 = vsel %vm1452, %v2322, %v2323
        %v2325 = vrot.slane %v1467, 5
        %v2326 = vsel %vm1452, %v2320, %v2325
        %v2327 = vrot.slane %v1468, 5
        %v2328 = vsel %vm1452, %v2323, %v2327
        %2333 = vmatprep.subr.mxu0 %v2256
        %2334 = vmatpush1.msra.mxu0 %v2255
        %2335 = vmatprep.subr.mxu0 %v2258
        %2336 = vmatpush1.msra.mxu0 %v2257
        %2337 = vmatprep.subr.mxu0 %v2260
        %2338 = vmatpush1.msra.mxu0 %v2259
        %2339 = vmatprep.subr.mxu0 %v2262
        %2340 = vmatpush1.msra.mxu0 %v2261
        %2341 = vmatprep.subr.mxu0 %v2264
        %2342 = vmatpush1.msra.mxu0 %v2263
        %2343 = vmatprep.subr.mxu0 %v2266
        %2344 = vmatpush1.msra.mxu0 %v2265
        %2345 = vmatprep.subr.mxu0 %v2268
        %2346 = vmatpush1.msra.mxu0 %v2267
        %2347 = vmatprep.subr.mxu0 %v2270
        %2348 = vmatpush1.msra.mxu0 %v2269
        %2349 = vmatprep.subr.mxu0 %v2272
        %2350 = vmatpush1.msra.mxu0 %v2271
        %2351 = vmatprep.subr.mxu0 %v2274
        %2352 = vmatpush1.msra.mxu0 %v2273
        %2353 = vmatprep.subr.mxu0 %v2276
        %2354 = vmatpush1.msra.mxu0 %v2275
        %2355 = vmatprep.subr.mxu0 %v2278
        %2356 = vmatpush1.msra.mxu0 %v2277
        %2357 = vmatprep.subr.mxu0 %v2280
        %2358 = vmatpush1.msra.mxu0 %v2279
        %2359 = vmatprep.subr.mxu0 %v2282
        %2360 = vmatpush1.msra.mxu0 %v2281
        %2361 = vmatprep.subr.mxu0 %v2284
        %2362 = vmatpush1.msra.mxu0 %v2283
        %2363 = vmatprep.subr.mxu0 %v2286
        %2364 = vmatpush1.msra.mxu0 %v2285
        %2365 = vmatprep.subr.mxu0 %v2288
        %2366 = vmatpush1.msra.mxu0 %v2287
        %2367 = vmatprep.subr.mxu0 %v2290
        %2368 = vmatpush1.msra.mxu0 %v2289
        %2369 = vmatprep.subr.mxu0 %v2292
        %2370 = vmatpush1.msra.mxu0 %v2291
        %2371 = vmatprep.subr.mxu0 %v2294
        %2372 = vmatpush1.msra.mxu0 %v2293
        %2373 = vmatprep.subr.mxu0 %v2296
        %2374 = vmatpush1.msra.mxu0 %v2295
        %2375 = vmatprep.subr.mxu0 %v2298
        %2376 = vmatpush1.msra.mxu0 %v2297
        %2377 = vmatprep.subr.mxu0 %v2300
        %2378 = vmatpush1.msra.mxu0 %v2299
        %2379 = vmatprep.subr.mxu0 %v2302
        %2380 = vmatpush1.msra.mxu0 %v2301
        %2381 = vmatprep.subr.mxu0 %v2304
        %2382 = vmatpush1.msra.mxu0 %v2303
        %2383 = vmatprep.subr.mxu0 %v2306
        %2384 = vmatpush1.msra.mxu0 %v2305
        %2385 = vmatprep.subr.mxu0 %v2308
        %2386 = vmatpush1.msra.mxu0 %v2307
        %2387 = vmatprep.subr.mxu0 %v2310
        %2388 = vmatpush1.msra.mxu0 %v2309
        %2389 = vmatprep.subr.mxu0 %v2312
        %2390 = vmatpush1.msra.mxu0 %v2311
        %2391 = vmatprep.subr.mxu0 %v2314
        %2392 = vmatpush1.msra.mxu0 %v2313
        %2393 = vmatprep.subr.mxu0 %v2316
        %2394 = vmatpush1.msra.mxu0 %v2315
        %2395 = vmatprep.subr.mxu0 %v2318
        %2396 = vmatpush1.msra.mxu0 %v2317
        %2397 = vmatprep.mubr.f32.mxu0 %v2324
        %2398 = vmatmul.mubr.f32.gmra.mrb[0].mxu0 %v2321
        %v2399 = vpop.f32.mrb[0].mxu0
        %v2400 = vadd.f32 0.0, %v2399
        %v2401 = vpop.f32.mrb[0].mxu0
        %v2402 = vadd.f32 0.0, %v2401
        %2403 = vmatprep.mubr.f32.mxu0 %v2328
        %2404 = vmatmul.mubr.f32.gmra.mrb[0].mxu0 %v2326
        %v2405 = vpop.f32.mrb[0].mxu0
        %v2406 = vadd.f32 0.0, %v2405
        %v2407 = vpop.f32.mrb[0].mxu0
        %v2408 = vadd.f32 0.0, %v2407
        %2409 = vdwg.mxu0
        %v2410 = vadd.f32 %v2250, %v2400
        %v2411 = vadd.f32 %v2251, %v2402
        %v2412 = vadd.f32 %v2252, %v2406
        %v2413 = vadd.f32 %v2253, %v2408
        %s2414 = scalar_lea.vmem [#allocation6], 3072
        %v2415 = vld [vmem:[%s2414] sm:$0xff]
        %v2416 = vld [vmem:[%s2414 + $0x8] sm:$0xff]
        %v2417 = vld [vmem:[%s2414 + $0x10] sm:$0xff]
        %v2418 = vld [vmem:[%s2414 + $0x18] sm:$0xff]
        %v2419 = vld [vmem:[%s2414 + $0x20] sm:$0xff]
        %v2420 = vld [vmem:[%s2414 + $0x28] sm:$0xff]
        %v2421 = vld [vmem:[%s2414 + $0x30] sm:$0xff]
        %v2422 = vld [vmem:[%s2414 + $0x38] sm:$0xff]
        %v2423 = vld [vmem:[%s2414 + $0x40] sm:$0xff]
        %v2424 = vld [vmem:[%s2414 + $0x48] sm:$0xff]
        %v2425 = vld [vmem:[%s2414 + $0x50] sm:$0xff]
        %v2426 = vld [vmem:[%s2414 + $0x58] sm:$0xff]
        %v2427 = vld [vmem:[%s2414 + $0x60] sm:$0xff]
        %v2428 = vld [vmem:[%s2414 + $0x68] sm:$0xff]
        %v2429 = vld [vmem:[%s2414 + $0x70] sm:$0xff]
        %v2430 = vld [vmem:[%s2414 + $0x78] sm:$0xff]
        %v2431 = vld [vmem:[%s2414 + $0x80] sm:$0xff]
        %v2432 = vld [vmem:[%s2414 + $0x88] sm:$0xff]
        %v2433 = vld [vmem:[%s2414 + $0x90] sm:$0xff]
        %v2434 = vld [vmem:[%s2414 + $0x98] sm:$0xff]
        %v2435 = vld [vmem:[%s2414 + $0xa0] sm:$0xff]
        %v2436 = vld [vmem:[%s2414 + $0xa8] sm:$0xff]
        %v2437 = vld [vmem:[%s2414 + $0xb0] sm:$0xff]
        %v2438 = vld [vmem:[%s2414 + $0xb8] sm:$0xff]
        %v2439 = vld [vmem:[%s2414 + $0xc0] sm:$0xff]
        %v2440 = vld [vmem:[%s2414 + $0xc8] sm:$0xff]
        %v2441 = vld [vmem:[%s2414 + $0xd0] sm:$0xff]
        %v2442 = vld [vmem:[%s2414 + $0xd8] sm:$0xff]
        %v2443 = vld [vmem:[%s2414 + $0xe0] sm:$0xff]
        %v2444 = vld [vmem:[%s2414 + $0xe8] sm:$0xff]
        %v2445 = vld [vmem:[%s2414 + $0xf0] sm:$0xff]
        %v2446 = vld [vmem:[%s2414 + $0xf8] sm:$0xff]
        %v2447 = vld [vmem:[%s2414 + $0x100] sm:$0xff]
        %v2448 = vld [vmem:[%s2414 + $0x108] sm:$0xff]
        %v2449 = vld [vmem:[%s2414 + $0x110] sm:$0xff]
        %v2450 = vld [vmem:[%s2414 + $0x118] sm:$0xff]
        %v2451 = vld [vmem:[%s2414 + $0x120] sm:$0xff]
        %v2452 = vld [vmem:[%s2414 + $0x128] sm:$0xff]
        %v2453 = vld [vmem:[%s2414 + $0x130] sm:$0xff]
        %v2454 = vld [vmem:[%s2414 + $0x138] sm:$0xff]
        %v2455 = vld [vmem:[%s2414 + $0x140] sm:$0xff]
        %v2456 = vld [vmem:[%s2414 + $0x148] sm:$0xff]
        %v2457 = vld [vmem:[%s2414 + $0x150] sm:$0xff]
        %v2458 = vld [vmem:[%s2414 + $0x158] sm:$0xff]
        %v2459 = vld [vmem:[%s2414 + $0x160] sm:$0xff]
        %v2460 = vld [vmem:[%s2414 + $0x168] sm:$0xff]
        %v2461 = vld [vmem:[%s2414 + $0x170] sm:$0xff]
        %v2462 = vld [vmem:[%s2414 + $0x178] sm:$0xff]
        %v2463 = vld [vmem:[%s2414 + $0x180] sm:$0xff]
        %v2464 = vld [vmem:[%s2414 + $0x188] sm:$0xff]
        %v2465 = vld [vmem:[%s2414 + $0x190] sm:$0xff]
        %v2466 = vld [vmem:[%s2414 + $0x198] sm:$0xff]
        %v2467 = vld [vmem:[%s2414 + $0x1a0] sm:$0xff]
        %v2468 = vld [vmem:[%s2414 + $0x1a8] sm:$0xff]
        %v2469 = vld [vmem:[%s2414 + $0x1b0] sm:$0xff]
        %v2470 = vld [vmem:[%s2414 + $0x1b8] sm:$0xff]
        %v2471 = vld [vmem:[%s2414 + $0x1c0] sm:$0xff]
        %v2472 = vld [vmem:[%s2414 + $0x1c8] sm:$0xff]
        %v2473 = vld [vmem:[%s2414 + $0x1d0] sm:$0xff]
        %v2474 = vld [vmem:[%s2414 + $0x1d8] sm:$0xff]
        %v2475 = vld [vmem:[%s2414 + $0x1e0] sm:$0xff]
        %v2476 = vld [vmem:[%s2414 + $0x1e8] sm:$0xff]
        %v2477 = vld [vmem:[%s2414 + $0x1f0] sm:$0xff]
        %v2478 = vld [vmem:[%s2414 + $0x1f8] sm:$0xff]
        %v2479 = vrot.slane %v1465, 6
        %v2480 = vrot.slane %v1456, 6
        %v2481 = vsel %vm426, %v2479, %v2480
        %v2482 = vrot.slane %v1466, 6
        %v2483 = vrot.slane %v1458, 6
        %v2484 = vsel %vm426, %v2482, %v2483
        %v2485 = vrot.slane %v1467, 6
        %v2486 = vsel %vm426, %v2480, %v2485
        %v2487 = vrot.slane %v1468, 6
        %v2488 = vsel %vm426, %v2483, %v2487
        %2493 = vmatprep.subr.mxu0 %v2416
        %2494 = vmatpush1.msra.mxu0 %v2415
        %2495 = vmatprep.subr.mxu0 %v2418
        %2496 = vmatpush1.msra.mxu0 %v2417
        %2497 = vmatprep.subr.mxu0 %v2420
        %2498 = vmatpush1.msra.mxu0 %v2419
        %2499 = vmatprep.subr.mxu0 %v2422
        %2500 = vmatpush1.msra.mxu0 %v2421
        %2501 = vmatprep.subr.mxu0 %v2424
        %2502 = vmatpush1.msra.mxu0 %v2423
        %2503 = vmatprep.subr.mxu0 %v2426
        %2504 = vmatpush1.msra.mxu0 %v2425
        %2505 = vmatprep.subr.mxu0 %v2428
        %2506 = vmatpush1.msra.mxu0 %v2427
        %2507 = vmatprep.subr.mxu0 %v2430
        %2508 = vmatpush1.msra.mxu0 %v2429
        %2509 = vmatprep.subr.mxu0 %v2432
        %2510 = vmatpush1.msra.mxu0 %v2431
        %2511 = vmatprep.subr.mxu0 %v2434
        %2512 = vmatpush1.msra.mxu0 %v2433
        %2513 = vmatprep.subr.mxu0 %v2436
        %2514 = vmatpush1.msra.mxu0 %v2435
        %2515 = vmatprep.subr.mxu0 %v2438
        %2516 = vmatpush1.msra.mxu0 %v2437
        %2517 = vmatprep.subr.mxu0 %v2440
        %2518 = vmatpush1.msra.mxu0 %v2439
        %2519 = vmatprep.subr.mxu0 %v2442
        %2520 = vmatpush1.msra.mxu0 %v2441
        %2521 = vmatprep.subr.mxu0 %v2444
        %2522 = vmatpush1.msra.mxu0 %v2443
        %2523 = vmatprep.subr.mxu0 %v2446
        %2524 = vmatpush1.msra.mxu0 %v2445
        %2525 = vmatprep.subr.mxu0 %v2448
        %2526 = vmatpush1.msra.mxu0 %v2447
        %2527 = vmatprep.subr.mxu0 %v2450
        %2528 = vmatpush1.msra.mxu0 %v2449
        %2529 = vmatprep.subr.mxu0 %v2452
        %2530 = vmatpush1.msra.mxu0 %v2451
        %2531 = vmatprep.subr.mxu0 %v2454
        %2532 = vmatpush1.msra.mxu0 %v2453
        %2533 = vmatprep.subr.mxu0 %v2456
        %2534 = vmatpush1.msra.mxu0 %v2455
        %2535 = vmatprep.subr.mxu0 %v2458
        %2536 = vmatpush1.msra.mxu0 %v2457
        %2537 = vmatprep.subr.mxu0 %v2460
        %2538 = vmatpush1.msra.mxu0 %v2459
        %2539 = vmatprep.subr.mxu0 %v2462
        %2540 = vmatpush1.msra.mxu0 %v2461
        %2541 = vmatprep.subr.mxu0 %v2464
        %2542 = vmatpush1.msra.mxu0 %v2463
        %2543 = vmatprep.subr.mxu0 %v2466
        %2544 = vmatpush1.msra.mxu0 %v2465
        %2545 = vmatprep.subr.mxu0 %v2468
        %2546 = vmatpush1.msra.mxu0 %v2467
        %2547 = vmatprep.subr.mxu0 %v2470
        %2548 = vmatpush1.msra.mxu0 %v2469
        %2549 = vmatprep.subr.mxu0 %v2472
        %2550 = vmatpush1.msra.mxu0 %v2471
        %2551 = vmatprep.subr.mxu0 %v2474
        %2552 = vmatpush1.msra.mxu0 %v2473
        %2553 = vmatprep.subr.mxu0 %v2476
        %2554 = vmatpush1.msra.mxu0 %v2475
        %2555 = vmatprep.subr.mxu0 %v2478
        %2556 = vmatpush1.msra.mxu0 %v2477
        %2557 = vmatprep.mubr.f32.mxu0 %v2484
        %2558 = vmatmul.mubr.f32.gmra.mrb[0].mxu0 %v2481
        %v2559 = vpop.f32.mrb[0].mxu0
        %v2560 = vadd.f32 0.0, %v2559
        %v2561 = vpop.f32.mrb[0].mxu0
        %v2562 = vadd.f32 0.0, %v2561
        %2563 = vmatprep.mubr.f32.mxu0 %v2488
        %2564 = vmatmul.mubr.f32.gmra.mrb[0].mxu0 %v2486
        %v2565 = vpop.f32.mrb[0].mxu0
        %v2566 = vadd.f32 0.0, %v2565
        %v2567 = vpop.f32.mrb[0].mxu0
        %v2568 = vadd.f32 0.0, %v2567
        %2569 = vdwg.mxu0
        %v2570 = vadd.f32 %v2410, %v2560
        %v2571 = vadd.f32 %v2411, %v2562
        %v2572 = vadd.f32 %v2412, %v2566
        %v2573 = vadd.f32 %v2413, %v2568
        %v2574 = vxor.u32 %v2570, 2147483648
        %v2575 = vxor.u32 %v2571, 2147483648
        %v2576 = vxor.u32 %v2572, 2147483648
        %v2577 = vxor.u32 %v2573, 2147483648
        %v2578 = vmul.f32 %v2574, 1.442695
        %v2579 = vpow.pop %v2578
        %v2580 = vmul.f32 %v2575, 1.442695
        %v2581 = vpow.pop %v2580
        %v2582 = vmul.f32 %v2576, 1.442695
        %v2583 = vpow.pop %v2582
        %v2584 = vmul.f32 %v2577, 1.442695
        %v2585 = vpow.pop %v2584
        %v2586 = vadd.f32 %v2579, 1.0
        %v2587 = vadd.f32 %v2581, 1.0
        %v2588 = vadd.f32 %v2583, 1.0
        %v2589 = vadd.f32 %v2585, 1.0
        %v2590 = vrcp.pop %v2586
        %v2591 = vmul.f32 1.0, %v2590
        %v2592 = vrcp.pop %v2587
        %v2593 = vmul.f32 1.0, %v2592
        %v2594 = vrcp.pop %v2588
        %v2595 = vmul.f32 1.0, %v2594
        %v2596 = vrcp.pop %v2589
        %v2597 = vmul.f32 1.0, %v2596
        %v2598 = vmul.f32 %v2591, %v1055
        %v2599 = vmul.f32 %v2593, %v1056
        %v2600 = vmul.f32 %v2595, %v1057
        %v2601 = vmul.f32 %v2597, %v1058
        %v2602 = vadd.f32 %v660, %v2598
        %v2603 = vadd.f32 %v661, %v2599
        %v2604 = vadd.f32 %v662, %v2600
        %v2605 = vadd.f32 %v663, %v2601
        %v2606 = vmax.f32 %v2602, 0.0
        %v2607 = vmax.f32 %v2603, 0.0
        %v2608 = vmax.f32 %v2604, 0.0
        %v2609 = vmax.f32 %v2605, 0.0
        %2610 = vst [vmem:[%s401] sm:$0xff] %v2606
        %2611 = vst [vmem:[%s401 + $0x8] sm:$0xff] %v2607
        %2612 = vst [vmem:[%s401 + $0x10] sm:$0xff] %v2608
        %2613 = vst [vmem:[%s401 + $0x18] sm:$0xff] %v2609
        %p2614 = scmp.lt.s32.totalorder %s23, 1
        %s2615 = scalar_select %p2614, %s23, 1
        %s2616 = smul.addr %s2615, 4
        %s2617 = smul.addr %s2616, 8
        %s2618 = scalar_lea.vmem %s9, %s2617
        // Predicated region
        $region77: #{layer_forward.3} parent=55 // pred_check
          %p2619 = pneg %p235
        $region78: #{layer_forward.3} parent=55 // pred_check_branch
          %2621 = sbr.rel (%p2619) target = $region80
        $region79: #{layer_forward.3} parent=55 // pred_region
          _
        $region80: #{layer_forward.3} parent=55 // pred_fallthru
          _
      $region56: #{layer_forward.3} parent=5 // pred_fallthru
        _
      %p2622 = scmp.le.s32.totalorder 2, %s18
      // Predicated region
      $region81: #{layer_forward.3} parent=5 // pred_check
        %p2623 = pneg %p2622
      $region82: #{layer_forward.3} parent=5 // pred_check_branch
        %2625 = sbr.rel (%p2623) target = $region84
      $region83: #{layer_forward.3} parent=5 // pred_region
        %s2626 = ssub.s32 %s18, 2
        // Predicated region
        $region85: #{layer_forward.3} parent=83 // pred_check
          %p2627 = pneg %p241
        $region86: #{layer_forward.3} parent=83 // pred_check_branch
          %2629 = sbr.rel (%p2627) target = $region88
        $region87: #{layer_forward.3} parent=83 // pred_region
          %p2630 = scmp.lt.s32.totalorder %s24, 1
          %s2631 = scalar_select %p2630, %s24, 1
          %s2632 = smul.addr %s2631, 4
          %s2633 = smul.addr %s2632, 8
          %s2634 = scalar_lea.vmem %s9, %s2633
        $region88: #{layer_forward.3} parent=83 // pred_fallthru
          _
      $region84: #{layer_forward.3} parent=5 // pred_fallthru
        _
    $region6: #{layer_forward.3} parent=1 // loop_footer
      %s22 = sadd.s32 1, %s18
    $region7: #{layer_forward.3} parent=1 // loop_footer_branch
      %17 = sbr.rel target = $region3
    $region8: #{layer_forward.3} parent=1 // loop_exit
      _
    %2635 = vsyncpa [#allocation3], 1
    %s2636 = scalar_lea.sflag [#allocation3], 1
    %2637 = vsyncpa %s2636, 1
    %2638 = vsyncpa [#allocation5], 1
    %2639 = vsyncpa [#allocation8], 1

</llo_original>
